<compile_context>
chip_gen: v7x
topology: tpu7x:2x2x1
jax: 0.10.0
libtpu: 0.0.40
codegen_flags: <defaults>
</compile_context>

<pallas_src>
import jax
import jax.numpy as jnp
from jax.experimental import pallas as pl
from jax.experimental.pallas import tpu as pltpu

LANE = 128
VMEM_LIMIT = 32 * 1024 * 1024
CONV1_KP = 128   # pad_to(5*5*3 = 75, 128)
CONV2_KP = 256   # pad_to(5*5*6 = 150, 128)
FC1_KP = 512     # pad_to(16*5*5 = 400, 128)


def _pad_to(v, m):
    return ((v + m - 1) // m) * m


def _pick_tiles(q, bytes_per_row, budget=4 * 1024 * 1024):
    """Pick (tm, q_padded): tm is a multiple of 8; q_padded a multiple of tm.

    Small problems -> one whole-M tile (no per-step overhead at batch 2);
    large problems -> <=512-row tiles so the 'parallel' grid axis has >=2
    steps (v7x dual TensorCore) while each block stays within ~4 MiB, safe on
    all generations (incl. v7x's 64 MiB physical VMEM) with double buffering.
    """
    q8 = _pad_to(max(q, 8), 8)
    if q8 * bytes_per_row <= budget:
        return q8, q8
    tm = min(512, max(8, (budget // bytes_per_row) // 8 * 8))
    return tm, _pad_to(q, tm)


# ---------------------------------------------------------------------------
# Kernels
# ---------------------------------------------------------------------------
def conv_pool_kernel(cols_ref, w_ref, b_ref, o_ref):
    """maxpool2x2(relu(conv + b)) for one M tile.

    cols_ref: (4, tm, kp) bf16 -- the 4 pool taps of the im2col matrix.
    Four bf16 GEMMs (f32 accumulate) + max tree; bias/ReLU fused at the end
    (ReLU is monotone and the bias is tap-invariant, so max-then-bias-ReLU
    equals pool(relu(conv + b))).
    """
    w = w_ref[...]
    y = jnp.dot(cols_ref[0], w, preferred_element_type=jnp.float32)
    for t in range(1, 4):
        y = jnp.maximum(
            y, jnp.dot(cols_ref[t], w, preferred_element_type=jnp.float32))
    o_ref[...] = jnp.maximum(y + b_ref[...], 0.0).astype(o_ref.dtype)


def fc_kernel(x_ref, w1_ref, b1_ref, w2_ref, b2_ref, w3_ref, b3_ref, o_ref):
    """fc3(relu(fc2(relu(fc1(x))))) fully fused; bf16 GEMMs, f32 elementwise."""
    h = jnp.dot(x_ref[...], w1_ref[...], preferred_element_type=jnp.float32)
    h = jnp.maximum(h + b1_ref[...], 0.0)
    h = jnp.dot(h.astype(w2_ref.dtype), w2_ref[...],
                preferred_element_type=jnp.float32)
    h = jnp.maximum(h + b2_ref[...], 0.0)
    h = jnp.dot(h.astype(w3_ref.dtype), w3_ref[...],
                preferred_element_type=jnp.float32)
    o_ref[...] = (h + b3_ref[...]).astype(o_ref.dtype)


# ---------------------------------------------------------------------------
# Pallas wrappers
# ---------------------------------------------------------------------------
def conv_pool(cols4, wmat, bias, tm):
    """cols4: (4, Qp, Kp) bf16 im2col grouped by pool tap (Qp % tm == 0);
    wmat: (Kp, 128) bf16; bias: (1, 128) f32.  Returns (Qp, 128) bf16."""
    taps, qp, kp = cols4.shape
    cp = wmat.shape[1]
    grid = (qp // tm,)
    flops = 2 * taps * qp * kp * cp
    bytes_accessed = int(cols4.size * 2 + wmat.size * 2 + bias.size * 4
                         + qp * cp * 2)
    return pl.pallas_call(
        conv_pool_kernel,
        out_shape=jax.ShapeDtypeStruct((qp, cp), jnp.bfloat16),
        grid_spec=pltpu.PrefetchScalarGridSpec(
            num_scalar_prefetch=0,
            grid=grid,
            in_specs=[
                pl.BlockSpec((taps, tm, kp), lambda m: (0, m, 0)),
                pl.BlockSpec((kp, cp), lambda m: (0, 0)),
                pl.BlockSpec((1, cp), lambda m: (0, 0)),
            ],
            out_specs=pl.BlockSpec((tm, cp), lambda m: (m, 0)),
        ),
        compiler_params=pltpu.CompilerParams(
            dimension_semantics=("parallel",),
            vmem_limit_bytes=VMEM_LIMIT),
        cost_estimate=pl.CostEstimate(flops=int(flops), transcendentals=0,
                                      bytes_accessed=bytes_accessed),
    )(cols4, wmat, bias)


def fc_stack(x, w1, b1, w2, b2, w3, b3):
    """x: (M, 512) bf16; weights pre-packed (K, 128) bf16; biases (1,128) f32.
    Pads M to a tile multiple internally; caller slices the valid rows."""
    m, k1 = x.shape
    h1, h2, out = w1.shape[1], w2.shape[1], w3.shape[1]
    tm, mp = _pick_tiles(m, k1 * 2)
    if mp != m:
        x = jnp.pad(x, ((0, mp - m), (0, 0)))
    grid = (mp // tm,)
    flops = 2 * mp * (k1 * h1 + h1 * h2 + h2 * out)
    bytes_accessed = int(x.size * 2 + (w1.size + w2.size + w3.size) * 2
                         + (b1.size + b2.size + b3.size) * 4 + mp * out * 4)
    return pl.pallas_call(
        fc_kernel,
        out_shape=jax.ShapeDtypeStruct((mp, out), jnp.float32),
        grid_spec=pltpu.PrefetchScalarGridSpec(
            num_scalar_prefetch=0,
            grid=grid,
            in_specs=[
                pl.BlockSpec((tm, k1), lambda i: (i, 0)),
                pl.BlockSpec((k1, h1), lambda i: (0, 0)),
                pl.BlockSpec((1, h1), lambda i: (0, 0)),
                pl.BlockSpec((h1, h2), lambda i: (0, 0)),
                pl.BlockSpec((1, h2), lambda i: (0, 0)),
                pl.BlockSpec((h2, out), lambda i: (0, 0)),
                pl.BlockSpec((1, out), lambda i: (0, 0)),
            ],
            out_specs=pl.BlockSpec((tm, out), lambda i: (i, 0)),
        ),
        compiler_params=pltpu.CompilerParams(
            dimension_semantics=("parallel",),
            vmem_limit_bytes=VMEM_LIMIT),
        cost_estimate=pl.CostEstimate(flops=int(flops), transcendentals=0,
                                      bytes_accessed=bytes_accessed),
    )(x, w1, b1, w2, b2, w3, b3)


# ---------------------------------------------------------------------------
# im2col (XLA glue, bf16), grouped by 2x2 pool tap so the kernel can
# max-reduce over the 4 taps in a single grid step.
# ---------------------------------------------------------------------------
def _im2col_pooled(x, kh, kw, k_pad, q_pad):
    """x: (N, H, W, C) NHWC bf16 -> (4, q_pad, k_pad) bf16.

    Tap t = dy*2+dx holds, for each pooled position (n, ph, pw), the flattened
    (kh, kw, C) patch at conv-output position (2*ph+dy, 2*pw+dx).  Q and K are
    zero-padded (inert through GEMM; padded Q rows are sliced off later)."""
    n, h, w, c = x.shape
    oh, ow = h - kh + 1, w - kw + 1
    assert oh % 2 == 0 and ow % 2 == 0
    ph, pw = oh // 2, ow // 2
    pats = [x[:, i:i + oh, j:j + ow, :] for i in range(kh) for j in range(kw)]
    p = jnp.stack(pats, axis=3)                       # (N, OH, OW, kh*kw, C)
    p = p.reshape(n, ph, 2, pw, 2, kh * kw * c)
    p = jnp.transpose(p, (2, 4, 0, 1, 3, 5))          # (dy, dx, N, ph, pw, K)
    cols = p.reshape(4, n * ph * pw, kh * kw * c)
    k = kh * kw * c
    cols = jnp.pad(cols, ((0, 0), (0, q_pad - n * ph * pw), (0, k_pad - k)))
    return cols


# ---------------------------------------------------------------------------
# Parameters: PyTorch-style init, then one-time packing into TPU-friendly,
# lane-padded bf16 layouts (weights pre-transposed, biases as f32 (1, 128)).
# ---------------------------------------------------------------------------
def init_params(key):
    def uniform(key, shape, fan_in):
        bound = 1.0 / jnp.sqrt(float(fan_in))
        return jax.random.uniform(key, shape, jnp.float32, -bound, bound)

    ks = jax.random.split(key, 10)
    return {
        "conv1_w": uniform(ks[0], (6, 3, 5, 5), 3 * 5 * 5),
        "conv1_b": uniform(ks[1], (6,), 3 * 5 * 5),
        "conv2_w": uniform(ks[2], (16, 6, 5, 5), 6 * 5 * 5),
        "conv2_b": uniform(ks[3], (16,), 6 * 5 * 5),
        "fc1_w": uniform(ks[4], (120, 400), 400),
        "fc1_b": uniform(ks[5], (120,), 400),
        "fc2_w": uniform(ks[6], (84, 120), 120),
        "fc2_b": uniform(ks[7], (84,), 120),
        "fc3_w": uniform(ks[8], (10, 84), 84),
        "fc3_b": uniform(ks[9], (10,), 84),
    }


def pack_params(p):
    def pack_conv(w, b):
        co, ci, kh, kw = w.shape
        k = kh * kw * ci
        kp = _pad_to(k, LANE)
        wm = jnp.transpose(w, (2, 3, 1, 0)).reshape(k, co)   # rows = (i, j, ci)
        wm = jnp.pad(wm, ((0, kp - k), (0, LANE - co))).astype(jnp.bfloat16)
        bm = jnp.pad(b, (0, LANE - co)).reshape(1, LANE)     # f32
        return wm, bm

    def pack_fc(w, b):
        o, k = w.shape
        kp = _pad_to(k, LANE)
        wm = jnp.pad(w.T, ((0, kp - k), (0, LANE - o))).astype(jnp.bfloat16)
        bm = jnp.pad(b, (0, LANE - o)).reshape(1, LANE)
        return wm, bm

    def pack_fc1(w, b, c_valid=16, hw=5):
        # PyTorch fc1 consumes the (c, h, w) flatten of (16, 5, 5); repack to
        # consume the compact (h, w, c=16) flatten (K=400) of the pooled conv2
        # output, padded only to K=512 (vs. 3200 before).
        o, _ = w.shape
        wr = w.reshape(o, c_valid, hw, hw)
        wr = jnp.transpose(wr, (2, 3, 1, 0))                 # (h, w, c, o)
        wr = wr.reshape(hw * hw * c_valid, o)                # (400, 120)
        wm = jnp.pad(wr, ((0, FC1_KP - hw * hw * c_valid),
                          (0, LANE - o))).astype(jnp.bfloat16)
        bm = jnp.pad(b, (0, LANE - o)).reshape(1, LANE)
        return wm, bm

    w1, b1 = pack_conv(p["conv1_w"], p["conv1_b"])
    w2, b2 = pack_conv(p["conv2_w"], p["conv2_b"])
    f1w, f1b = pack_fc1(p["fc1_w"], p["fc1_b"])
    f2w, f2b = pack_fc(p["fc2_w"], p["fc2_b"])
    f3w, f3b = pack_fc(p["fc3_w"], p["fc3_b"])
    return {"conv1_w": w1, "conv1_b": b1, "conv2_w": w2, "conv2_b": b2,
            "fc1_w": f1w, "fc1_b": f1b, "fc2_w": f2w, "fc2_b": f2b,
            "fc3_w": f3w, "fc3_b": f3b}


# ---------------------------------------------------------------------------
# Forward pass (mirrors Net.forward)
# ---------------------------------------------------------------------------
def net_forward(pp, x):
    # x: (N, 3, 32, 32) NCHW (PyTorch semantics) -> NHWC bf16 once.
    n = x.shape[0]
    xh = jnp.transpose(x, (0, 2, 3, 1)).astype(jnp.bfloat16)  # (N, 32, 32, 3)

    # Stage 1: maxpool2x2(relu(conv1)) as 4-tap GEMM + in-kernel max.
    q1 = n * 14 * 14
    tm1, q1p = _pick_tiles(q1, 4 * CONV1_KP * 2)
    cols1 = _im2col_pooled(xh, 5, 5, CONV1_KP, q1p)           # (4, q1p, 128)
    a1 = conv_pool(cols1, pp["conv1_w"], pp["conv1_b"], tm1)  # (q1p, 128), 6 valid

    # Stage 2: maxpool2x2(relu(conv2)).
    x2 = a1[:q1, :6].reshape(n, 14, 14, 6)                    # NHWC bf16
    q2 = n * 5 * 5
    tm2, q2p = _pick_tiles(q2, 4 * CONV2_KP * 2)
    cols2 = _im2col_pooled(x2, 5, 5, CONV2_KP, q2p)           # (4, q2p, 256)
    a2 = conv_pool(cols2, pp["conv2_w"], pp["conv2_b"], tm2)  # (q2p, 128), 16 valid

    # Stage 3: fc stack on the compact (h, w, c=16) flatten, K padded 400->512.
    feat = a2[:q2, :16].reshape(n, 400)
    feat = jnp.pad(feat, ((0, 0), (0, FC1_KP - 400)))         # (N, 512) bf16
    out = fc_stack(feat, pp["fc1_w"], pp["fc1_b"], pp["fc2_w"],
                   pp["fc2_b"], pp["fc3_w"], pp["fc3_b"])     # (M_pad, 128) f32
    return out[:n, :10]


if __name__ == "__main__":
    key = jax.random.PRNGKey(0)
    pkey, xkey = jax.random.split(key)
    params = init_params(pkey)
    packed = pack_params(params)
    # Net implies 32x32 input (conv5 -> pool2 -> conv5 -> pool2 -> 16*5*5).
    x = jax.random.normal(xkey, (2, 3, 32, 32), dtype=jnp.float32)

    out = jax.jit(net_forward)(packed, x)
    out = jax.block_until_ready(out)
    assert out.shape == (2, 10), out.shape
    assert out.dtype == jnp.float32
    assert bool(jnp.all(jnp.isfinite(out)))
    print("KERNEL_OK")
</pallas_src>

<mosaic_0001>
module attributes {stable_mosaic.version = 11 : i64} {
  func.func @conv_pool_kernel(%arg0: i32, %arg1: memref<4x392x128xbf16, #tpu.memory_space<vmem>>, %arg2: memref<128x128xbf16, #tpu.memory_space<vmem>>, %arg3: memref<1x128xf32, #tpu.memory_space<vmem>>, %arg4: memref<392x128xbf16, #tpu.memory_space<vmem>>) attributes {dimension_semantics = [#tpu.dimension_semantics<parallel>], iteration_bounds = array<i64: 1>, scalar_prefetch = 0 : i64, scratch_operands = 0 : i64, tpu.core_type = #tpu.core_type<tc>, window_params = [{transform_indices = @transform_0, window_bounds = array<i64: 4, 392, 128>}, {pipeline_mode = #tpu.pipeline_mode<synchronous>, transform_indices = @transform_1, window_bounds = array<i64: 128, 128>}, {pipeline_mode = #tpu.pipeline_mode<synchronous>, transform_indices = @transform_2, window_bounds = array<i64: 1, 128>}, {transform_indices = @transform_3, window_bounds = array<i64: 392, 128>}]} {
    %c0 = arith.constant 0 : index
    %c0_0 = arith.constant 0 : index
    %0 = vector.load %arg2[%c0, %c0_0] : memref<128x128xbf16, #tpu.memory_space<vmem>>, vector<128x128xbf16>
    %c0_1 = arith.constant 0 : index
    %c0_2 = arith.constant 0 : index
    %c0_3 = arith.constant 0 : index
    %1 = vector.load %arg1[%c0_1, %c0_2, %c0_3] : memref<4x392x128xbf16, #tpu.memory_space<vmem>>, vector<1x392x128xbf16>
    %2 = vector.shape_cast %1 : vector<1x392x128xbf16> to vector<392x128xbf16>
    %cst = arith.constant dense<0.000000e+00> : vector<392x128xf32>
    %3 = tpu.matmul %2, %0, %cst {dimension_numbers = #tpu.dot_dimension_numbers<[1], [0], [0], [1], [0, 0, 1, 1], [], []>} : vector<392x128xbf16>, vector<128x128xbf16>, vector<392x128xf32> -> vector<392x128xf32>
    %c1 = arith.constant 1 : index
    %c0_4 = arith.constant 0 : index
    %c0_5 = arith.constant 0 : index
    %4 = vector.load %arg1[%c1, %c0_4, %c0_5] : memref<4x392x128xbf16, #tpu.memory_space<vmem>>, vector<1x392x128xbf16>
    %5 = vector.shape_cast %4 : vector<1x392x128xbf16> to vector<392x128xbf16>
    %cst_6 = arith.constant dense<0.000000e+00> : vector<392x128xf32>
    %6 = tpu.matmul %5, %0, %cst_6 {dimension_numbers = #tpu.dot_dimension_numbers<[1], [0], [0], [1], [0, 0, 1, 1], [], []>} : vector<392x128xbf16>, vector<128x128xbf16>, vector<392x128xf32> -> vector<392x128xf32>
    %7 = arith.maximumf %3, %6 : vector<392x128xf32>
    %c2 = arith.constant 2 : index
    %c0_7 = arith.constant 0 : index
    %c0_8 = arith.constant 0 : index
    %8 = vector.load %arg1[%c2, %c0_7, %c0_8] : memref<4x392x128xbf16, #tpu.memory_space<vmem>>, vector<1x392x128xbf16>
    %9 = vector.shape_cast %8 : vector<1x392x128xbf16> to vector<392x128xbf16>
    %cst_9 = arith.constant dense<0.000000e+00> : vector<392x128xf32>
    %10 = tpu.matmul %9, %0, %cst_9 {dimension_numbers = #tpu.dot_dimension_numbers<[1], [0], [0], [1], [0, 0, 1, 1], [], []>} : vector<392x128xbf16>, vector<128x128xbf16>, vector<392x128xf32> -> vector<392x128xf32>
    %11 = arith.maximumf %7, %10 : vector<392x128xf32>
    %c3 = arith.constant 3 : index
    %c0_10 = arith.constant 0 : index
    %c0_11 = arith.constant 0 : index
    %12 = vector.load %arg1[%c3, %c0_10, %c0_11] : memref<4x392x128xbf16, #tpu.memory_space<vmem>>, vector<1x392x128xbf16>
    %13 = vector.shape_cast %12 : vector<1x392x128xbf16> to vector<392x128xbf16>
    %cst_12 = arith.constant dense<0.000000e+00> : vector<392x128xf32>
    %14 = tpu.matmul %13, %0, %cst_12 {dimension_numbers = #tpu.dot_dimension_numbers<[1], [0], [0], [1], [0, 0, 1, 1], [], []>} : vector<392x128xbf16>, vector<128x128xbf16>, vector<392x128xf32> -> vector<392x128xf32>
    %15 = arith.maximumf %11, %14 : vector<392x128xf32>
    %c0_13 = arith.constant 0 : index
    %c0_14 = arith.constant 0 : index
    %16 = vector.load %arg3[%c0_13, %c0_14] : memref<1x128xf32, #tpu.memory_space<vmem>>, vector<1x128xf32>
    %17 = vector.broadcast %16 : vector<1x128xf32> to vector<392x128xf32>
    %18 = arith.addf %15, %17 : vector<392x128xf32>
    %cst_15 = arith.constant 0.000000e+00 : f32
    %19 = vector.broadcast %cst_15 : f32 to vector<392x128xf32>
    %20 = arith.maximumf %18, %19 : vector<392x128xf32>
    %21 = arith.truncf %20 : vector<392x128xf32> to vector<392x128xbf16>
    %c0_16 = arith.constant 0 : index
    %c0_17 = arith.constant 0 : index
    %22 = vector.load %arg4[%c0_16, %c0_17] : memref<392x128xbf16, #tpu.memory_space<vmem>>, vector<392x128xbf16>
    tpu.vector_store %arg4[%c0_16, %c0_17], %21 {strides = array<i32>} : memref<392x128xbf16, #tpu.memory_space<vmem>>, vector<392x128xbf16>,
    return
  }
  func.func @transform_0(%arg0: i32) -> (i32, i32, i32) {
    %c0_i32 = arith.constant 0 : i32
    %c0_i32_0 = arith.constant 0 : i32
    %c0_i32_1 = arith.constant 0 : i32
    return %c0_i32, %arg0, %c0_i32_0 : i32, i32, i32
  }
  func.func @transform_1(%arg0: i32) -> (i32, i32) {
    %c0_i32 = arith.constant 0 : i32
    %c0_i32_0 = arith.constant 0 : i32
    %c0_i32_1 = arith.constant 0 : i32
    return %c0_i32, %c0_i32_0 : i32, i32
  }
  func.func @transform_2(%arg0: i32) -> (i32, i32) {
    %c0_i32 = arith.constant 0 : i32
    %c0_i32_0 = arith.constant 0 : i32
    %c0_i32_1 = arith.constant 0 : i32
    return %c0_i32, %c0_i32_0 : i32, i32
  }
  func.func @transform_3(%arg0: i32) -> (i32, i32) {
    %c0_i32 = arith.constant 0 : i32
    %c0_i32_0 = arith.constant 0 : i32
    return %arg0, %c0_i32 : i32, i32
  }
}

module attributes {stable_mosaic.version = 11 : i64} {
  func.func @conv_pool_kernel(%arg0: i32, %arg1: memref<4x56x256xbf16, #tpu.memory_space<vmem>>, %arg2: memref<256x128xbf16, #tpu.memory_space<vmem>>, %arg3: memref<1x128xf32, #tpu.memory_space<vmem>>, %arg4: memref<56x128xbf16, #tpu.memory_space<vmem>>) attributes {dimension_semantics = [#tpu.dimension_semantics<parallel>], iteration_bounds = array<i64: 1>, scalar_prefetch = 0 : i64, scratch_operands = 0 : i64, tpu.core_type = #tpu.core_type<tc>, window_params = [{transform_indices = @transform_0, window_bounds = array<i64: 4, 56, 256>}, {pipeline_mode = #tpu.pipeline_mode<synchronous>, transform_indices = @transform_1, window_bounds = array<i64: 256, 128>}, {pipeline_mode = #tpu.pipeline_mode<synchronous>, transform_indices = @transform_2, window_bounds = array<i64: 1, 128>}, {transform_indices = @transform_3, window_bounds = array<i64: 56, 128>}]} {
    %c0 = arith.constant 0 : index
    %c0_0 = arith.constant 0 : index
    %0 = vector.load %arg2[%c0, %c0_0] : memref<256x128xbf16, #tpu.memory_space<vmem>>, vector<256x128xbf16>
    %c0_1 = arith.constant 0 : index
    %c0_2 = arith.constant 0 : index
    %c0_3 = arith.constant 0 : index
    %1 = vector.load %arg1[%c0_1, %c0_2, %c0_3] : memref<4x56x256xbf16, #tpu.memory_space<vmem>>, vector<1x56x256xbf16>
    %2 = vector.shape_cast %1 : vector<1x56x256xbf16> to vector<56x256xbf16>
    %cst = arith.constant dense<0.000000e+00> : vector<56x128xf32>
    %3 = tpu.matmul %2, %0, %cst {dimension_numbers = #tpu.dot_dimension_numbers<[1], [0], [0], [1], [0, 0, 1, 1], [], []>} : vector<56x256xbf16>, vector<256x128xbf16>, vector<56x128xf32> -> vector<56x128xf32>
    %c1 = arith.constant 1 : index
    %c0_4 = arith.constant 0 : index
    %c0_5 = arith.constant 0 : index
    %4 = vector.load %arg1[%c1, %c0_4, %c0_5] : memref<4x56x256xbf16, #tpu.memory_space<vmem>>, vector<1x56x256xbf16>
    %5 = vector.shape_cast %4 : vector<1x56x256xbf16> to vector<56x256xbf16>
    %cst_6 = arith.constant dense<0.000000e+00> : vector<56x128xf32>
    %6 = tpu.matmul %5, %0, %cst_6 {dimension_numbers = #tpu.dot_dimension_numbers<[1], [0], [0], [1], [0, 0, 1, 1], [], []>} : vector<56x256xbf16>, vector<256x128xbf16>, vector<56x128xf32> -> vector<56x128xf32>
    %7 = arith.maximumf %3, %6 : vector<56x128xf32>
    %c2 = arith.constant 2 : index
    %c0_7 = arith.constant 0 : index
    %c0_8 = arith.constant 0 : index
    %8 = vector.load %arg1[%c2, %c0_7, %c0_8] : memref<4x56x256xbf16, #tpu.memory_space<vmem>>, vector<1x56x256xbf16>
    %9 = vector.shape_cast %8 : vector<1x56x256xbf16> to vector<56x256xbf16>
    %cst_9 = arith.constant dense<0.000000e+00> : vector<56x128xf32>
    %10 = tpu.matmul %9, %0, %cst_9 {dimension_numbers = #tpu.dot_dimension_numbers<[1], [0], [0], [1], [0, 0, 1, 1], [], []>} : vector<56x256xbf16>, vector<256x128xbf16>, vector<56x128xf32> -> vector<56x128xf32>
    %11 = arith.maximumf %7, %10 : vector<56x128xf32>
    %c3 = arith.constant 3 : index
    %c0_10 = arith.constant 0 : index
    %c0_11 = arith.constant 0 : index
    %12 = vector.load %arg1[%c3, %c0_10, %c0_11] : memref<4x56x256xbf16, #tpu.memory_space<vmem>>, vector<1x56x256xbf16>
    %13 = vector.shape_cast %12 : vector<1x56x256xbf16> to vector<56x256xbf16>
    %cst_12 = arith.constant dense<0.000000e+00> : vector<56x128xf32>
    %14 = tpu.matmul %13, %0, %cst_12 {dimension_numbers = #tpu.dot_dimension_numbers<[1], [0], [0], [1], [0, 0, 1, 1], [], []>} : vector<56x256xbf16>, vector<256x128xbf16>, vector<56x128xf32> -> vector<56x128xf32>
    %15 = arith.maximumf %11, %14 : vector<56x128xf32>
    %c0_13 = arith.constant 0 : index
    %c0_14 = arith.constant 0 : index
    %16 = vector.load %arg3[%c0_13, %c0_14] : memref<1x128xf32, #tpu.memory_space<vmem>>, vector<1x128xf32>
    %17 = vector.broadcast %16 : vector<1x128xf32> to vector<56x128xf32>
    %18 = arith.addf %15, %17 : vector<56x128xf32>
    %cst_15 = arith.constant 0.000000e+00 : f32
    %19 = vector.broadcast %cst_15 : f32 to vector<56x128xf32>
    %20 = arith.maximumf %18, %19 : vector<56x128xf32>
    %21 = arith.truncf %20 : vector<56x128xf32> to vector<56x128xbf16>
    %c0_16 = arith.constant 0 : index
    %c0_17 = arith.constant 0 : index
    %22 = vector.load %arg4[%c0_16, %c0_17] : memref<56x128xbf16, #tpu.memory_space<vmem>>, vector<56x128xbf16>
    tpu.vector_store %arg4[%c0_16, %c0_17], %21 {strides = array<i32>} : memref<56x128xbf16, #tpu.memory_space<vmem>>, vector<56x128xbf16>,
    return
  }
  func.func @transform_0(%arg0: i32) -> (i32, i32, i32) {
    %c0_i32 = arith.constant 0 : i32
    %c0_i32_0 = arith.constant 0 : i32
    %c0_i32_1 = arith.constant 0 : i32
    return %c0_i32, %arg0, %c0_i32_0 : i32, i32, i32
  }
  func.func @transform_1(%arg0: i32) -> (i32, i32) {
    %c0_i32 = arith.constant 0 : i32
    %c0_i32_0 = arith.constant 0 : i32
    %c0_i32_1 = arith.constant 0 : i32
    return %c0_i32, %c0_i32_0 : i32, i32
  }
  func.func @transform_2(%arg0: i32) -> (i32, i32) {
    %c0_i32 = arith.constant 0 : i32
    %c0_i32_0 = arith.constant 0 : i32
    %c0_i32_1 = arith.constant 0 : i32
    return %c0_i32, %c0_i32_0 : i32, i32
  }
  func.func @transform_3(%arg0: i32) -> (i32, i32) {
    %c0_i32 = arith.constant 0 : i32
    %c0_i32_0 = arith.constant 0 : i32
    return %arg0, %c0_i32 : i32, i32
  }
}

module attributes {stable_mosaic.version = 11 : i64} {
  func.func @fc_kernel(%arg0: i32, %arg1: memref<8x512xbf16, #tpu.memory_space<vmem>>, %arg2: memref<512x128xbf16, #tpu.memory_space<vmem>>, %arg3: memref<1x128xf32, #tpu.memory_space<vmem>>, %arg4: memref<128x128xbf16, #tpu.memory_space<vmem>>, %arg5: memref<1x128xf32, #tpu.memory_space<vmem>>, %arg6: memref<128x128xbf16, #tpu.memory_space<vmem>>, %arg7: memref<1x128xf32, #tpu.memory_space<vmem>>, %arg8: memref<8x128xf32, #tpu.memory_space<vmem>>) attributes {dimension_semantics = [#tpu.dimension_semantics<parallel>], iteration_bounds = array<i64: 1>, scalar_prefetch = 0 : i64, scratch_operands = 0 : i64, tpu.core_type = #tpu.core_type<tc>, window_params = [{transform_indices = @transform_0, window_bounds = array<i64: 8, 512>}, {pipeline_mode = #tpu.pipeline_mode<synchronous>, transform_indices = @transform_1, window_bounds = array<i64: 512, 128>}, {pipeline_mode = #tpu.pipeline_mode<synchronous>, transform_indices = @transform_2, window_bounds = array<i64: 1, 128>}, {pipeline_mode = #tpu.pipeline_mode<synchronous>, transform_indices = @transform_3, window_bounds = array<i64: 128, 128>}, {pipeline_mode = #tpu.pipeline_mode<synchronous>, transform_indices = @transform_4, window_bounds = array<i64: 1, 128>}, {pipeline_mode = #tpu.pipeline_mode<synchronous>, transform_indices = @transform_5, window_bounds = array<i64: 128, 128>}, {pipeline_mode = #tpu.pipeline_mode<synchronous>, transform_indices = @transform_6, window_bounds = array<i64: 1, 128>}, {transform_indices = @transform_7, window_bounds = array<i64: 8, 128>}]} {
    %c0 = arith.constant 0 : index
    %c0_0 = arith.constant 0 : index
    %0 = vector.load %arg1[%c0, %c0_0] : memref<8x512xbf16, #tpu.memory_space<vmem>>, vector<8x512xbf16>
    %c0_1 = arith.constant 0 : index
    %c0_2 = arith.constant 0 : index
    %1 = vector.load %arg2[%c0_1, %c0_2] : memref<512x128xbf16, #tpu.memory_space<vmem>>, vector<512x128xbf16>
    %cst = arith.constant dense<0.000000e+00> : vector<8x128xf32>
    %2 = tpu.matmul %0, %1, %cst {dimension_numbers = #tpu.dot_dimension_numbers<[1], [0], [0], [1], [0, 0, 1, 1], [], []>} : vector<8x512xbf16>, vector<512x128xbf16>, vector<8x128xf32> -> vector<8x128xf32>
    %c0_3 = arith.constant 0 : index
    %c0_4 = arith.constant 0 : index
    %3 = vector.load %arg3[%c0_3, %c0_4] : memref<1x128xf32, #tpu.memory_space<vmem>>, vector<1x128xf32>
    %4 = vector.broadcast %3 : vector<1x128xf32> to vector<8x128xf32>
    %5 = arith.addf %2, %4 : vector<8x128xf32>
    %cst_5 = arith.constant 0.000000e+00 : f32
    %6 = vector.broadcast %cst_5 : f32 to vector<8x128xf32>
    %7 = arith.maximumf %5, %6 : vector<8x128xf32>
    %8 = arith.truncf %7 : vector<8x128xf32> to vector<8x128xbf16>
    %c0_6 = arith.constant 0 : index
    %c0_7 = arith.constant 0 : index
    %9 = vector.load %arg4[%c0_6, %c0_7] : memref<128x128xbf16, #tpu.memory_space<vmem>>, vector<128x128xbf16>
    %cst_8 = arith.constant dense<0.000000e+00> : vector<8x128xf32>
    %10 = tpu.matmul %8, %9, %cst_8 {dimension_numbers = #tpu.dot_dimension_numbers<[1], [0], [0], [1], [0, 0, 1, 1], [], []>} : vector<8x128xbf16>, vector<128x128xbf16>, vector<8x128xf32> -> vector<8x128xf32>
    %c0_9 = arith.constant 0 : index
    %c0_10 = arith.constant 0 : index
    %11 = vector.load %arg5[%c0_9, %c0_10] : memref<1x128xf32, #tpu.memory_space<vmem>>, vector<1x128xf32>
    %12 = vector.broadcast %11 : vector<1x128xf32> to vector<8x128xf32>
    %13 = arith.addf %10, %12 : vector<8x128xf32>
    %cst_11 = arith.constant 0.000000e+00 : f32
    %14 = vector.broadcast %cst_11 : f32 to vector<8x128xf32>
    %15 = arith.maximumf %13, %14 : vector<8x128xf32>
    %16 = arith.truncf %15 : vector<8x128xf32> to vector<8x128xbf16>
    %c0_12 = arith.constant 0 : index
    %c0_13 = arith.constant 0 : index
    %17 = vector.load %arg6[%c0_12, %c0_13] : memref<128x128xbf16, #tpu.memory_space<vmem>>, vector<128x128xbf16>
    %cst_14 = arith.constant dense<0.000000e+00> : vector<8x128xf32>
    %18 = tpu.matmul %16, %17, %cst_14 {dimension_numbers = #tpu.dot_dimension_numbers<[1], [0], [0], [1], [0, 0, 1, 1], [], []>} : vector<8x128xbf16>, vector<128x128xbf16>, vector<8x128xf32> -> vector<8x128xf32>
    %c0_15 = arith.constant 0 : index
    %c0_16 = arith.constant 0 : index
    %19 = vector.load %arg7[%c0_15, %c0_16] : memref<1x128xf32, #tpu.memory_space<vmem>>, vector<1x128xf32>
    %20 = vector.broadcast %19 : vector<1x128xf32> to vector<8x128xf32>
    %21 = arith.addf %18, %20 : vector<8x128xf32>
    %c0_17 = arith.constant 0 : index
    %c0_18 = arith.constant 0 : index
    %22 = vector.load %arg8[%c0_17, %c0_18] : memref<8x128xf32, #tpu.memory_space<vmem>>, vector<8x128xf32>
    tpu.vector_store %arg8[%c0_17, %c0_18], %21 {strides = array<i32>} : memref<8x128xf32, #tpu.memory_space<vmem>>, vector<8x128xf32>,
    return
  }
  func.func @transform_0(%arg0: i32) -> (i32, i32) {
    %c0_i32 = arith.constant 0 : i32
    %c0_i32_0 = arith.constant 0 : i32
    return %arg0, %c0_i32 : i32, i32
  }
  func.func @transform_1(%arg0: i32) -> (i32, i32) {
    %c0_i32 = arith.constant 0 : i32
    %c0_i32_0 = arith.constant 0 : i32
    %c0_i32_1 = arith.constant 0 : i32
    return %c0_i32, %c0_i32_0 : i32, i32
  }
  func.func @transform_2(%arg0: i32) -> (i32, i32) {
    %c0_i32 = arith.constant 0 : i32
    %c0_i32_0 = arith.constant 0 : i32
    %c0_i32_1 = arith.constant 0 : i32
    return %c0_i32, %c0_i32_0 : i32, i32
  }
  func.func @transform_3(%arg0: i32) -> (i32, i32) {
    %c0_i32 = arith.constant 0 : i32
    %c0_i32_0 = arith.constant 0 : i32
    %c0_i32_1 = arith.constant 0 : i32
    return %c0_i32, %c0_i32_0 : i32, i32
  }
  func.func @transform_4(%arg0: i32) -> (i32, i32) {
    %c0_i32 = arith.constant 0 : i32
    %c0_i32_0 = arith.constant 0 : i32
    %c0_i32_1 = arith.constant 0 : i32
    return %c0_i32, %c0_i32_0 : i32, i32
  }
  func.func @transform_5(%arg0: i32) -> (i32, i32) {
    %c0_i32 = arith.constant 0 : i32
    %c0_i32_0 = arith.constant 0 : i32
    %c0_i32_1 = arith.constant 0 : i32
    return %c0_i32, %c0_i32_0 : i32, i32
  }
  func.func @transform_6(%arg0: i32) -> (i32, i32) {
    %c0_i32 = arith.constant 0 : i32
    %c0_i32_0 = arith.constant 0 : i32
    %c0_i32_1 = arith.constant 0 : i32
    return %c0_i32, %c0_i32_0 : i32, i32
  }
  func.func @transform_7(%arg0: i32) -> (i32, i32) {
    %c0_i32 = arith.constant 0 : i32
    %c0_i32_0 = arith.constant 0 : i32
    return %arg0, %c0_i32 : i32, i32
  }
}

</mosaic_0001>

<llo_original>
// kernel: net_forward.3
$region0: #{net_forward.3}
  #allocation0 [shape = 'u32[]', space=smem, size = 0x4, offset = 0x4, fixed_abs, tag = 'smem constant byte address 0x4 - core index']
  #allocation1 [shape = 'u32[144,128]{1,0:T(1,128)}', space=vmem, size = 0x12000, scoped, tag = 'internal scratch']
  %s0 = inlined_call_operand.vmem [shape: bf16[4,392,128], index: 0, kind: input, shape index: {}]
  %s1 = inlined_call_operand.vmem [shape: bf16[128,128], index: 1, kind: input, shape index: {}]
  %s2 = inlined_call_operand.vmem [shape: f32[1,128], index: 2, kind: input, shape index: {}]
  %s3 = inlined_call_operand.vmem [shape: bf16[392,128], index: 3, kind: output, shape index: {}]
  %s4 = sld [smem:[#allocation0]]
  $region22: #{net_forward.3} parent=0
    _
  %s6 = ssub.s32 1, %s4
  %s7 = scalar_select 0, %s6, %s4
  // Predicated region
  $region2: #{net_forward.3} parent=0 // pred_check
    _
  $region3: #{net_forward.3} parent=0 // pred_check_branch
    %9 = sbr.rel (0) target = $region5
  $region4: #{net_forward.3} parent=0 // pred_region
    _
  $region5: #{net_forward.3} parent=0 // pred_fallthru
    _
  // Predicated region
  $region6: #{net_forward.3} parent=0 // pred_check
    _
  $region7: #{net_forward.3} parent=0 // pred_check_branch
    %11 = sbr.rel (0) target = $region9
  $region8: #{net_forward.3} parent=0 // pred_region
    _
  $region9: #{net_forward.3} parent=0 // pred_fallthru
    _
  // Predicated region
  $region10: #{net_forward.3} parent=0 // pred_check
    _
  $region11: #{net_forward.3} parent=0 // pred_check_branch
    %13 = sbr.rel (0) target = $region13
  $region12: #{net_forward.3} parent=0 // pred_region
    _
  $region13: #{net_forward.3} parent=0 // pred_fallthru
    _
  %v15 = vld [vmem:[%s1] sm:$0xf]
  %v16 = vld [vmem:[%s1 + $0x4] sm:$0xf]
  %v17 = vld [vmem:[%s1 + $0x8] sm:$0xf]
  %v18 = vld [vmem:[%s1 + $0xc] sm:$0xf]
  %v19 = vld [vmem:[%s1 + $0x10] sm:$0xf]
  %v20 = vld [vmem:[%s1 + $0x14] sm:$0xf]
  %v21 = vld [vmem:[%s1 + $0x18] sm:$0xf]
  %v22 = vld [vmem:[%s1 + $0x1c] sm:$0xf]
  %v23 = vld [vmem:[%s1 + $0x20] sm:$0xf]
  %v24 = vld [vmem:[%s1 + $0x24] sm:$0xf]
  %v25 = vld [vmem:[%s1 + $0x28] sm:$0xf]
  %v26 = vld [vmem:[%s1 + $0x2c] sm:$0xf]
  %v27 = vld [vmem:[%s1 + $0x30] sm:$0xf]
  %v28 = vld [vmem:[%s1 + $0x34] sm:$0xf]
  %v29 = vld [vmem:[%s1 + $0x38] sm:$0xf]
  %v30 = vld [vmem:[%s1 + $0x3c] sm:$0xf]
  %v31 = vld [vmem:[%s0] sm:$0xf]
  %v32 = vld [vmem:[%s0 + $0x4] sm:$0xf]
  %v33 = vld [vmem:[%s0 + $0x8] sm:$0xf]
  %v34 = vld [vmem:[%s0 + $0xc] sm:$0xf]
  %v35 = vld [vmem:[%s0 + $0x10] sm:$0xf]
  %v36 = vld [vmem:[%s0 + $0x14] sm:$0xf]
  %v37 = vld [vmem:[%s0 + $0x18] sm:$0xf]
  %v38 = vld [vmem:[%s0 + $0x1c] sm:$0xf]
  %v39 = vld [vmem:[%s0 + $0x20] sm:$0xf]
  %v40 = vld [vmem:[%s0 + $0x24] sm:$0xf]
  %v41 = vld [vmem:[%s0 + $0x28] sm:$0xf]
  %v42 = vld [vmem:[%s0 + $0x2c] sm:$0xf]
  %v43 = vld [vmem:[%s0 + $0x30] sm:$0xf]
  %v44 = vld [vmem:[%s0 + $0x34] sm:$0xf]
  %v45 = vld [vmem:[%s0 + $0x38] sm:$0xf]
  %v46 = vld [vmem:[%s0 + $0x3c] sm:$0xf]
  %v47 = vld [vmem:[%s0 + $0x40] sm:$0xf]
  %v48 = vld [vmem:[%s0 + $0x44] sm:$0xf]
  %v49 = vld [vmem:[%s0 + $0x48] sm:$0xf]
  %v50 = vld [vmem:[%s0 + $0x4c] sm:$0xf]
  %v51 = vld [vmem:[%s0 + $0x50] sm:$0xf]
  %v52 = vld [vmem:[%s0 + $0x54] sm:$0xf]
  %v53 = vld [vmem:[%s0 + $0x58] sm:$0xf]
  %v54 = vld [vmem:[%s0 + $0x5c] sm:$0xf]
  %v55 = vld [vmem:[%s0 + $0x60] sm:$0xf]
  %v56 = vld [vmem:[%s0 + $0x64] sm:$0xf]
  %v57 = vld [vmem:[%s0 + $0x68] sm:$0xf]
  %v58 = vld [vmem:[%s0 + $0x6c] sm:$0xf]
  %v59 = vld [vmem:[%s0 + $0x70] sm:$0xf]
  %v60 = vld [vmem:[%s0 + $0x74] sm:$0xf]
  %v61 = vld [vmem:[%s0 + $0x78] sm:$0xf]
  %v62 = vld [vmem:[%s0 + $0x7c] sm:$0xf]
  %v63 = vld [vmem:[%s0 + $0x80] sm:$0xf]
  %v64 = vld [vmem:[%s0 + $0x84] sm:$0xf]
  %v65 = vld [vmem:[%s0 + $0x88] sm:$0xf]
  %v66 = vld [vmem:[%s0 + $0x8c] sm:$0xf]
  %v67 = vld [vmem:[%s0 + $0x90] sm:$0xf]
  %v68 = vld [vmem:[%s0 + $0x94] sm:$0xf]
  %v69 = vld [vmem:[%s0 + $0x98] sm:$0xf]
  %v70 = vld [vmem:[%s0 + $0x9c] sm:$0xf]
  %v71 = vld [vmem:[%s0 + $0xa0] sm:$0xf]
  %v72 = vld [vmem:[%s0 + $0xa4] sm:$0xf]
  %v73 = vld [vmem:[%s0 + $0xa8] sm:$0xf]
  %v74 = vld [vmem:[%s0 + $0xac] sm:$0xf]
  %v75 = vld [vmem:[%s0 + $0xb0] sm:$0xf]
  %v76 = vld [vmem:[%s0 + $0xb4] sm:$0xf]
  %v77 = vld [vmem:[%s0 + $0xb8] sm:$0xf]
  %v78 = vld [vmem:[%s0 + $0xbc] sm:$0xf]
  %v79 = vld [vmem:[%s0 + $0xc0] sm:$0xf]
  %v129 = vunpack.c.l.b16 %v31
  %v130 = vunpack.c.l.b16 %v32
  %v131 = vunpack.c.l.b16 %v33
  %v132 = vunpack.c.l.b16 %v34
  %v133 = vunpack.c.l.b16 %v35
  %v134 = vunpack.c.l.b16 %v36
  %v135 = vunpack.c.l.b16 %v37
  %v136 = vunpack.c.l.b16 %v38
  %v137 = vunpack.c.l.b16 %v39
  %v138 = vunpack.c.l.b16 %v40
  %v139 = vunpack.c.l.b16 %v41
  %v140 = vunpack.c.l.b16 %v42
  %v141 = vunpack.c.l.b16 %v43
  %v142 = vunpack.c.l.b16 %v44
  %v143 = vunpack.c.l.b16 %v45
  %v144 = vunpack.c.l.b16 %v46
  %v145 = vunpack.c.l.b16 %v47
  %v146 = vunpack.c.l.b16 %v48
  %v147 = vunpack.c.l.b16 %v49
  %v148 = vunpack.c.l.b16 %v50
  %v149 = vunpack.c.l.b16 %v51
  %v150 = vunpack.c.l.b16 %v52
  %v151 = vunpack.c.l.b16 %v53
  %v152 = vunpack.c.l.b16 %v54
  %v153 = vunpack.c.l.b16 %v55
  %v154 = vunpack.c.l.b16 %v56
  %v155 = vunpack.c.l.b16 %v57
  %v156 = vunpack.c.l.b16 %v58
  %v157 = vunpack.c.l.b16 %v59
  %v158 = vunpack.c.l.b16 %v60
  %v159 = vunpack.c.l.b16 %v61
  %v160 = vunpack.c.l.b16 %v62
  %v161 = vunpack.c.l.b16 %v63
  %v162 = vunpack.c.l.b16 %v64
  %v163 = vunpack.c.l.b16 %v65
  %v164 = vunpack.c.l.b16 %v66
  %v165 = vunpack.c.l.b16 %v67
  %v166 = vunpack.c.l.b16 %v68
  %v167 = vunpack.c.l.b16 %v69
  %v168 = vunpack.c.l.b16 %v70
  %v169 = vunpack.c.l.b16 %v71
  %v170 = vunpack.c.l.b16 %v72
  %v171 = vunpack.c.l.b16 %v73
  %v172 = vunpack.c.l.b16 %v74
  %v173 = vunpack.c.l.b16 %v75
  %v174 = vunpack.c.l.b16 %v76
  %v175 = vunpack.c.l.b16 %v77
  %v176 = vunpack.c.l.b16 %v78
  %v177 = vunpack.c.l.b16 %v79
  %v178 = vpack.c.b16 %v130, %v129
  %v179 = vpack.c.b16 %v132, %v131
  %v180 = vpack.c.b16 %v134, %v133
  %v181 = vpack.c.b16 %v136, %v135
  %v182 = vpack.c.b16 %v138, %v137
  %v183 = vpack.c.b16 %v140, %v139
  %v184 = vpack.c.b16 %v142, %v141
  %v185 = vpack.c.b16 %v144, %v143
  %v186 = vpack.c.b16 %v146, %v145
  %v187 = vpack.c.b16 %v148, %v147
  %v188 = vpack.c.b16 %v150, %v149
  %v189 = vpack.c.b16 %v152, %v151
  %v190 = vpack.c.b16 %v154, %v153
  %v191 = vpack.c.b16 %v156, %v155
  %v192 = vpack.c.b16 %v158, %v157
  %v193 = vpack.c.b16 %v160, %v159
  %v194 = vpack.c.b16 %v162, %v161
  %v195 = vpack.c.b16 %v164, %v163
  %v196 = vpack.c.b16 %v166, %v165
  %v197 = vpack.c.b16 %v168, %v167
  %v198 = vpack.c.b16 %v170, %v169
  %v199 = vpack.c.b16 %v172, %v171
  %v200 = vpack.c.b16 %v174, %v173
  %v201 = vpack.c.b16 %v176, %v175
  %v202 = vpack.c.b16 %v177, %v177
  %v244 = vunpack.c.l.b16 %v15
  %v245 = vunpack.c.l.b16 %v16
  %v246 = vunpack.c.l.b16 %v17
  %v247 = vunpack.c.l.b16 %v18
  %v248 = vunpack.c.l.b16 %v19
  %v249 = vunpack.c.l.b16 %v20
  %v250 = vunpack.c.l.b16 %v21
  %v251 = vunpack.c.l.b16 %v22
  %v252 = vunpack.c.l.b16 %v23
  %v253 = vunpack.c.l.b16 %v24
  %v254 = vunpack.c.l.b16 %v25
  %v255 = vunpack.c.l.b16 %v26
  %v256 = vunpack.c.l.b16 %v27
  %v257 = vunpack.c.l.b16 %v28
  %v258 = vunpack.c.l.b16 %v29
  %v259 = vunpack.c.l.b16 %v30
  %v260 = vpack.c.b16 %v245, %v244
  %v261 = vpack.c.b16 %v247, %v246
  %v262 = vpack.c.b16 %v249, %v248
  %v263 = vpack.c.b16 %v251, %v250
  %v264 = vpack.c.b16 %v253, %v252
  %v265 = vpack.c.b16 %v255, %v254
  %v266 = vpack.c.b16 %v257, %v256
  %v267 = vpack.c.b16 %v259, %v258
  %276 = vmatprep.subr.bf16.mxu0 0
  %277 = vmatpush1.bf16.msra.mxu0 %v260
  %278 = vmatprep.subr.bf16.mxu0 0
  %279 = vmatpush1.bf16.msra.mxu0 %v261
  %280 = vmatprep.subr.bf16.mxu0 0
  %281 = vmatpush1.bf16.msra.mxu0 %v262
  %282 = vmatprep.subr.bf16.mxu0 0
  %283 = vmatpush1.bf16.msra.mxu0 %v263
  %284 = vmatprep.subr.bf16.mxu0 0
  %285 = vmatpush1.bf16.msra.mxu0 %v264
  %286 = vmatprep.subr.bf16.mxu0 0
  %287 = vmatpush1.bf16.msra.mxu0 %v265
  %288 = vmatprep.subr.bf16.mxu0 0
  %289 = vmatpush1.bf16.msra.mxu0 %v266
  %290 = vmatprep.subr.bf16.mxu0 0
  %291 = vmatpush1.bf16.msra.mxu0 %v267
  %292 = vmatprep.subr.bf16.mxu0 0
  %293 = vmatpush1.bf16.msra.mxu0 0
  %294 = vmatprep.subr.bf16.mxu0 0
  %295 = vmatpush1.bf16.msra.mxu0 0
  %296 = vmatprep.subr.bf16.mxu0 0
  %297 = vmatpush1.bf16.msra.mxu0 0
  %298 = vmatprep.subr.bf16.mxu0 0
  %299 = vmatpush1.bf16.msra.mxu0 0
  %300 = vmatprep.subr.bf16.mxu0 0
  %301 = vmatpush1.bf16.msra.mxu0 0
  %302 = vmatprep.subr.bf16.mxu0 0
  %303 = vmatpush1.bf16.msra.mxu0 0
  %304 = vmatprep.subr.bf16.mxu0 0
  %305 = vmatpush1.bf16.msra.mxu0 0
  %306 = vmatprep.subr.bf16.mxu0 0
  %307 = vmatpush1.bf16.msra.mxu0 0
  %308 = vmatprep.mubr.bf16.mxu0 0
  %309 = vmatmul.mubr.bf16.gmra.mrb[0].mxu0 %v178
  %v310 = vpop.f32.mrb[0].mxu0
  %v311 = vadd.f32 0.0, %v310
  %v312 = vpop.f32.mrb[0].mxu0
  %v313 = vpop.f32.mrb[0].mxu0
  %v314 = vadd.f32 0.0, %v313
  %v315 = vpop.f32.mrb[0].mxu0
  %316 = vmatprep.mubr.bf16.mxu0 0
  %317 = vmatmul.mubr.bf16.gmra.mrb[0].mxu0 %v179
  %v318 = vpop.f32.mrb[0].mxu0
  %v319 = vadd.f32 0.0, %v318
  %v320 = vpop.f32.mrb[0].mxu0
  %v321 = vpop.f32.mrb[0].mxu0
  %v322 = vadd.f32 0.0, %v321
  %v323 = vpop.f32.mrb[0].mxu0
  %324 = vmatprep.mubr.bf16.mxu0 0
  %325 = vmatmul.mubr.bf16.gmra.mrb[0].mxu0 %v180
  %v326 = vpop.f32.mrb[0].mxu0
  %v327 = vadd.f32 0.0, %v326
  %v328 = vpop.f32.mrb[0].mxu0
  %v329 = vpop.f32.mrb[0].mxu0
  %v330 = vadd.f32 0.0, %v329
  %v331 = vpop.f32.mrb[0].mxu0
  %332 = vmatprep.mubr.bf16.mxu0 0
  %333 = vmatmul.mubr.bf16.gmra.mrb[0].mxu0 %v181
  %v334 = vpop.f32.mrb[0].mxu0
  %v335 = vadd.f32 0.0, %v334
  %v336 = vpop.f32.mrb[0].mxu0
  %v337 = vpop.f32.mrb[0].mxu0
  %v338 = vadd.f32 0.0, %v337
  %v339 = vpop.f32.mrb[0].mxu0
  %340 = vmatprep.mubr.bf16.mxu0 0
  %341 = vmatmul.mubr.bf16.gmra.mrb[0].mxu0 %v182
  %v342 = vpop.f32.mrb[0].mxu0
  %v343 = vadd.f32 0.0, %v342
  %v344 = vpop.f32.mrb[0].mxu0
  %v345 = vpop.f32.mrb[0].mxu0
  %v346 = vadd.f32 0.0, %v345
  %v347 = vpop.f32.mrb[0].mxu0
  %348 = vmatprep.mubr.bf16.mxu0 0
  %349 = vmatmul.mubr.bf16.gmra.mrb[0].mxu0 %v183
  %v350 = vpop.f32.mrb[0].mxu0
  %v351 = vadd.f32 0.0, %v350
  %v352 = vpop.f32.mrb[0].mxu0
  %v353 = vpop.f32.mrb[0].mxu0
  %v354 = vadd.f32 0.0, %v353
  %v355 = vpop.f32.mrb[0].mxu0
  %356 = vmatprep.mubr.bf16.mxu0 0
  %357 = vmatmul.mubr.bf16.gmra.mrb[0].mxu0 %v184
  %v358 = vpop.f32.mrb[0].mxu0
  %v359 = vadd.f32 0.0, %v358
  %v360 = vpop.f32.mrb[0].mxu0
  %v361 = vpop.f32.mrb[0].mxu0
  %v362 = vadd.f32 0.0, %v361
  %v363 = vpop.f32.mrb[0].mxu0
  %364 = vmatprep.mubr.bf16.mxu0 0
  %365 = vmatmul.mubr.bf16.gmra.mrb[0].mxu0 %v185
  %v366 = vpop.f32.mrb[0].mxu0
  %v367 = vadd.f32 0.0, %v366
  %v368 = vpop.f32.mrb[0].mxu0
  %v369 = vpop.f32.mrb[0].mxu0
  %v370 = vadd.f32 0.0, %v369
  %v371 = vpop.f32.mrb[0].mxu0
  %372 = vmatprep.mubr.bf16.mxu0 0
  %373 = vmatmul.mubr.bf16.gmra.mrb[0].mxu0 %v186
  %v374 = vpop.f32.mrb[0].mxu0
  %v375 = vadd.f32 0.0, %v374
  %v376 = vpop.f32.mrb[0].mxu0
  %v377 = vpop.f32.mrb[0].mxu0
  %v378 = vadd.f32 0.0, %v377
  %v379 = vpop.f32.mrb[0].mxu0
  %380 = vmatprep.mubr.bf16.mxu0 0
  %381 = vmatmul.mubr.bf16.gmra.mrb[0].mxu0 %v187
  %v382 = vpop.f32.mrb[0].mxu0
  %v383 = vadd.f32 0.0, %v382
  %v384 = vpop.f32.mrb[0].mxu0
  %v385 = vpop.f32.mrb[0].mxu0
  %v386 = vadd.f32 0.0, %v385
  %v387 = vpop.f32.mrb[0].mxu0
  %388 = vmatprep.mubr.bf16.mxu0 0
  %389 = vmatmul.mubr.bf16.gmra.mrb[0].mxu0 %v188
  %v390 = vpop.f32.mrb[0].mxu0
  %v391 = vadd.f32 0.0, %v390
  %v392 = vpop.f32.mrb[0].mxu0
  %v393 = vpop.f32.mrb[0].mxu0
  %v394 = vadd.f32 0.0, %v393
  %v395 = vpop.f32.mrb[0].mxu0
  %396 = vmatprep.mubr.bf16.mxu0 0
  %397 = vmatmul.mubr.bf16.gmra.mrb[0].mxu0 %v189
  %v398 = vpop.f32.mrb[0].mxu0
  %v399 = vadd.f32 0.0, %v398
  %v400 = vpop.f32.mrb[0].mxu0
  %v401 = vpop.f32.mrb[0].mxu0
  %v402 = vadd.f32 0.0, %v401
  %v403 = vpop.f32.mrb[0].mxu0
  %404 = vmatprep.mubr.bf16.mxu0 0
  %405 = vmatmul.mubr.bf16.gmra.mrb[0].mxu0 %v190
  %v406 = vpop.f32.mrb[0].mxu0
  %v407 = vadd.f32 0.0, %v406
  %v408 = vpop.f32.mrb[0].mxu0
  %v409 = vpop.f32.mrb[0].mxu0
  %v410 = vadd.f32 0.0, %v409
  %v411 = vpop.f32.mrb[0].mxu0
  %412 = vmatprep.mubr.bf16.mxu0 0
  %413 = vmatmul.mubr.bf16.gmra.mrb[0].mxu0 %v191
  %v414 = vpop.f32.mrb[0].mxu0
  %v415 = vadd.f32 0.0, %v414
  %v416 = vpop.f32.mrb[0].mxu0
  %v417 = vpop.f32.mrb[0].mxu0
  %v418 = vadd.f32 0.0, %v417
  %v419 = vpop.f32.mrb[0].mxu0
  %420 = vmatprep.mubr.bf16.mxu0 0
  %421 = vmatmul.mubr.bf16.gmra.mrb[0].mxu0 %v192
  %v422 = vpop.f32.mrb[0].mxu0
  %v423 = vadd.f32 0.0, %v422
  %v424 = vpop.f32.mrb[0].mxu0
  %v425 = vpop.f32.mrb[0].mxu0
  %v426 = vadd.f32 0.0, %v425
  %v427 = vpop.f32.mrb[0].mxu0
  %428 = vmatprep.mubr.bf16.mxu0 0
  %429 = vmatmul.mubr.bf16.gmra.mrb[0].mxu0 %v193
  %v430 = vpop.f32.mrb[0].mxu0
  %v431 = vadd.f32 0.0, %v430
  %v432 = vpop.f32.mrb[0].mxu0
  %v433 = vpop.f32.mrb[0].mxu0
  %v434 = vadd.f32 0.0, %v433
  %v435 = vpop.f32.mrb[0].mxu0
  %436 = vmatprep.mubr.bf16.mxu0 0
  %437 = vmatmul.mubr.bf16.gmra.mrb[0].mxu0 %v194
  %v438 = vpop.f32.mrb[0].mxu0
  %v439 = vadd.f32 0.0, %v438
  %v440 = vpop.f32.mrb[0].mxu0
  %v441 = vpop.f32.mrb[0].mxu0
  %v442 = vadd.f32 0.0, %v441
  %v443 = vpop.f32.mrb[0].mxu0
  %444 = vmatprep.mubr.bf16.mxu0 0
  %445 = vmatmul.mubr.bf16.gmra.mrb[0].mxu0 %v195
  %v446 = vpop.f32.mrb[0].mxu0
  %v447 = vadd.f32 0.0, %v446
  %v448 = vpop.f32.mrb[0].mxu0
  %v449 = vpop.f32.mrb[0].mxu0
  %v450 = vadd.f32 0.0, %v449
  %v451 = vpop.f32.mrb[0].mxu0
  %452 = vmatprep.mubr.bf16.mxu0 0
  %453 = vmatmul.mubr.bf16.gmra.mrb[0].mxu0 %v196
  %v454 = vpop.f32.mrb[0].mxu0
  %v455 = vadd.f32 0.0, %v454
  %v456 = vpop.f32.mrb[0].mxu0
  %v457 = vpop.f32.mrb[0].mxu0
  %v458 = vadd.f32 0.0, %v457
  %v459 = vpop.f32.mrb[0].mxu0
  %460 = vmatprep.mubr.bf16.mxu0 0
  %461 = vmatmul.mubr.bf16.gmra.mrb[0].mxu0 %v197
  %v462 = vpop.f32.mrb[0].mxu0
  %v463 = vadd.f32 0.0, %v462
  %v464 = vpop.f32.mrb[0].mxu0
  %v465 = vpop.f32.mrb[0].mxu0
  %v466 = vadd.f32 0.0, %v465
  %v467 = vpop.f32.mrb[0].mxu0
  %468 = vmatprep.mubr.bf16.mxu0 0
  %469 = vmatmul.mubr.bf16.gmra.mrb[0].mxu0 %v198
  %v470 = vpop.f32.mrb[0].mxu0
  %v471 = vadd.f32 0.0, %v470
  %v472 = vpop.f32.mrb[0].mxu0
  %v473 = vpop.f32.mrb[0].mxu0
  %v474 = vadd.f32 0.0, %v473
  %v475 = vpop.f32.mrb[0].mxu0
  %476 = vmatprep.mubr.bf16.mxu0 0
  %477 = vmatmul.mubr.bf16.gmra.mrb[0].mxu0 %v199
  %v478 = vpop.f32.mrb[0].mxu0
  %v479 = vadd.f32 0.0, %v478
  %v480 = vpop.f32.mrb[0].mxu0
  %v481 = vpop.f32.mrb[0].mxu0
  %v482 = vadd.f32 0.0, %v481
  %v483 = vpop.f32.mrb[0].mxu0
  %484 = vmatprep.mubr.bf16.mxu0 0
  %485 = vmatmul.mubr.bf16.gmra.mrb[0].mxu0 %v200
  %v486 = vpop.f32.mrb[0].mxu0
  %v487 = vadd.f32 0.0, %v486
  %v488 = vpop.f32.mrb[0].mxu0
  %v489 = vpop.f32.mrb[0].mxu0
  %v490 = vadd.f32 0.0, %v489
  %v491 = vpop.f32.mrb[0].mxu0
  %492 = vmatprep.mubr.bf16.mxu0 0
  %493 = vmatmul.mubr.bf16.gmra.mrb[0].mxu0 %v201
  %v494 = vpop.f32.mrb[0].mxu0
  %v495 = vadd.f32 0.0, %v494
  %v496 = vpop.f32.mrb[0].mxu0
  %v497 = vpop.f32.mrb[0].mxu0
  %v498 = vadd.f32 0.0, %v497
  %v499 = vpop.f32.mrb[0].mxu0
  %500 = vmatprep.mubr.bf16.mxu0 0
  %501 = vmatmul.mubr.bf16.gmra.mrb[0].mxu0 %v202
  %v502 = vpop.f32.mrb[0].mxu0
  %v503 = vadd.f32 0.0, %v502
  %v504 = vpop.f32.mrb[0].mxu0
  %v505 = vpop.f32.mrb[0].mxu0
  %v506 = vpop.f32.mrb[0].mxu0
  %507 = vdwg.mxu0
  %s508 = scalar_lea.vmem %s0, 196
  %v509 = vld [vmem:[%s508] sm:$0xf]
  %v510 = vld [vmem:[%s508 + $0x4] sm:$0xf]
  %v511 = vld [vmem:[%s508 + $0x8] sm:$0xf]
  %v512 = vld [vmem:[%s508 + $0xc] sm:$0xf]
  %v513 = vld [vmem:[%s508 + $0x10] sm:$0xf]
  %v514 = vld [vmem:[%s508 + $0x14] sm:$0xf]
  %v515 = vld [vmem:[%s508 + $0x18] sm:$0xf]
  %v516 = vld [vmem:[%s508 + $0x1c] sm:$0xf]
  %v517 = vld [vmem:[%s508 + $0x20] sm:$0xf]
  %v518 = vld [vmem:[%s508 + $0x24] sm:$0xf]
  %v519 = vld [vmem:[%s508 + $0x28] sm:$0xf]
  %v520 = vld [vmem:[%s508 + $0x2c] sm:$0xf]
  %v521 = vld [vmem:[%s508 + $0x30] sm:$0xf]
  %v522 = vld [vmem:[%s508 + $0x34] sm:$0xf]
  %v523 = vld [vmem:[%s508 + $0x38] sm:$0xf]
  %v524 = vld [vmem:[%s508 + $0x3c] sm:$0xf]
  %v525 = vld [vmem:[%s508 + $0x40] sm:$0xf]
  %v526 = vld [vmem:[%s508 + $0x44] sm:$0xf]
  %v527 = vld [vmem:[%s508 + $0x48] sm:$0xf]
  %v528 = vld [vmem:[%s508 + $0x4c] sm:$0xf]
  %v529 = vld [vmem:[%s508 + $0x50] sm:$0xf]
  %v530 = vld [vmem:[%s508 + $0x54] sm:$0xf]
  %v531 = vld [vmem:[%s508 + $0x58] sm:$0xf]
  %v532 = vld [vmem:[%s508 + $0x5c] sm:$0xf]
  %v533 = vld [vmem:[%s508 + $0x60] sm:$0xf]
  %v534 = vld [vmem:[%s508 + $0x64] sm:$0xf]
  %v535 = vld [vmem:[%s508 + $0x68] sm:$0xf]
  %v536 = vld [vmem:[%s508 + $0x6c] sm:$0xf]
  %v537 = vld [vmem:[%s508 + $0x70] sm:$0xf]
  %v538 = vld [vmem:[%s508 + $0x74] sm:$0xf]
  %v539 = vld [vmem:[%s508 + $0x78] sm:$0xf]
  %v540 = vld [vmem:[%s508 + $0x7c] sm:$0xf]
  %v541 = vld [vmem:[%s508 + $0x80] sm:$0xf]
  %v542 = vld [vmem:[%s508 + $0x84] sm:$0xf]
  %v543 = vld [vmem:[%s508 + $0x88] sm:$0xf]
  %v544 = vld [vmem:[%s508 + $0x8c] sm:$0xf]
  %v545 = vld [vmem:[%s508 + $0x90] sm:$0xf]
  %v546 = vld [vmem:[%s508 + $0x94] sm:$0xf]
  %v547 = vld [vmem:[%s508 + $0x98] sm:$0xf]
  %v548 = vld [vmem:[%s508 + $0x9c] sm:$0xf]
  %v549 = vld [vmem:[%s508 + $0xa0] sm:$0xf]
  %v550 = vld [vmem:[%s508 + $0xa4] sm:$0xf]
  %v551 = vld [vmem:[%s508 + $0xa8] sm:$0xf]
  %v552 = vld [vmem:[%s508 + $0xac] sm:$0xf]
  %v553 = vld [vmem:[%s508 + $0xb0] sm:$0xf]
  %v554 = vld [vmem:[%s508 + $0xb4] sm:$0xf]
  %v555 = vld [vmem:[%s508 + $0xb8] sm:$0xf]
  %v556 = vld [vmem:[%s508 + $0xbc] sm:$0xf]
  %v557 = vld [vmem:[%s508 + $0xc0] sm:$0xf]
  %v607 = vunpack.c.l.b16 %v509
  %v608 = vunpack.c.l.b16 %v510
  %v609 = vunpack.c.l.b16 %v511
  %v610 = vunpack.c.l.b16 %v512
  %v611 = vunpack.c.l.b16 %v513
  %v612 = vunpack.c.l.b16 %v514
  %v613 = vunpack.c.l.b16 %v515
  %v614 = vunpack.c.l.b16 %v516
  %v615 = vunpack.c.l.b16 %v517
  %v616 = vunpack.c.l.b16 %v518
  %v617 = vunpack.c.l.b16 %v519
  %v618 = vunpack.c.l.b16 %v520
  %v619 = vunpack.c.l.b16 %v521
  %v620 = vunpack.c.l.b16 %v522
  %v621 = vunpack.c.l.b16 %v523
  %v622 = vunpack.c.l.b16 %v524
  %v623 = vunpack.c.l.b16 %v525
  %v624 = vunpack.c.l.b16 %v526
  %v625 = vunpack.c.l.b16 %v527
  %v626 = vunpack.c.l.b16 %v528
  %v627 = vunpack.c.l.b16 %v529
  %v628 = vunpack.c.l.b16 %v530
  %v629 = vunpack.c.l.b16 %v531
  %v630 = vunpack.c.l.b16 %v532
  %v631 = vunpack.c.l.b16 %v533
  %v632 = vunpack.c.l.b16 %v534
  %v633 = vunpack.c.l.b16 %v535
  %v634 = vunpack.c.l.b16 %v536
  %v635 = vunpack.c.l.b16 %v537
  %v636 = vunpack.c.l.b16 %v538
  %v637 = vunpack.c.l.b16 %v539
  %v638 = vunpack.c.l.b16 %v540
  %v639 = vunpack.c.l.b16 %v541
  %v640 = vunpack.c.l.b16 %v542
  %v641 = vunpack.c.l.b16 %v543
  %v642 = vunpack.c.l.b16 %v544
  %v643 = vunpack.c.l.b16 %v545
  %v644 = vunpack.c.l.b16 %v546
  %v645 = vunpack.c.l.b16 %v547
  %v646 = vunpack.c.l.b16 %v548
  %v647 = vunpack.c.l.b16 %v549
  %v648 = vunpack.c.l.b16 %v550
  %v649 = vunpack.c.l.b16 %v551
  %v650 = vunpack.c.l.b16 %v552
  %v651 = vunpack.c.l.b16 %v553
  %v652 = vunpack.c.l.b16 %v554
  %v653 = vunpack.c.l.b16 %v555
  %v654 = vunpack.c.l.b16 %v556
  %v655 = vunpack.c.l.b16 %v557
  %v656 = vpack.c.b16 %v608, %v607
  %v657 = vpack.c.b16 %v610, %v609
  %v658 = vpack.c.b16 %v612, %v611
  %v659 = vpack.c.b16 %v614, %v613
  %v660 = vpack.c.b16 %v616, %v615
  %v661 = vpack.c.b16 %v618, %v617
  %v662 = vpack.c.b16 %v620, %v619
  %v663 = vpack.c.b16 %v622, %v621
  %v664 = vpack.c.b16 %v624, %v623
  %v665 = vpack.c.b16 %v626, %v625
  %v666 = vpack.c.b16 %v628, %v627
  %v667 = vpack.c.b16 %v630, %v629
  %v668 = vpack.c.b16 %v632, %v631
  %v669 = vpack.c.b16 %v634, %v633
  %v670 = vpack.c.b16 %v636, %v635
  %v671 = vpack.c.b16 %v638, %v637
  %v672 = vpack.c.b16 %v640, %v639
  %v673 = vpack.c.b16 %v642, %v641
  %v674 = vpack.c.b16 %v644, %v643
  %v675 = vpack.c.b16 %v646, %v645
  %v676 = vpack.c.b16 %v648, %v647
  %v677 = vpack.c.b16 %v650, %v649
  %v678 = vpack.c.b16 %v652, %v651
  %v679 = vpack.c.b16 %v654, %v653
  %v680 = vpack.c.b16 %v655, %v655
  %706 = vmatprep.subr.bf16.mxu0 0
  %707 = vmatpush1.bf16.msra.mxu0 %v260
  %708 = vmatprep.subr.bf16.mxu0 0
  %709 = vmatpush1.bf16.msra.mxu0 %v261
  %710 = vmatprep.subr.bf16.mxu0 0
  %711 = vmatpush1.bf16.msra.mxu0 %v262
  %712 = vmatprep.subr.bf16.mxu0 0
  %713 = vmatpush1.bf16.msra.mxu0 %v263
  %714 = vmatprep.subr.bf16.mxu0 0
  %715 = vmatpush1.bf16.msra.mxu0 %v264
  %716 = vmatprep.subr.bf16.mxu0 0
  %717 = vmatpush1.bf16.msra.mxu0 %v265
  %718 = vmatprep.subr.bf16.mxu0 0
  %719 = vmatpush1.bf16.msra.mxu0 %v266
  %720 = vmatprep.subr.bf16.mxu0 0
  %721 = vmatpush1.bf16.msra.mxu0 %v267
  %722 = vmatprep.subr.bf16.mxu0 0
  %723 = vmatpush1.bf16.msra.mxu0 0
  %724 = vmatprep.subr.bf16.mxu0 0
  %725 = vmatpush1.bf16.msra.mxu0 0
  %726 = vmatprep.subr.bf16.mxu0 0
  %727 = vmatpush1.bf16.msra.mxu0 0
  %728 = vmatprep.subr.bf16.mxu0 0
  %729 = vmatpush1.bf16.msra.mxu0 0
  %730 = vmatprep.subr.bf16.mxu0 0
  %731 = vmatpush1.bf16.msra.mxu0 0
  %732 = vmatprep.subr.bf16.mxu0 0
  %733 = vmatpush1.bf16.msra.mxu0 0
  %734 = vmatprep.subr.bf16.mxu0 0
  %735 = vmatpush1.bf16.msra.mxu0 0
  %736 = vmatprep.subr.bf16.mxu0 0
  %737 = vmatpush1.bf16.msra.mxu0 0
  %738 = vmatprep.mubr.bf16.mxu0 0
  %739 = vmatmul.mubr.bf16.gmra.mrb[0].mxu0 %v656
  %v740 = vpop.f32.mrb[0].mxu0
  %v741 = vadd.f32 0.0, %v740
  %v742 = vpop.f32.mrb[0].mxu0
  %v743 = vpop.f32.mrb[0].mxu0
  %v744 = vadd.f32 0.0, %v743
  %v745 = vpop.f32.mrb[0].mxu0
  %746 = vmatprep.mubr.bf16.mxu0 0
  %747 = vmatmul.mubr.bf16.gmra.mrb[0].mxu0 %v657
  %v748 = vpop.f32.mrb[0].mxu0
  %v749 = vadd.f32 0.0, %v748
  %v750 = vpop.f32.mrb[0].mxu0
  %v751 = vpop.f32.mrb[0].mxu0
  %v752 = vadd.f32 0.0, %v751
  %v753 = vpop.f32.mrb[0].mxu0
  %754 = vmatprep.mubr.bf16.mxu0 0
  %755 = vmatmul.mubr.bf16.gmra.mrb[0].mxu0 %v658
  %v756 = vpop.f32.mrb[0].mxu0
  %v757 = vadd.f32 0.0, %v756
  %v758 = vpop.f32.mrb[0].mxu0
  %v759 = vpop.f32.mrb[0].mxu0
  %v760 = vadd.f32 0.0, %v759
  %v761 = vpop.f32.mrb[0].mxu0
  %762 = vmatprep.mubr.bf16.mxu0 0
  %763 = vmatmul.mubr.bf16.gmra.mrb[0].mxu0 %v659
  %v764 = vpop.f32.mrb[0].mxu0
  %v765 = vadd.f32 0.0, %v764
  %v766 = vpop.f32.mrb[0].mxu0
  %v767 = vpop.f32.mrb[0].mxu0
  %v768 = vadd.f32 0.0, %v767
  %v769 = vpop.f32.mrb[0].mxu0
  %770 = vmatprep.mubr.bf16.mxu0 0
  %771 = vmatmul.mubr.bf16.gmra.mrb[0].mxu0 %v660
  %v772 = vpop.f32.mrb[0].mxu0
  %v773 = vadd.f32 0.0, %v772
  %v774 = vpop.f32.mrb[0].mxu0
  %v775 = vpop.f32.mrb[0].mxu0
  %v776 = vadd.f32 0.0, %v775
  %v777 = vpop.f32.mrb[0].mxu0
  %778 = vmatprep.mubr.bf16.mxu0 0
  %779 = vmatmul.mubr.bf16.gmra.mrb[0].mxu0 %v661
  %v780 = vpop.f32.mrb[0].mxu0
  %v781 = vadd.f32 0.0, %v780
  %v782 = vpop.f32.mrb[0].mxu0
  %v783 = vpop.f32.mrb[0].mxu0
  %v784 = vadd.f32 0.0, %v783
  %v785 = vpop.f32.mrb[0].mxu0
  %786 = vmatprep.mubr.bf16.mxu0 0
  %787 = vmatmul.mubr.bf16.gmra.mrb[0].mxu0 %v662
  %v788 = vpop.f32.mrb[0].mxu0
  %v789 = vadd.f32 0.0, %v788
  %v790 = vpop.f32.mrb[0].mxu0
  %v791 = vpop.f32.mrb[0].mxu0
  %v792 = vadd.f32 0.0, %v791
  %v793 = vpop.f32.mrb[0].mxu0
  %794 = vmatprep.mubr.bf16.mxu0 0
  %795 = vmatmul.mubr.bf16.gmra.mrb[0].mxu0 %v663
  %v796 = vpop.f32.mrb[0].mxu0
  %v797 = vadd.f32 0.0, %v796
  %v798 = vpop.f32.mrb[0].mxu0
  %v799 = vpop.f32.mrb[0].mxu0
  %v800 = vadd.f32 0.0, %v799
  %v801 = vpop.f32.mrb[0].mxu0
  %802 = vmatprep.mubr.bf16.mxu0 0
  %803 = vmatmul.mubr.bf16.gmra.mrb[0].mxu0 %v664
  %v804 = vpop.f32.mrb[0].mxu0
  %v805 = vadd.f32 0.0, %v804
  %v806 = vpop.f32.mrb[0].mxu0
  %v807 = vpop.f32.mrb[0].mxu0
  %v808 = vadd.f32 0.0, %v807
  %v809 = vpop.f32.mrb[0].mxu0
  %810 = vmatprep.mubr.bf16.mxu0 0
  %811 = vmatmul.mubr.bf16.gmra.mrb[0].mxu0 %v665
  %v812 = vpop.f32.mrb[0].mxu0
  %v813 = vadd.f32 0.0, %v812
  %v814 = vpop.f32.mrb[0].mxu0
  %v815 = vpop.f32.mrb[0].mxu0
  %v816 = vadd.f32 0.0, %v815
  %v817 = vpop.f32.mrb[0].mxu0
  %818 = vmatprep.mubr.bf16.mxu0 0
  %819 = vmatmul.mubr.bf16.gmra.mrb[0].mxu0 %v666
  %v820 = vpop.f32.mrb[0].mxu0
  %v821 = vadd.f32 0.0, %v820
  %v822 = vpop.f32.mrb[0].mxu0
  %v823 = vpop.f32.mrb[0].mxu0
  %v824 = vadd.f32 0.0, %v823
  %v825 = vpop.f32.mrb[0].mxu0
  %826 = vmatprep.mubr.bf16.mxu0 0
  %827 = vmatmul.mubr.bf16.gmra.mrb[0].mxu0 %v667
  %v828 = vpop.f32.mrb[0].mxu0
  %v829 = vadd.f32 0.0, %v828
  %v830 = vpop.f32.mrb[0].mxu0
  %v831 = vpop.f32.mrb[0].mxu0
  %v832 = vadd.f32 0.0, %v831
  %v833 = vpop.f32.mrb[0].mxu0
  %834 = vmatprep.mubr.bf16.mxu0 0
  %835 = vmatmul.mubr.bf16.gmra.mrb[0].mxu0 %v668
  %v836 = vpop.f32.mrb[0].mxu0
  %v837 = vadd.f32 0.0, %v836
  %v838 = vpop.f32.mrb[0].mxu0
  %v839 = vpop.f32.mrb[0].mxu0
  %v840 = vadd.f32 0.0, %v839
  %v841 = vpop.f32.mrb[0].mxu0
  %842 = vmatprep.mubr.bf16.mxu0 0
  %843 = vmatmul.mubr.bf16.gmra.mrb[0].mxu0 %v669
  %v844 = vpop.f32.mrb[0].mxu0
  %v845 = vadd.f32 0.0, %v844
  %v846 = vpop.f32.mrb[0].mxu0
  %v847 = vpop.f32.mrb[0].mxu0
  %v848 = vadd.f32 0.0, %v847
  %v849 = vpop.f32.mrb[0].mxu0
  %850 = vmatprep.mubr.bf16.mxu0 0
  %851 = vmatmul.mubr.bf16.gmra.mrb[0].mxu0 %v670
  %v852 = vpop.f32.mrb[0].mxu0
  %v853 = vadd.f32 0.0, %v852
  %v854 = vpop.f32.mrb[0].mxu0
  %v855 = vpop.f32.mrb[0].mxu0
  %v856 = vadd.f32 0.0, %v855
  %v857 = vpop.f32.mrb[0].mxu0
  %858 = vmatprep.mubr.bf16.mxu0 0
  %859 = vmatmul.mubr.bf16.gmra.mrb[0].mxu0 %v671
  %v860 = vpop.f32.mrb[0].mxu0
  %v861 = vadd.f32 0.0, %v860
  %v862 = vpop.f32.mrb[0].mxu0
  %v863 = vpop.f32.mrb[0].mxu0
  %v864 = vadd.f32 0.0, %v863
  %v865 = vpop.f32.mrb[0].mxu0
  %866 = vmatprep.mubr.bf16.mxu0 0
  %867 = vmatmul.mubr.bf16.gmra.mrb[0].mxu0 %v672
  %v868 = vpop.f32.mrb[0].mxu0
  %v869 = vadd.f32 0.0, %v868
  %v870 = vpop.f32.mrb[0].mxu0
  %v871 = vpop.f32.mrb[0].mxu0
  %v872 = vadd.f32 0.0, %v871
  %v873 = vpop.f32.mrb[0].mxu0
  %874 = vmatprep.mubr.bf16.mxu0 0
  %875 = vmatmul.mubr.bf16.gmra.mrb[0].mxu0 %v673
  %v876 = vpop.f32.mrb[0].mxu0
  %v877 = vadd.f32 0.0, %v876
  %v878 = vpop.f32.mrb[0].mxu0
  %v879 = vpop.f32.mrb[0].mxu0
  %v880 = vadd.f32 0.0, %v879
  %v881 = vpop.f32.mrb[0].mxu0
  %882 = vmatprep.mubr.bf16.mxu0 0
  %883 = vmatmul.mubr.bf16.gmra.mrb[0].mxu0 %v674
  %v884 = vpop.f32.mrb[0].mxu0
  %v885 = vadd.f32 0.0, %v884
  %v886 = vpop.f32.mrb[0].mxu0
  %v887 = vpop.f32.mrb[0].mxu0
  %v888 = vadd.f32 0.0, %v887
  %v889 = vpop.f32.mrb[0].mxu0
  %890 = vmatprep.mubr.bf16.mxu0 0
  %891 = vmatmul.mubr.bf16.gmra.mrb[0].mxu0 %v675
  %v892 = vpop.f32.mrb[0].mxu0
  %v893 = vadd.f32 0.0, %v892
  %v894 = vpop.f32.mrb[0].mxu0
  %v895 = vpop.f32.mrb[0].mxu0
  %v896 = vadd.f32 0.0, %v895
  %v897 = vpop.f32.mrb[0].mxu0
  %898 = vmatprep.mubr.bf16.mxu0 0
  %899 = vmatmul.mubr.bf16.gmra.mrb[0].mxu0 %v676
  %v900 = vpop.f32.mrb[0].mxu0
  %v901 = vadd.f32 0.0, %v900
  %v902 = vpop.f32.mrb[0].mxu0
  %v903 = vpop.f32.mrb[0].mxu0
  %v904 = vadd.f32 0.0, %v903
  %v905 = vpop.f32.mrb[0].mxu0
  %906 = vmatprep.mubr.bf16.mxu0 0
  %907 = vmatmul.mubr.bf16.gmra.mrb[0].mxu0 %v677
  %v908 = vpop.f32.mrb[0].mxu0
  %v909 = vadd.f32 0.0, %v908
  %v910 = vpop.f32.mrb[0].mxu0
  %v911 = vpop.f32.mrb[0].mxu0
  %v912 = vadd.f32 0.0, %v911
  %v913 = vpop.f32.mrb[0].mxu0
  %914 = vmatprep.mubr.bf16.mxu0 0
  %915 = vmatmul.mubr.bf16.gmra.mrb[0].mxu0 %v678
  %v916 = vpop.f32.mrb[0].mxu0
  %v917 = vadd.f32 0.0, %v916
  %v918 = vpop.f32.mrb[0].mxu0
  %v919 = vpop.f32.mrb[0].mxu0
  %v920 = vadd.f32 0.0, %v919
  %v921 = vpop.f32.mrb[0].mxu0
  %922 = vmatprep.mubr.bf16.mxu0 0
  %923 = vmatmul.mubr.bf16.gmra.mrb[0].mxu0 %v679
  %v924 = vpop.f32.mrb[0].mxu0
  %v925 = vadd.f32 0.0, %v924
  %v926 = vpop.f32.mrb[0].mxu0
  %v927 = vpop.f32.mrb[0].mxu0
  %v928 = vadd.f32 0.0, %v927
  %v929 = vpop.f32.mrb[0].mxu0
  %930 = vmatprep.mubr.bf16.mxu0 0
  %931 = vmatmul.mubr.bf16.gmra.mrb[0].mxu0 %v680
  %v932 = vpop.f32.mrb[0].mxu0
  %v933 = vadd.f32 0.0, %v932
  %v934 = vpop.f32.mrb[0].mxu0
  %v935 = vpop.f32.mrb[0].mxu0
  %v936 = vpop.f32.mrb[0].mxu0
  %937 = vdwg.mxu0
  %v938 = vmax.f32 %v311, %v741
  %v939 = vmax.f32 %v314, %v744
  %v940 = vmax.f32 %v319, %v749
  %v941 = vmax.f32 %v322, %v752
  %v942 = vmax.f32 %v327, %v757
  %v943 = vmax.f32 %v330, %v760
  %v944 = vmax.f32 %v335, %v765
  %v945 = vmax.f32 %v338, %v768
  %v946 = vmax.f32 %v343, %v773
  %v947 = vmax.f32 %v346, %v776
  %v948 = vmax.f32 %v351, %v781
  %v949 = vmax.f32 %v354, %v784
  %v950 = vmax.f32 %v359, %v789
  %v951 = vmax.f32 %v362, %v792
  %v952 = vmax.f32 %v367, %v797
  %v953 = vmax.f32 %v370, %v800
  %v954 = vmax.f32 %v375, %v805
  %v955 = vmax.f32 %v378, %v808
  %v956 = vmax.f32 %v383, %v813
  %v957 = vmax.f32 %v386, %v816
  %v958 = vmax.f32 %v391, %v821
  %v959 = vmax.f32 %v394, %v824
  %v960 = vmax.f32 %v399, %v829
  %v961 = vmax.f32 %v402, %v832
  %v962 = vmax.f32 %v407, %v837
  %v963 = vmax.f32 %v410, %v840
  %v964 = vmax.f32 %v415, %v845
  %v965 = vmax.f32 %v418, %v848
  %v966 = vmax.f32 %v423, %v853
  %v967 = vmax.f32 %v426, %v856
  %v968 = vmax.f32 %v431, %v861
  %v969 = vmax.f32 %v434, %v864
  %v970 = vmax.f32 %v439, %v869
  %v971 = vmax.f32 %v442, %v872
  %v972 = vmax.f32 %v447, %v877
  %v973 = vmax.f32 %v450, %v880
  %v974 = vmax.f32 %v455, %v885
  %v975 = vmax.f32 %v458, %v888
  %v976 = vmax.f32 %v463, %v893
  %v977 = vmax.f32 %v466, %v896
  %v978 = vmax.f32 %v471, %v901
  %v979 = vmax.f32 %v474, %v904
  %v980 = vmax.f32 %v479, %v909
  %v981 = vmax.f32 %v482, %v912
  %v982 = vmax.f32 %v487, %v917
  %v983 = vmax.f32 %v490, %v920
  %v984 = vmax.f32 %v495, %v925
  %v985 = vmax.f32 %v498, %v928
  %v986 = vmax.f32 %v503, %v933
  %s987 = scalar_lea.vmem %s0, 392
  %v988 = vld [vmem:[%s987] sm:$0xf]
  %v989 = vld [vmem:[%s987 + $0x4] sm:$0xf]
  %v990 = vld [vmem:[%s987 + $0x8] sm:$0xf]
  %v991 = vld [vmem:[%s987 + $0xc] sm:$0xf]
  %v992 = vld [vmem:[%s987 + $0x10] sm:$0xf]
  %v993 = vld [vmem:[%s987 + $0x14] sm:$0xf]
  %v994 = vld [vmem:[%s987 + $0x18] sm:$0xf]
  %v995 = vld [vmem:[%s987 + $0x1c] sm:$0xf]
  %v996 = vld [vmem:[%s987 + $0x20] sm:$0xf]
  %v997 = vld [vmem:[%s987 + $0x24] sm:$0xf]
  %v998 = vld [vmem:[%s987 + $0x28] sm:$0xf]
  %v999 = vld [vmem:[%s987 + $0x2c] sm:$0xf]
  %v1000 = vld [vmem:[%s987 + $0x30] sm:$0xf]
  %v1001 = vld [vmem:[%s987 + $0x34] sm:$0xf]
  %v1002 = vld [vmem:[%s987 + $0x38] sm:$0xf]
  %v1003 = vld [vmem:[%s987 + $0x3c] sm:$0xf]
  %v1004 = vld [vmem:[%s987 + $0x40] sm:$0xf]
  %v1005 = vld [vmem:[%s987 + $0x44] sm:$0xf]
  %v1006 = vld [vmem:[%s987 + $0x48] sm:$0xf]
  %v1007 = vld [vmem:[%s987 + $0x4c] sm:$0xf]
  %v1008 = vld [vmem:[%s987 + $0x50] sm:$0xf]
  %v1009 = vld [vmem:[%s987 + $0x54] sm:$0xf]
  %v1010 = vld [vmem:[%s987 + $0x58] sm:$0xf]
  %v1011 = vld [vmem:[%s987 + $0x5c] sm:$0xf]
  %v1012 = vld [vmem:[%s987 + $0x60] sm:$0xf]
  %v1013 = vld [vmem:[%s987 + $0x64] sm:$0xf]
  %v1014 = vld [vmem:[%s987 + $0x68] sm:$0xf]
  %v1015 = vld [vmem:[%s987 + $0x6c] sm:$0xf]
  %v1016 = vld [vmem:[%s987 + $0x70] sm:$0xf]
  %v1017 = vld [vmem:[%s987 + $0x74] sm:$0xf]
  %v1018 = vld [vmem:[%s987 + $0x78] sm:$0xf]
  %v1019 = vld [vmem:[%s987 + $0x7c] sm:$0xf]
  %v1020 = vld [vmem:[%s987 + $0x80] sm:$0xf]
  %v1021 = vld [vmem:[%s987 + $0x84] sm:$0xf]
  %v1022 = vld [vmem:[%s987 + $0x88] sm:$0xf]
  %v1023 = vld [vmem:[%s987 + $0x8c] sm:$0xf]
  %v1024 = vld [vmem:[%s987 + $0x90] sm:$0xf]
  %v1025 = vld [vmem:[%s987 + $0x94] sm:$0xf]
  %v1026 = vld [vmem:[%s987 + $0x98] sm:$0xf]
  %v1027 = vld [vmem:[%s987 + $0x9c] sm:$0xf]
  %v1028 = vld [vmem:[%s987 + $0xa0] sm:$0xf]
  %v1029 = vld [vmem:[%s987 + $0xa4] sm:$0xf]
  %v1030 = vld [vmem:[%s987 + $0xa8] sm:$0xf]
  %v1031 = vld [vmem:[%s987 + $0xac] sm:$0xf]
  %v1032 = vld [vmem:[%s987 + $0xb0] sm:$0xf]
  %v1033 = vld [vmem:[%s987 + $0xb4] sm:$0xf]
  %v1034 = vld [vmem:[%s987 + $0xb8] sm:$0xf]
  %v1035 = vld [vmem:[%s987 + $0xbc] sm:$0xf]
  %v1036 = vld [vmem:[%s987 + $0xc0] sm:$0xf]
  %v1086 = vunpack.c.l.b16 %v988
  %v1087 = vunpack.c.l.b16 %v989
  %v1088 = vunpack.c.l.b16 %v990
  %v1089 = vunpack.c.l.b16 %v991
  %v1090 = vunpack.c.l.b16 %v992
  %v1091 = vunpack.c.l.b16 %v993
  %v1092 = vunpack.c.l.b16 %v994
  %v1093 = vunpack.c.l.b16 %v995
  %v1094 = vunpack.c.l.b16 %v996
  %v1095 = vunpack.c.l.b16 %v997
  %v1096 = vunpack.c.l.b16 %v998
  %v1097 = vunpack.c.l.b16 %v999
  %v1098 = vunpack.c.l.b16 %v1000
  %v1099 = vunpack.c.l.b16 %v1001
  %v1100 = vunpack.c.l.b16 %v1002
  %v1101 = vunpack.c.l.b16 %v1003
  %v1102 = vunpack.c.l.b16 %v1004
  %v1103 = vunpack.c.l.b16 %v1005
  %v1104 = vunpack.c.l.b16 %v1006
  %v1105 = vunpack.c.l.b16 %v1007
  %v1106 = vunpack.c.l.b16 %v1008
  %v1107 = vunpack.c.l.b16 %v1009
  %v1108 = vunpack.c.l.b16 %v1010
  %v1109 = vunpack.c.l.b16 %v1011
  %v1110 = vunpack.c.l.b16 %v1012
  %v1111 = vunpack.c.l.b16 %v1013
  %v1112 = vunpack.c.l.b16 %v1014
  %v1113 = vunpack.c.l.b16 %v1015
  %v1114 = vunpack.c.l.b16 %v1016
  %v1115 = vunpack.c.l.b16 %v1017
  %v1116 = vunpack.c.l.b16 %v1018
  %v1117 = vunpack.c.l.b16 %v1019
  %v1118 = vunpack.c.l.b16 %v1020
  %v1119 = vunpack.c.l.b16 %v1021
  %v1120 = vunpack.c.l.b16 %v1022
  %v1121 = vunpack.c.l.b16 %v1023
  %v1122 = vunpack.c.l.b16 %v1024
  %v1123 = vunpack.c.l.b16 %v1025
  %v1124 = vunpack.c.l.b16 %v1026
  %v1125 = vunpack.c.l.b16 %v1027
  %v1126 = vunpack.c.l.b16 %v1028
  %v1127 = vunpack.c.l.b16 %v1029
  %v1128 = vunpack.c.l.b16 %v1030
  %v1129 = vunpack.c.l.b16 %v1031
  %v1130 = vunpack.c.l.b16 %v1032
  %v1131 = vunpack.c.l.b16 %v1033
  %v1132 = vunpack.c.l.b16 %v1034
  %v1133 = vunpack.c.l.b16 %v1035
  %v1134 = vunpack.c.l.b16 %v1036
  %v1135 = vpack.c.b16 %v1087, %v1086
  %v1136 = vpack.c.b16 %v1089, %v1088
  %v1137 = vpack.c.b16 %v1091, %v1090
  %v1138 = vpack.c.b16 %v1093, %v1092
  %v1139 = vpack.c.b16 %v1095, %v1094
  %v1140 = vpack.c.b16 %v1097, %v1096
  %v1141 = vpack.c.b16 %v1099, %v1098
  %v1142 = vpack.c.b16 %v1101, %v1100
  %v1143 = vpack.c.b16 %v1103, %v1102
  %v1144 = vpack.c.b16 %v1105, %v1104
  %v1145 = vpack.c.b16 %v1107, %v1106
  %v1146 = vpack.c.b16 %v1109, %v1108
  %v1147 = vpack.c.b16 %v1111, %v1110
  %v1148 = vpack.c.b16 %v1113, %v1112
  %v1149 = vpack.c.b16 %v1115, %v1114
  %v1150 = vpack.c.b16 %v1117, %v1116
  %v1151 = vpack.c.b16 %v1119, %v1118
  %v1152 = vpack.c.b16 %v1121, %v1120
  %v1153 = vpack.c.b16 %v1123, %v1122
  %v1154 = vpack.c.b16 %v1125, %v1124
  %v1155 = vpack.c.b16 %v1127, %v1126
  %v1156 = vpack.c.b16 %v1129, %v1128
  %v1157 = vpack.c.b16 %v1131, %v1130
  %v1158 = vpack.c.b16 %v1133, %v1132
  %v1159 = vpack.c.b16 %v1134, %v1134
  %1185 = vmatprep.subr.bf16.mxu0 0
  %1186 = vmatpush1.bf16.msra.mxu0 %v260
  %1187 = vmatprep.subr.bf16.mxu0 0
  %1188 = vmatpush1.bf16.msra.mxu0 %v261
  %1189 = vmatprep.subr.bf16.mxu0 0
  %1190 = vmatpush1.bf16.msra.mxu0 %v262
  %1191 = vmatprep.subr.bf16.mxu0 0
  %1192 = vmatpush1.bf16.msra.mxu0 %v263
  %1193 = vmatprep.subr.bf16.mxu0 0
  %1194 = vmatpush1.bf16.msra.mxu0 %v264
  %1195 = vmatprep.subr.bf16.mxu0 0
  %1196 = vmatpush1.bf16.msra.mxu0 %v265
  %1197 = vmatprep.subr.bf16.mxu0 0
  %1198 = vmatpush1.bf16.msra.mxu0 %v266
  %1199 = vmatprep.subr.bf16.mxu0 0
  %1200 = vmatpush1.bf16.msra.mxu0 %v267
  %1201 = vmatprep.subr.bf16.mxu0 0
  %1202 = vmatpush1.bf16.msra.mxu0 0
  %1203 = vmatprep.subr.bf16.mxu0 0
  %1204 = vmatpush1.bf16.msra.mxu0 0
  %1205 = vmatprep.subr.bf16.mxu0 0
  %1206 = vmatpush1.bf16.msra.mxu0 0
  %1207 = vmatprep.subr.bf16.mxu0 0
  %1208 = vmatpush1.bf16.msra.mxu0 0
  %1209 = vmatprep.subr.bf16.mxu0 0
  %1210 = vmatpush1.bf16.msra.mxu0 0
  %1211 = vmatprep.subr.bf16.mxu0 0
  %1212 = vmatpush1.bf16.msra.mxu0 0
  %1213 = vmatprep.subr.bf16.mxu0 0
  %1214 = vmatpush1.bf16.msra.mxu0 0
  %1215 = vmatprep.subr.bf16.mxu0 0
  %1216 = vmatpush1.bf16.msra.mxu0 0
  %1217 = vmatprep.mubr.bf16.mxu0 0
  %1218 = vmatmul.mubr.bf16.gmra.mrb[0].mxu0 %v1135
  %v1219 = vpop.f32.mrb[0].mxu0
  %v1220 = vadd.f32 0.0, %v1219
  %v1221 = vpop.f32.mrb[0].mxu0
  %v1222 = vpop.f32.mrb[0].mxu0
  %v1223 = vadd.f32 0.0, %v1222
  %v1224 = vpop.f32.mrb[0].mxu0
  %1225 = vmatprep.mubr.bf16.mxu0 0
  %1226 = vmatmul.mubr.bf16.gmra.mrb[0].mxu0 %v1136
  %v1227 = vpop.f32.mrb[0].mxu0
  %v1228 = vadd.f32 0.0, %v1227
  %v1229 = vpop.f32.mrb[0].mxu0
  %v1230 = vpop.f32.mrb[0].mxu0
  %v1231 = vadd.f32 0.0, %v1230
  %v1232 = vpop.f32.mrb[0].mxu0
  %1233 = vmatprep.mubr.bf16.mxu0 0
  %1234 = vmatmul.mubr.bf16.gmra.mrb[0].mxu0 %v1137
  %v1235 = vpop.f32.mrb[0].mxu0
  %v1236 = vadd.f32 0.0, %v1235
  %v1237 = vpop.f32.mrb[0].mxu0
  %v1238 = vpop.f32.mrb[0].mxu0
  %v1239 = vadd.f32 0.0, %v1238
  %v1240 = vpop.f32.mrb[0].mxu0
  %1241 = vmatprep.mubr.bf16.mxu0 0
  %1242 = vmatmul.mubr.bf16.gmra.mrb[0].mxu0 %v1138
  %v1243 = vpop.f32.mrb[0].mxu0
  %v1244 = vadd.f32 0.0, %v1243
  %v1245 = vpop.f32.mrb[0].mxu0
  %v1246 = vpop.f32.mrb[0].mxu0
  %v1247 = vadd.f32 0.0, %v1246
  %v1248 = vpop.f32.mrb[0].mxu0
  %1249 = vmatprep.mubr.bf16.mxu0 0
  %1250 = vmatmul.mubr.bf16.gmra.mrb[0].mxu0 %v1139
  %v1251 = vpop.f32.mrb[0].mxu0
  %v1252 = vadd.f32 0.0, %v1251
  %v1253 = vpop.f32.mrb[0].mxu0
  %v1254 = vpop.f32.mrb[0].mxu0
  %v1255 = vadd.f32 0.0, %v1254
  %v1256 = vpop.f32.mrb[0].mxu0
  %1257 = vmatprep.mubr.bf16.mxu0 0
  %1258 = vmatmul.mubr.bf16.gmra.mrb[0].mxu0 %v1140
  %v1259 = vpop.f32.mrb[0].mxu0
  %v1260 = vadd.f32 0.0, %v1259
  %v1261 = vpop.f32.mrb[0].mxu0
  %v1262 = vpop.f32.mrb[0].mxu0
  %v1263 = vadd.f32 0.0, %v1262
  %v1264 = vpop.f32.mrb[0].mxu0
  %1265 = vmatprep.mubr.bf16.mxu0 0
  %1266 = vmatmul.mubr.bf16.gmra.mrb[0].mxu0 %v1141
  %v1267 = vpop.f32.mrb[0].mxu0
  %v1268 = vadd.f32 0.0, %v1267
  %v1269 = vpop.f32.mrb[0].mxu0
  %v1270 = vpop.f32.mrb[0].mxu0
  %v1271 = vadd.f32 0.0, %v1270
  %v1272 = vpop.f32.mrb[0].mxu0
  %1273 = vmatprep.mubr.bf16.mxu0 0
  %1274 = vmatmul.mubr.bf16.gmra.mrb[0].mxu0 %v1142
  %v1275 = vpop.f32.mrb[0].mxu0
  %v1276 = vadd.f32 0.0, %v1275
  %v1277 = vpop.f32.mrb[0].mxu0
  %v1278 = vpop.f32.mrb[0].mxu0
  %v1279 = vadd.f32 0.0, %v1278
  %v1280 = vpop.f32.mrb[0].mxu0
  %1281 = vmatprep.mubr.bf16.mxu0 0
  %1282 = vmatmul.mubr.bf16.gmra.mrb[0].mxu0 %v1143
  %v1283 = vpop.f32.mrb[0].mxu0
  %v1284 = vadd.f32 0.0, %v1283
  %v1285 = vpop.f32.mrb[0].mxu0
  %v1286 = vpop.f32.mrb[0].mxu0
  %v1287 = vadd.f32 0.0, %v1286
  %v1288 = vpop.f32.mrb[0].mxu0
  %1289 = vmatprep.mubr.bf16.mxu0 0
  %1290 = vmatmul.mubr.bf16.gmra.mrb[0].mxu0 %v1144
  %v1291 = vpop.f32.mrb[0].mxu0
  %v1292 = vadd.f32 0.0, %v1291
  %v1293 = vpop.f32.mrb[0].mxu0
  %v1294 = vpop.f32.mrb[0].mxu0
  %v1295 = vadd.f32 0.0, %v1294
  %v1296 = vpop.f32.mrb[0].mxu0
  %1297 = vmatprep.mubr.bf16.mxu0 0
  %1298 = vmatmul.mubr.bf16.gmra.mrb[0].mxu0 %v1145
  %v1299 = vpop.f32.mrb[0].mxu0
  %v1300 = vadd.f32 0.0, %v1299
  %v1301 = vpop.f32.mrb[0].mxu0
  %v1302 = vpop.f32.mrb[0].mxu0
  %v1303 = vadd.f32 0.0, %v1302
  %v1304 = vpop.f32.mrb[0].mxu0
  %1305 = vmatprep.mubr.bf16.mxu0 0
  %1306 = vmatmul.mubr.bf16.gmra.mrb[0].mxu0 %v1146
  %v1307 = vpop.f32.mrb[0].mxu0
  %v1308 = vadd.f32 0.0, %v1307
  %v1309 = vpop.f32.mrb[0].mxu0
  %v1310 = vpop.f32.mrb[0].mxu0
  %v1311 = vadd.f32 0.0, %v1310
  %v1312 = vpop.f32.mrb[0].mxu0
  %1313 = vmatprep.mubr.bf16.mxu0 0
  %1314 = vmatmul.mubr.bf16.gmra.mrb[0].mxu0 %v1147
  %v1315 = vpop.f32.mrb[0].mxu0
  %v1316 = vadd.f32 0.0, %v1315
  %v1317 = vpop.f32.mrb[0].mxu0
  %v1318 = vpop.f32.mrb[0].mxu0
  %v1319 = vadd.f32 0.0, %v1318
  %v1320 = vpop.f32.mrb[0].mxu0
  %1321 = vmatprep.mubr.bf16.mxu0 0
  %1322 = vmatmul.mubr.bf16.gmra.mrb[0].mxu0 %v1148
  %v1323 = vpop.f32.mrb[0].mxu0
  %v1324 = vadd.f32 0.0, %v1323
  %v1325 = vpop.f32.mrb[0].mxu0
  %v1326 = vpop.f32.mrb[0].mxu0
  %v1327 = vadd.f32 0.0, %v1326
  %v1328 = vpop.f32.mrb[0].mxu0
  %1329 = vmatprep.mubr.bf16.mxu0 0
  %1330 = vmatmul.mubr.bf16.gmra.mrb[0].mxu0 %v1149
  %v1331 = vpop.f32.mrb[0].mxu0
  %v1332 = vadd.f32 0.0, %v1331
  %v1333 = vpop.f32.mrb[0].mxu0
  %v1334 = vpop.f32.mrb[0].mxu0
  %v1335 = vadd.f32 0.0, %v1334
  %v1336 = vpop.f32.mrb[0].mxu0
  %1337 = vmatprep.mubr.bf16.mxu0 0
  %1338 = vmatmul.mubr.bf16.gmra.mrb[0].mxu0 %v1150
  %v1339 = vpop.f32.mrb[0].mxu0
  %v1340 = vadd.f32 0.0, %v1339
  %v1341 = vpop.f32.mrb[0].mxu0
  %v1342 = vpop.f32.mrb[0].mxu0
  %v1343 = vadd.f32 0.0, %v1342
  %v1344 = vpop.f32.mrb[0].mxu0
  %1345 = vmatprep.mubr.bf16.mxu0 0
  %1346 = vmatmul.mubr.bf16.gmra.mrb[0].mxu0 %v1151
  %v1347 = vpop.f32.mrb[0].mxu0
  %v1348 = vadd.f32 0.0, %v1347
  %v1349 = vpop.f32.mrb[0].mxu0
  %v1350 = vpop.f32.mrb[0].mxu0
  %v1351 = vadd.f32 0.0, %v1350
  %v1352 = vpop.f32.mrb[0].mxu0
  %1353 = vmatprep.mubr.bf16.mxu0 0
  %1354 = vmatmul.mubr.bf16.gmra.mrb[0].mxu0 %v1152
  %v1355 = vpop.f32.mrb[0].mxu0
  %v1356 = vadd.f32 0.0, %v1355
  %v1357 = vpop.f32.mrb[0].mxu0
  %v1358 = vpop.f32.mrb[0].mxu0
  %v1359 = vadd.f32 0.0, %v1358
  %v1360 = vpop.f32.mrb[0].mxu0
  %1361 = vmatprep.mubr.bf16.mxu0 0
  %1362 = vmatmul.mubr.bf16.gmra.mrb[0].mxu0 %v1153
  %v1363 = vpop.f32.mrb[0].mxu0
  %v1364 = vadd.f32 0.0, %v1363
  %v1365 = vpop.f32.mrb[0].mxu0
  %v1366 = vpop.f32.mrb[0].mxu0
  %v1367 = vadd.f32 0.0, %v1366
  %v1368 = vpop.f32.mrb[0].mxu0
  %1369 = vmatprep.mubr.bf16.mxu0 0
  %1370 = vmatmul.mubr.bf16.gmra.mrb[0].mxu0 %v1154
  %v1371 = vpop.f32.mrb[0].mxu0
  %v1372 = vadd.f32 0.0, %v1371
  %v1373 = vpop.f32.mrb[0].mxu0
  %v1374 = vpop.f32.mrb[0].mxu0
  %v1375 = vadd.f32 0.0, %v1374
  %v1376 = vpop.f32.mrb[0].mxu0
  %1377 = vmatprep.mubr.bf16.mxu0 0
  %1378 = vmatmul.mubr.bf16.gmra.mrb[0].mxu0 %v1155
  %v1379 = vpop.f32.mrb[0].mxu0
  %v1380 = vadd.f32 0.0, %v1379
  %v1381 = vpop.f32.mrb[0].mxu0
  %v1382 = vpop.f32.mrb[0].mxu0
  %v1383 = vadd.f32 0.0, %v1382
  %v1384 = vpop.f32.mrb[0].mxu0
  %1385 = vmatprep.mubr.bf16.mxu0 0
  %1386 = vmatmul.mubr.bf16.gmra.mrb[0].mxu0 %v1156
  %v1387 = vpop.f32.mrb[0].mxu0
  %v1388 = vadd.f32 0.0, %v1387
  %v1389 = vpop.f32.mrb[0].mxu0
  %v1390 = vpop.f32.mrb[0].mxu0
  %v1391 = vadd.f32 0.0, %v1390
  %v1392 = vpop.f32.mrb[0].mxu0
  %1393 = vmatprep.mubr.bf16.mxu0 0
  %1394 = vmatmul.mubr.bf16.gmra.mrb[0].mxu0 %v1157
  %v1395 = vpop.f32.mrb[0].mxu0
  %v1396 = vadd.f32 0.0, %v1395
  %v1397 = vpop.f32.mrb[0].mxu0
  %v1398 = vpop.f32.mrb[0].mxu0
  %v1399 = vadd.f32 0.0, %v1398
  %v1400 = vpop.f32.mrb[0].mxu0
  %1401 = vmatprep.mubr.bf16.mxu0 0
  %1402 = vmatmul.mubr.bf16.gmra.mrb[0].mxu0 %v1158
  %v1403 = vpop.f32.mrb[0].mxu0
  %v1404 = vadd.f32 0.0, %v1403
  %v1405 = vpop.f32.mrb[0].mxu0
  %v1406 = vpop.f32.mrb[0].mxu0
  %v1407 = vadd.f32 0.0, %v1406
  %v1408 = vpop.f32.mrb[0].mxu0
  %1409 = vmatprep.mubr.bf16.mxu0 0
  %1410 = vmatmul.mubr.bf16.gmra.mrb[0].mxu0 %v1159
  %v1411 = vpop.f32.mrb[0].mxu0
  %v1412 = vadd.f32 0.0, %v1411
  %v1413 = vpop.f32.mrb[0].mxu0
  %v1414 = vpop.f32.mrb[0].mxu0
  %v1415 = vpop.f32.mrb[0].mxu0
  %1416 = vdwg.mxu0
  %v1417 = vmax.f32 %v938, %v1220
  %v1418 = vmax.f32 %v939, %v1223
  %v1419 = vmax.f32 %v940, %v1228
  %v1420 = vmax.f32 %v941, %v1231
  %v1421 = vmax.f32 %v942, %v1236
  %v1422 = vmax.f32 %v943, %v1239
  %v1423 = vmax.f32 %v944, %v1244
  %v1424 = vmax.f32 %v945, %v1247
  %v1425 = vmax.f32 %v946, %v1252
  %v1426 = vmax.f32 %v947, %v1255
  %v1427 = vmax.f32 %v948, %v1260
  %v1428 = vmax.f32 %v949, %v1263
  %v1429 = vmax.f32 %v950, %v1268
  %v1430 = vmax.f32 %v951, %v1271
  %v1431 = vmax.f32 %v952, %v1276
  %v1432 = vmax.f32 %v953, %v1279
  %v1433 = vmax.f32 %v954, %v1284
  %v1434 = vmax.f32 %v955, %v1287
  %v1435 = vmax.f32 %v956, %v1292
  %v1436 = vmax.f32 %v957, %v1295
  %v1437 = vmax.f32 %v958, %v1300
  %v1438 = vmax.f32 %v959, %v1303
  %v1439 = vmax.f32 %v960, %v1308
  %v1440 = vmax.f32 %v961, %v1311
  %v1441 = vmax.f32 %v962, %v1316
  %v1442 = vmax.f32 %v963, %v1319
  %v1443 = vmax.f32 %v964, %v1324
  %v1444 = vmax.f32 %v965, %v1327
  %v1445 = vmax.f32 %v966, %v1332
  %v1446 = vmax.f32 %v967, %v1335
  %v1447 = vmax.f32 %v968, %v1340
  %v1448 = vmax.f32 %v969, %v1343
  %v1449 = vmax.f32 %v970, %v1348
  %v1450 = vmax.f32 %v971, %v1351
  %v1451 = vmax.f32 %v972, %v1356
  %v1452 = vmax.f32 %v973, %v1359
  %v1453 = vmax.f32 %v974, %v1364
  %v1454 = vmax.f32 %v975, %v1367
  %v1455 = vmax.f32 %v976, %v1372
  %v1456 = vmax.f32 %v977, %v1375
  %v1457 = vmax.f32 %v978, %v1380
  %v1458 = vmax.f32 %v979, %v1383
  %v1459 = vmax.f32 %v980, %v1388
  %v1460 = vmax.f32 %v981, %v1391
  %v1461 = vmax.f32 %v982, %v1396
  %v1462 = vmax.f32 %v983, %v1399
  %v1463 = vmax.f32 %v984, %v1404
  %v1464 = vmax.f32 %v985, %v1407
  %v1465 = vmax.f32 %v986, %v1412
  %s1466 = scalar_lea.vmem %s0, 588
  %v1467 = vld [vmem:[%s1466] sm:$0xf]
  %v1468 = vld [vmem:[%s1466 + $0x4] sm:$0xf]
  %v1469 = vld [vmem:[%s1466 + $0x8] sm:$0xf]
  %v1470 = vld [vmem:[%s1466 + $0xc] sm:$0xf]
  %v1471 = vld [vmem:[%s1466 + $0x10] sm:$0xf]
  %v1472 = vld [vmem:[%s1466 + $0x14] sm:$0xf]
  %v1473 = vld [vmem:[%s1466 + $0x18] sm:$0xf]
  %v1474 = vld [vmem:[%s1466 + $0x1c] sm:$0xf]
  %v1475 = vld [vmem:[%s1466 + $0x20] sm:$0xf]
  %v1476 = vld [vmem:[%s1466 + $0x24] sm:$0xf]
  %v1477 = vld [vmem:[%s1466 + $0x28] sm:$0xf]
  %v1478 = vld [vmem:[%s1466 + $0x2c] sm:$0xf]
  %v1479 = vld [vmem:[%s1466 + $0x30] sm:$0xf]
  %v1480 = vld [vmem:[%s1466 + $0x34] sm:$0xf]
  %v1481 = vld [vmem:[%s1466 + $0x38] sm:$0xf]
  %v1482 = vld [vmem:[%s1466 + $0x3c] sm:$0xf]
  %v1483 = vld [vmem:[%s1466 + $0x40] sm:$0xf]
  %v1484 = vld [vmem:[%s1466 + $0x44] sm:$0xf]
  %v1485 = vld [vmem:[%s1466 + $0x48] sm:$0xf]
  %v1486 = vld [vmem:[%s1466 + $0x4c] sm:$0xf]
  %v1487 = vld [vmem:[%s1466 + $0x50] sm:$0xf]
  %v1488 = vld [vmem:[%s1466 + $0x54] sm:$0xf]
  %v1489 = vld [vmem:[%s1466 + $0x58] sm:$0xf]
  %v1490 = vld [vmem:[%s1466 + $0x5c] sm:$0xf]
  %v1491 = vld [vmem:[%s1466 + $0x60] sm:$0xf]
  %v1492 = vld [vmem:[%s1466 + $0x64] sm:$0xf]
  %v1493 = vld [vmem:[%s1466 + $0x68] sm:$0xf]
  %v1494 = vld [vmem:[%s1466 + $0x6c] sm:$0xf]
  %v1495 = vld [vmem:[%s1466 + $0x70] sm:$0xf]
  %v1496 = vld [vmem:[%s1466 + $0x74] sm:$0xf]
  %v1497 = vld [vmem:[%s1466 + $0x78] sm:$0xf]
  %v1498 = vld [vmem:[%s1466 + $0x7c] sm:$0xf]
  %v1499 = vld [vmem:[%s1466 + $0x80] sm:$0xf]
  %v1500 = vld [vmem:[%s1466 + $0x84] sm:$0xf]
  %v1501 = vld [vmem:[%s1466 + $0x88] sm:$0xf]
  %v1502 = vld [vmem:[%s1466 + $0x8c] sm:$0xf]
  %v1503 = vld [vmem:[%s1466 + $0x90] sm:$0xf]
  %v1504 = vld [vmem:[%s1466 + $0x94] sm:$0xf]
  %v1505 = vld [vmem:[%s1466 + $0x98] sm:$0xf]
  %v1506 = vld [vmem:[%s1466 + $0x9c] sm:$0xf]
  %v1507 = vld [vmem:[%s1466 + $0xa0] sm:$0xf]
  %v1508 = vld [vmem:[%s1466 + $0xa4] sm:$0xf]
  %v1509 = vld [vmem:[%s1466 + $0xa8] sm:$0xf]
  %v1510 = vld [vmem:[%s1466 + $0xac] sm:$0xf]
  %v1511 = vld [vmem:[%s1466 + $0xb0] sm:$0xf]
  %v1512 = vld [vmem:[%s1466 + $0xb4] sm:$0xf]
  %v1513 = vld [vmem:[%s1466 + $0xb8] sm:$0xf]
  %v1514 = vld [vmem:[%s1466 + $0xbc] sm:$0xf]
  %v1515 = vld [vmem:[%s1466 + $0xc0] sm:$0xf]
  %v1565 = vunpack.c.l.b16 %v1467
  %v1566 = vunpack.c.l.b16 %v1468
  %v1567 = vunpack.c.l.b16 %v1469
  %v1568 = vunpack.c.l.b16 %v1470
  %v1569 = vunpack.c.l.b16 %v1471
  %v1570 = vunpack.c.l.b16 %v1472
  %v1571 = vunpack.c.l.b16 %v1473
  %v1572 = vunpack.c.l.b16 %v1474
  %v1573 = vunpack.c.l.b16 %v1475
  %v1574 = vunpack.c.l.b16 %v1476
  %v1575 = vunpack.c.l.b16 %v1477
  %v1576 = vunpack.c.l.b16 %v1478
  %v1577 = vunpack.c.l.b16 %v1479
  %v1578 = vunpack.c.l.b16 %v1480
  %v1579 = vunpack.c.l.b16 %v1481
  %v1580 = vunpack.c.l.b16 %v1482
  %v1581 = vunpack.c.l.b16 %v1483
  %v1582 = vunpack.c.l.b16 %v1484
  %v1583 = vunpack.c.l.b16 %v1485
  %v1584 = vunpack.c.l.b16 %v1486
  %v1585 = vunpack.c.l.b16 %v1487
  %v1586 = vunpack.c.l.b16 %v1488
  %v1587 = vunpack.c.l.b16 %v1489
  %v1588 = vunpack.c.l.b16 %v1490
  %v1589 = vunpack.c.l.b16 %v1491
  %v1590 = vunpack.c.l.b16 %v1492
  %v1591 = vunpack.c.l.b16 %v1493
  %v1592 = vunpack.c.l.b16 %v1494
  %v1593 = vunpack.c.l.b16 %v1495
  %v1594 = vunpack.c.l.b16 %v1496
  %v1595 = vunpack.c.l.b16 %v1497
  %v1596 = vunpack.c.l.b16 %v1498
  %v1597 = vunpack.c.l.b16 %v1499
  %v1598 = vunpack.c.l.b16 %v1500
  %v1599 = vunpack.c.l.b16 %v1501
  %v1600 = vunpack.c.l.b16 %v1502
  %v1601 = vunpack.c.l.b16 %v1503
  %v1602 = vunpack.c.l.b16 %v1504
  %v1603 = vunpack.c.l.b16 %v1505
  %v1604 = vunpack.c.l.b16 %v1506
  %v1605 = vunpack.c.l.b16 %v1507
  %v1606 = vunpack.c.l.b16 %v1508
  %v1607 = vunpack.c.l.b16 %v1509
  %v1608 = vunpack.c.l.b16 %v1510
  %v1609 = vunpack.c.l.b16 %v1511
  %v1610 = vunpack.c.l.b16 %v1512
  %v1611 = vunpack.c.l.b16 %v1513
  %v1612 = vunpack.c.l.b16 %v1514
  %v1613 = vunpack.c.l.b16 %v1515
  %v1614 = vpack.c.b16 %v1566, %v1565
  %v1615 = vpack.c.b16 %v1568, %v1567
  %v1616 = vpack.c.b16 %v1570, %v1569
  %v1617 = vpack.c.b16 %v1572, %v1571
  %v1618 = vpack.c.b16 %v1574, %v1573
  %v1619 = vpack.c.b16 %v1576, %v1575
  %v1620 = vpack.c.b16 %v1578, %v1577
  %v1621 = vpack.c.b16 %v1580, %v1579
  %v1622 = vpack.c.b16 %v1582, %v1581
  %v1623 = vpack.c.b16 %v1584, %v1583
  %v1624 = vpack.c.b16 %v1586, %v1585
  %v1625 = vpack.c.b16 %v1588, %v1587
  %v1626 = vpack.c.b16 %v1590, %v1589
  %v1627 = vpack.c.b16 %v1592, %v1591
  %v1628 = vpack.c.b16 %v1594, %v1593
  %v1629 = vpack.c.b16 %v1596, %v1595
  %v1630 = vpack.c.b16 %v1598, %v1597
  %v1631 = vpack.c.b16 %v1600, %v1599
  %v1632 = vpack.c.b16 %v1602, %v1601
  %v1633 = vpack.c.b16 %v1604, %v1603
  %v1634 = vpack.c.b16 %v1606, %v1605
  %v1635 = vpack.c.b16 %v1608, %v1607
  %v1636 = vpack.c.b16 %v1610, %v1609
  %v1637 = vpack.c.b16 %v1612, %v1611
  %v1638 = vpack.c.b16 %v1613, %v1613
  %1664 = vmatprep.subr.bf16.mxu0 0
  %1665 = vmatpush1.bf16.msra.mxu0 %v260
  %1666 = vmatprep.subr.bf16.mxu0 0
  %1667 = vmatpush1.bf16.msra.mxu0 %v261
  %1668 = vmatprep.subr.bf16.mxu0 0
  %1669 = vmatpush1.bf16.msra.mxu0 %v262
  %1670 = vmatprep.subr.bf16.mxu0 0
  %1671 = vmatpush1.bf16.msra.mxu0 %v263
  %1672 = vmatprep.subr.bf16.mxu0 0
  %1673 = vmatpush1.bf16.msra.mxu0 %v264
  %1674 = vmatprep.subr.bf16.mxu0 0
  %1675 = vmatpush1.bf16.msra.mxu0 %v265
  %1676 = vmatprep.subr.bf16.mxu0 0
  %1677 = vmatpush1.bf16.msra.mxu0 %v266
  %1678 = vmatprep.subr.bf16.mxu0 0
  %1679 = vmatpush1.bf16.msra.mxu0 %v267
  %1680 = vmatprep.subr.bf16.mxu0 0
  %1681 = vmatpush1.bf16.msra.mxu0 0
  %1682 = vmatprep.subr.bf16.mxu0 0
  %1683 = vmatpush1.bf16.msra.mxu0 0
  %1684 = vmatprep.subr.bf16.mxu0 0
  %1685 = vmatpush1.bf16.msra.mxu0 0
  %1686 = vmatprep.subr.bf16.mxu0 0
  %1687 = vmatpush1.bf16.msra.mxu0 0
  %1688 = vmatprep.subr.bf16.mxu0 0
  %1689 = vmatpush1.bf16.msra.mxu0 0
  %1690 = vmatprep.subr.bf16.mxu0 0
  %1691 = vmatpush1.bf16.msra.mxu0 0
  %1692 = vmatprep.subr.bf16.mxu0 0
  %1693 = vmatpush1.bf16.msra.mxu0 0
  %1694 = vmatprep.subr.bf16.mxu0 0
  %1695 = vmatpush1.bf16.msra.mxu0 0
  %1696 = vmatprep.mubr.bf16.mxu0 0
  %1697 = vmatmul.mubr.bf16.gmra.mrb[0].mxu0 %v1614
  %v1698 = vpop.f32.mrb[0].mxu0
  %v1699 = vadd.f32 0.0, %v1698
  %v1700 = vpop.f32.mrb[0].mxu0
  %v1701 = vpop.f32.mrb[0].mxu0
  %v1702 = vadd.f32 0.0, %v1701
  %v1703 = vpop.f32.mrb[0].mxu0
  %1704 = vmatprep.mubr.bf16.mxu0 0
  %1705 = vmatmul.mubr.bf16.gmra.mrb[0].mxu0 %v1615
  %v1706 = vpop.f32.mrb[0].mxu0
  %v1707 = vadd.f32 0.0, %v1706
  %v1708 = vpop.f32.mrb[0].mxu0
  %v1709 = vpop.f32.mrb[0].mxu0
  %v1710 = vadd.f32 0.0, %v1709
  %v1711 = vpop.f32.mrb[0].mxu0
  %1712 = vmatprep.mubr.bf16.mxu0 0
  %1713 = vmatmul.mubr.bf16.gmra.mrb[0].mxu0 %v1616
  %v1714 = vpop.f32.mrb[0].mxu0
  %v1715 = vadd.f32 0.0, %v1714
  %v1716 = vpop.f32.mrb[0].mxu0
  %v1717 = vpop.f32.mrb[0].mxu0
  %v1718 = vadd.f32 0.0, %v1717
  %v1719 = vpop.f32.mrb[0].mxu0
  %1720 = vmatprep.mubr.bf16.mxu0 0
  %1721 = vmatmul.mubr.bf16.gmra.mrb[0].mxu0 %v1617
  %v1722 = vpop.f32.mrb[0].mxu0
  %v1723 = vadd.f32 0.0, %v1722
  %v1724 = vpop.f32.mrb[0].mxu0
  %v1725 = vpop.f32.mrb[0].mxu0
  %v1726 = vadd.f32 0.0, %v1725
  %v1727 = vpop.f32.mrb[0].mxu0
  %1728 = vmatprep.mubr.bf16.mxu0 0
  %1729 = vmatmul.mubr.bf16.gmra.mrb[0].mxu0 %v1618
  %v1730 = vpop.f32.mrb[0].mxu0
  %v1731 = vadd.f32 0.0, %v1730
  %v1732 = vpop.f32.mrb[0].mxu0
  %v1733 = vpop.f32.mrb[0].mxu0
  %v1734 = vadd.f32 0.0, %v1733
  %v1735 = vpop.f32.mrb[0].mxu0
  %1736 = vmatprep.mubr.bf16.mxu0 0
  %1737 = vmatmul.mubr.bf16.gmra.mrb[0].mxu0 %v1619
  %v1738 = vpop.f32.mrb[0].mxu0
  %v1739 = vadd.f32 0.0, %v1738
  %v1740 = vpop.f32.mrb[0].mxu0
  %v1741 = vpop.f32.mrb[0].mxu0
  %v1742 = vadd.f32 0.0, %v1741
  %v1743 = vpop.f32.mrb[0].mxu0
  %1744 = vmatprep.mubr.bf16.mxu0 0
  %1745 = vmatmul.mubr.bf16.gmra.mrb[0].mxu0 %v1620
  %v1746 = vpop.f32.mrb[0].mxu0
  %v1747 = vadd.f32 0.0, %v1746
  %v1748 = vpop.f32.mrb[0].mxu0
  %v1749 = vpop.f32.mrb[0].mxu0
  %v1750 = vadd.f32 0.0, %v1749
  %v1751 = vpop.f32.mrb[0].mxu0
  %1752 = vmatprep.mubr.bf16.mxu0 0
  %1753 = vmatmul.mubr.bf16.gmra.mrb[0].mxu0 %v1621
  %v1754 = vpop.f32.mrb[0].mxu0
  %v1755 = vadd.f32 0.0, %v1754
  %v1756 = vpop.f32.mrb[0].mxu0
  %v1757 = vpop.f32.mrb[0].mxu0
  %v1758 = vadd.f32 0.0, %v1757
  %v1759 = vpop.f32.mrb[0].mxu0
  %1760 = vmatprep.mubr.bf16.mxu0 0
  %1761 = vmatmul.mubr.bf16.gmra.mrb[0].mxu0 %v1622
  %v1762 = vpop.f32.mrb[0].mxu0
  %v1763 = vadd.f32 0.0, %v1762
  %v1764 = vpop.f32.mrb[0].mxu0
  %v1765 = vpop.f32.mrb[0].mxu0
  %v1766 = vadd.f32 0.0, %v1765
  %v1767 = vpop.f32.mrb[0].mxu0
  %1768 = vmatprep.mubr.bf16.mxu0 0
  %1769 = vmatmul.mubr.bf16.gmra.mrb[0].mxu0 %v1623
  %v1770 = vpop.f32.mrb[0].mxu0
  %v1771 = vadd.f32 0.0, %v1770
  %v1772 = vpop.f32.mrb[0].mxu0
  %v1773 = vpop.f32.mrb[0].mxu0
  %v1774 = vadd.f32 0.0, %v1773
  %v1775 = vpop.f32.mrb[0].mxu0
  %1776 = vmatprep.mubr.bf16.mxu0 0
  %1777 = vmatmul.mubr.bf16.gmra.mrb[0].mxu0 %v1624
  %v1778 = vpop.f32.mrb[0].mxu0
  %v1779 = vadd.f32 0.0, %v1778
  %v1780 = vpop.f32.mrb[0].mxu0
  %v1781 = vpop.f32.mrb[0].mxu0
  %v1782 = vadd.f32 0.0, %v1781
  %v1783 = vpop.f32.mrb[0].mxu0
  %1784 = vmatprep.mubr.bf16.mxu0 0
  %1785 = vmatmul.mubr.bf16.gmra.mrb[0].mxu0 %v1625
  %v1786 = vpop.f32.mrb[0].mxu0
  %v1787 = vadd.f32 0.0, %v1786
  %v1788 = vpop.f32.mrb[0].mxu0
  %v1789 = vpop.f32.mrb[0].mxu0
  %v1790 = vadd.f32 0.0, %v1789
  %v1791 = vpop.f32.mrb[0].mxu0
  %1792 = vmatprep.mubr.bf16.mxu0 0
  %1793 = vmatmul.mubr.bf16.gmra.mrb[0].mxu0 %v1626
  %v1794 = vpop.f32.mrb[0].mxu0
  %v1795 = vadd.f32 0.0, %v1794
  %v1796 = vpop.f32.mrb[0].mxu0
  %v1797 = vpop.f32.mrb[0].mxu0
  %v1798 = vadd.f32 0.0, %v1797
  %v1799 = vpop.f32.mrb[0].mxu0
  %1800 = vmatprep.mubr.bf16.mxu0 0
  %1801 = vmatmul.mubr.bf16.gmra.mrb[0].mxu0 %v1627
  %v1802 = vpop.f32.mrb[0].mxu0
  %v1803 = vadd.f32 0.0, %v1802
  %v1804 = vpop.f32.mrb[0].mxu0
  %v1805 = vpop.f32.mrb[0].mxu0
  %v1806 = vadd.f32 0.0, %v1805
  %v1807 = vpop.f32.mrb[0].mxu0
  %1808 = vmatprep.mubr.bf16.mxu0 0
  %1809 = vmatmul.mubr.bf16.gmra.mrb[0].mxu0 %v1628
  %v1810 = vpop.f32.mrb[0].mxu0
  %v1811 = vadd.f32 0.0, %v1810
  %v1812 = vpop.f32.mrb[0].mxu0
  %v1813 = vpop.f32.mrb[0].mxu0
  %v1814 = vadd.f32 0.0, %v1813
  %v1815 = vpop.f32.mrb[0].mxu0
  %1816 = vmatprep.mubr.bf16.mxu0 0
  %1817 = vmatmul.mubr.bf16.gmra.mrb[0].mxu0 %v1629
  %v1818 = vpop.f32.mrb[0].mxu0
  %v1819 = vadd.f32 0.0, %v1818
  %v1820 = vpop.f32.mrb[0].mxu0
  %v1821 = vpop.f32.mrb[0].mxu0
  %v1822 = vadd.f32 0.0, %v1821
  %v1823 = vpop.f32.mrb[0].mxu0
  %1824 = vmatprep.mubr.bf16.mxu0 0
  %1825 = vmatmul.mubr.bf16.gmra.mrb[0].mxu0 %v1630
  %v1826 = vpop.f32.mrb[0].mxu0
  %v1827 = vadd.f32 0.0, %v1826
  %v1828 = vpop.f32.mrb[0].mxu0
  %v1829 = vpop.f32.mrb[0].mxu0
  %v1830 = vadd.f32 0.0, %v1829
  %v1831 = vpop.f32.mrb[0].mxu0
  %1832 = vmatprep.mubr.bf16.mxu0 0
  %1833 = vmatmul.mubr.bf16.gmra.mrb[0].mxu0 %v1631
  %v1834 = vpop.f32.mrb[0].mxu0
  %v1835 = vadd.f32 0.0, %v1834
  %v1836 = vpop.f32.mrb[0].mxu0
  %v1837 = vpop.f32.mrb[0].mxu0
  %v1838 = vadd.f32 0.0, %v1837
  %v1839 = vpop.f32.mrb[0].mxu0
  %1840 = vmatprep.mubr.bf16.mxu0 0
  %1841 = vmatmul.mubr.bf16.gmra.mrb[0].mxu0 %v1632
  %v1842 = vpop.f32.mrb[0].mxu0
  %v1843 = vadd.f32 0.0, %v1842
  %v1844 = vpop.f32.mrb[0].mxu0
  %v1845 = vpop.f32.mrb[0].mxu0
  %v1846 = vadd.f32 0.0, %v1845
  %v1847 = vpop.f32.mrb[0].mxu0
  %1848 = vmatprep.mubr.bf16.mxu0 0
  %1849 = vmatmul.mubr.bf16.gmra.mrb[0].mxu0 %v1633
  %v1850 = vpop.f32.mrb[0].mxu0
  %v1851 = vadd.f32 0.0, %v1850
  %v1852 = vpop.f32.mrb[0].mxu0
  %v1853 = vpop.f32.mrb[0].mxu0
  %v1854 = vadd.f32 0.0, %v1853
  %v1855 = vpop.f32.mrb[0].mxu0
  %1856 = vmatprep.mubr.bf16.mxu0 0
  %1857 = vmatmul.mubr.bf16.gmra.mrb[0].mxu0 %v1634
  %v1858 = vpop.f32.mrb[0].mxu0
  %v1859 = vadd.f32 0.0, %v1858
  %v1860 = vpop.f32.mrb[0].mxu0
  %v1861 = vpop.f32.mrb[0].mxu0
  %v1862 = vadd.f32 0.0, %v1861
  %v1863 = vpop.f32.mrb[0].mxu0
  %1864 = vmatprep.mubr.bf16.mxu0 0
  %1865 = vmatmul.mubr.bf16.gmra.mrb[0].mxu0 %v1635
  %v1866 = vpop.f32.mrb[0].mxu0
  %v1867 = vadd.f32 0.0, %v1866
  %v1868 = vpop.f32.mrb[0].mxu0
  %v1869 = vpop.f32.mrb[0].mxu0
  %v1870 = vadd.f32 0.0, %v1869
  %v1871 = vpop.f32.mrb[0].mxu0
  %1872 = vmatprep.mubr.bf16.mxu0 0
  %1873 = vmatmul.mubr.bf16.gmra.mrb[0].mxu0 %v1636
  %v1874 = vpop.f32.mrb[0].mxu0
  %v1875 = vadd.f32 0.0, %v1874
  %v1876 = vpop.f32.mrb[0].mxu0
  %v1877 = vpop.f32.mrb[0].mxu0
  %v1878 = vadd.f32 0.0, %v1877
  %v1879 = vpop.f32.mrb[0].mxu0
  %1880 = vmatprep.mubr.bf16.mxu0 0
  %1881 = vmatmul.mubr.bf16.gmra.mrb[0].mxu0 %v1637
  %v1882 = vpop.f32.mrb[0].mxu0
  %v1883 = vadd.f32 0.0, %v1882
  %v1884 = vpop.f32.mrb[0].mxu0
  %v1885 = vpop.f32.mrb[0].mxu0
  %v1886 = vadd.f32 0.0, %v1885
  %v1887 = vpop.f32.mrb[0].mxu0
  %1888 = vmatprep.mubr.bf16.mxu0 0
  %1889 = vmatmul.mubr.bf16.gmra.mrb[0].mxu0 %v1638
  %v1890 = vpop.f32.mrb[0].mxu0
  %v1891 = vadd.f32 0.0, %v1890
  %v1892 = vpop.f32.mrb[0].mxu0
  %v1893 = vpop.f32.mrb[0].mxu0
  %v1894 = vpop.f32.mrb[0].mxu0
  %1895 = vdwg.mxu0
  %v1896 = vmax.f32 %v1417, %v1699
  %v1897 = vmax.f32 %v1418, %v1702
  %v1898 = vmax.f32 %v1419, %v1707
  %v1899 = vmax.f32 %v1420, %v1710
  %v1900 = vmax.f32 %v1421, %v1715
  %v1901 = vmax.f32 %v1422, %v1718
  %v1902 = vmax.f32 %v1423, %v1723
  %v1903 = vmax.f32 %v1424, %v1726
  %v1904 = vmax.f32 %v1425, %v1731
  %v1905 = vmax.f32 %v1426, %v1734
  %v1906 = vmax.f32 %v1427, %v1739
  %v1907 = vmax.f32 %v1428, %v1742
  %v1908 = vmax.f32 %v1429, %v1747
  %v1909 = vmax.f32 %v1430, %v1750
  %v1910 = vmax.f32 %v1431, %v1755
  %v1911 = vmax.f32 %v1432, %v1758
  %v1912 = vmax.f32 %v1433, %v1763
  %v1913 = vmax.f32 %v1434, %v1766
  %v1914 = vmax.f32 %v1435, %v1771
  %v1915 = vmax.f32 %v1436, %v1774
  %v1916 = vmax.f32 %v1437, %v1779
  %v1917 = vmax.f32 %v1438, %v1782
  %v1918 = vmax.f32 %v1439, %v1787
  %v1919 = vmax.f32 %v1440, %v1790
  %v1920 = vmax.f32 %v1441, %v1795
  %v1921 = vmax.f32 %v1442, %v1798
  %v1922 = vmax.f32 %v1443, %v1803
  %v1923 = vmax.f32 %v1444, %v1806
  %v1924 = vmax.f32 %v1445, %v1811
  %v1925 = vmax.f32 %v1446, %v1814
  %v1926 = vmax.f32 %v1447, %v1819
  %v1927 = vmax.f32 %v1448, %v1822
  %v1928 = vmax.f32 %v1449, %v1827
  %v1929 = vmax.f32 %v1450, %v1830
  %v1930 = vmax.f32 %v1451, %v1835
  %v1931 = vmax.f32 %v1452, %v1838
  %v1932 = vmax.f32 %v1453, %v1843
  %v1933 = vmax.f32 %v1454, %v1846
  %v1934 = vmax.f32 %v1455, %v1851
  %v1935 = vmax.f32 %v1456, %v1854
  %v1936 = vmax.f32 %v1457, %v1859
  %v1937 = vmax.f32 %v1458, %v1862
  %v1938 = vmax.f32 %v1459, %v1867
  %v1939 = vmax.f32 %v1460, %v1870
  %v1940 = vmax.f32 %v1461, %v1875
  %v1941 = vmax.f32 %v1462, %v1878
  %v1942 = vmax.f32 %v1463, %v1883
  %v1943 = vmax.f32 %v1464, %v1886
  %v1944 = vmax.f32 %v1465, %v1891
  %v1945 = vld [vmem:[%s2] sm:$0x1]
  %v1947 = vlaneseq
  %v1948 = vshrl.u32 %v1947, 7
  %v1949 = vsub.s32 0, %v1948
  %v1950 = vrot.slane %v1945, %v1949
  %v1952 = vadd.f32 %v1896, %v1950
  %v1953 = vadd.f32 %v1897, %v1950
  %v1954 = vadd.f32 %v1898, %v1950
  %v1955 = vadd.f32 %v1899, %v1950
  %v1956 = vadd.f32 %v1900, %v1950
  %v1957 = vadd.f32 %v1901, %v1950
  %v1958 = vadd.f32 %v1902, %v1950
  %v1959 = vadd.f32 %v1903, %v1950
  %v1960 = vadd.f32 %v1904, %v1950
  %v1961 = vadd.f32 %v1905, %v1950
  %v1962 = vadd.f32 %v1906, %v1950
  %v1963 = vadd.f32 %v1907, %v1950
  %v1964 = vadd.f32 %v1908, %v1950
  %v1965 = vadd.f32 %v1909, %v1950
  %v1966 = vadd.f32 %v1910, %v1950
  %v1967 = vadd.f32 %v1911, %v1950
  %v1968 = vadd.f32 %v1912, %v1950
  %v1969 = vadd.f32 %v1913, %v1950
  %v1970 = vadd.f32 %v1914, %v1950
  %v1971 = vadd.f32 %v1915, %v1950
  %v1972 = vadd.f32 %v1916, %v1950
  %v1973 = vadd.f32 %v1917, %v1950
  %v1974 = vadd.f32 %v1918, %v1950
  %v1975 = vadd.f32 %v1919, %v1950
  %v1976 = vadd.f32 %v1920, %v1950
  %v1977 = vadd.f32 %v1921, %v1950
  %v1978 = vadd.f32 %v1922, %v1950
  %v1979 = vadd.f32 %v1923, %v1950
  %v1980 = vadd.f32 %v1924, %v1950
  %v1981 = vadd.f32 %v1925, %v1950
  %v1982 = vadd.f32 %v1926, %v1950
  %v1983 = vadd.f32 %v1927, %v1950
  %v1984 = vadd.f32 %v1928, %v1950
  %v1985 = vadd.f32 %v1929, %v1950
  %v1986 = vadd.f32 %v1930, %v1950
  %v1987 = vadd.f32 %v1931, %v1950
  %v1988 = vadd.f32 %v1932, %v1950
  %v1989 = vadd.f32 %v1933, %v1950
  %v1990 = vadd.f32 %v1934, %v1950
  %v1991 = vadd.f32 %v1935, %v1950
  %v1992 = vadd.f32 %v1936, %v1950
  %v1993 = vadd.f32 %v1937, %v1950
  %v1994 = vadd.f32 %v1938, %v1950
  %v1995 = vadd.f32 %v1939, %v1950
  %v1996 = vadd.f32 %v1940, %v1950
  %v1997 = vadd.f32 %v1941, %v1950
  %v1998 = vadd.f32 %v1942, %v1950
  %v1999 = vadd.f32 %v1943, %v1950
  %v2000 = vadd.f32 %v1944, %v1950
  %v2001 = vmax.f32 %v1952, 0.0
  %v2002 = vmax.f32 %v1953, 0.0
  %v2003 = vmax.f32 %v1954, 0.0
  %v2004 = vmax.f32 %v1955, 0.0
  %v2005 = vmax.f32 %v1956, 0.0
  %v2006 = vmax.f32 %v1957, 0.0
  %v2007 = vmax.f32 %v1958, 0.0
  %v2008 = vmax.f32 %v1959, 0.0
  %v2009 = vmax.f32 %v1960, 0.0
  %v2010 = vmax.f32 %v1961, 0.0
  %v2011 = vmax.f32 %v1962, 0.0
  %v2012 = vmax.f32 %v1963, 0.0
  %v2013 = vmax.f32 %v1964, 0.0
  %v2014 = vmax.f32 %v1965, 0.0
  %v2015 = vmax.f32 %v1966, 0.0
  %v2016 = vmax.f32 %v1967, 0.0
  %v2017 = vmax.f32 %v1968, 0.0
  %v2018 = vmax.f32 %v1969, 0.0
  %v2019 = vmax.f32 %v1970, 0.0
  %v2020 = vmax.f32 %v1971, 0.0
  %v2021 = vmax.f32 %v1972, 0.0
  %v2022 = vmax.f32 %v1973, 0.0
  %v2023 = vmax.f32 %v1974, 0.0
  %v2024 = vmax.f32 %v1975, 0.0
  %v2025 = vmax.f32 %v1976, 0.0
  %v2026 = vmax.f32 %v1977, 0.0
  %v2027 = vmax.f32 %v1978, 0.0
  %v2028 = vmax.f32 %v1979, 0.0
  %v2029 = vmax.f32 %v1980, 0.0
  %v2030 = vmax.f32 %v1981, 0.0
  %v2031 = vmax.f32 %v1982, 0.0
  %v2032 = vmax.f32 %v1983, 0.0
  %v2033 = vmax.f32 %v1984, 0.0
  %v2034 = vmax.f32 %v1985, 0.0
  %v2035 = vmax.f32 %v1986, 0.0
  %v2036 = vmax.f32 %v1987, 0.0
  %v2037 = vmax.f32 %v1988, 0.0
  %v2038 = vmax.f32 %v1989, 0.0
  %v2039 = vmax.f32 %v1990, 0.0
  %v2040 = vmax.f32 %v1991, 0.0
  %v2041 = vmax.f32 %v1992, 0.0
  %v2042 = vmax.f32 %v1993, 0.0
  %v2043 = vmax.f32 %v1994, 0.0
  %v2044 = vmax.f32 %v1995, 0.0
  %v2045 = vmax.f32 %v1996, 0.0
  %v2046 = vmax.f32 %v1997, 0.0
  %v2047 = vmax.f32 %v1998, 0.0
  %v2048 = vmax.f32 %v1999, 0.0
  %v2049 = vmax.f32 %v2000, 0.0
  %v2050 = vpack.c.bf16 %v2002, %v2001
  %v2051 = vpack.c.bf16 %v2004, %v2003
  %v2052 = vpack.c.bf16 %v2006, %v2005
  %v2053 = vpack.c.bf16 %v2008, %v2007
  %v2054 = vpack.c.bf16 %v2010, %v2009
  %v2055 = vpack.c.bf16 %v2012, %v2011
  %v2056 = vpack.c.bf16 %v2014, %v2013
  %v2057 = vpack.c.bf16 %v2016, %v2015
  %v2058 = vpack.c.bf16 %v2018, %v2017
  %v2059 = vpack.c.bf16 %v2020, %v2019
  %v2060 = vpack.c.bf16 %v2022, %v2021
  %v2061 = vpack.c.bf16 %v2024, %v2023
  %v2062 = vpack.c.bf16 %v2026, %v2025
  %v2063 = vpack.c.bf16 %v2028, %v2027
  %v2064 = vpack.c.bf16 %v2030, %v2029
  %v2065 = vpack.c.bf16 %v2032, %v2031
  %v2066 = vpack.c.bf16 %v2034, %v2033
  %v2067 = vpack.c.bf16 %v2036, %v2035
  %v2068 = vpack.c.bf16 %v2038, %v2037
  %v2069 = vpack.c.bf16 %v2040, %v2039
  %v2070 = vpack.c.bf16 %v2042, %v2041
  %v2071 = vpack.c.bf16 %v2044, %v2043
  %v2072 = vpack.c.bf16 %v2046, %v2045
  %v2073 = vpack.c.bf16 %v2048, %v2047
  %v2074 = vpack.c.bf16 %v2049, %v2049
  %v2100 = vunpack.c.l.b16 %v2050
  %v2101 = vunpack.c.h.b16 %v2050
  %v2102 = vunpack.c.l.b16 %v2051
  %v2103 = vunpack.c.h.b16 %v2051
  %v2104 = vunpack.c.l.b16 %v2052
  %v2105 = vunpack.c.h.b16 %v2052
  %v2106 = vunpack.c.l.b16 %v2053
  %v2107 = vunpack.c.h.b16 %v2053
  %v2108 = vunpack.c.l.b16 %v2054
  %v2109 = vunpack.c.h.b16 %v2054
  %v2110 = vunpack.c.l.b16 %v2055
  %v2111 = vunpack.c.h.b16 %v2055
  %v2112 = vunpack.c.l.b16 %v2056
  %v2113 = vunpack.c.h.b16 %v2056
  %v2114 = vunpack.c.l.b16 %v2057
  %v2115 = vunpack.c.h.b16 %v2057
  %v2116 = vunpack.c.l.b16 %v2058
  %v2117 = vunpack.c.h.b16 %v2058
  %v2118 = vunpack.c.l.b16 %v2059
  %v2119 = vunpack.c.h.b16 %v2059
  %v2120 = vunpack.c.l.b16 %v2060
  %v2121 = vunpack.c.h.b16 %v2060
  %v2122 = vunpack.c.l.b16 %v2061
  %v2123 = vunpack.c.h.b16 %v2061
  %v2124 = vunpack.c.l.b16 %v2062
  %v2125 = vunpack.c.h.b16 %v2062
  %v2126 = vunpack.c.l.b16 %v2063
  %v2127 = vunpack.c.h.b16 %v2063
  %v2128 = vunpack.c.l.b16 %v2064
  %v2129 = vunpack.c.h.b16 %v2064
  %v2130 = vunpack.c.l.b16 %v2065
  %v2131 = vunpack.c.h.b16 %v2065
  %v2132 = vunpack.c.l.b16 %v2066
  %v2133 = vunpack.c.h.b16 %v2066
  %v2134 = vunpack.c.l.b16 %v2067
  %v2135 = vunpack.c.h.b16 %v2067
  %v2136 = vunpack.c.l.b16 %v2068
  %v2137 = vunpack.c.h.b16 %v2068
  %v2138 = vunpack.c.l.b16 %v2069
  %v2139 = vunpack.c.h.b16 %v2069
  %v2140 = vunpack.c.l.b16 %v2070
  %v2141 = vunpack.c.h.b16 %v2070
  %v2142 = vunpack.c.l.b16 %v2071
  %v2143 = vunpack.c.h.b16 %v2071
  %v2144 = vunpack.c.l.b16 %v2072
  %v2145 = vunpack.c.h.b16 %v2072
  %v2146 = vunpack.c.l.b16 %v2073
  %v2147 = vunpack.c.h.b16 %v2073
  %v2148 = vunpack.c.l.b16 %v2074
  %v2149 = vpack.c.b16 %v2100, %v2100
  %v2150 = vpack.c.b16 %v2101, %v2101
  %v2151 = vpack.c.b16 %v2102, %v2102
  %v2152 = vpack.c.b16 %v2103, %v2103
  %v2153 = vpack.c.b16 %v2104, %v2104
  %v2154 = vpack.c.b16 %v2105, %v2105
  %v2155 = vpack.c.b16 %v2106, %v2106
  %v2156 = vpack.c.b16 %v2107, %v2107
  %v2157 = vpack.c.b16 %v2108, %v2108
  %v2158 = vpack.c.b16 %v2109, %v2109
  %v2159 = vpack.c.b16 %v2110, %v2110
  %v2160 = vpack.c.b16 %v2111, %v2111
  %v2161 = vpack.c.b16 %v2112, %v2112
  %v2162 = vpack.c.b16 %v2113, %v2113
  %v2163 = vpack.c.b16 %v2114, %v2114
  %v2164 = vpack.c.b16 %v2115, %v2115
  %v2165 = vpack.c.b16 %v2116, %v2116
  %v2166 = vpack.c.b16 %v2117, %v2117
  %v2167 = vpack.c.b16 %v2118, %v2118
  %v2168 = vpack.c.b16 %v2119, %v2119
  %v2169 = vpack.c.b16 %v2120, %v2120
  %v2170 = vpack.c.b16 %v2121, %v2121
  %v2171 = vpack.c.b16 %v2122, %v2122
  %v2172 = vpack.c.b16 %v2123, %v2123
  %v2173 = vpack.c.b16 %v2124, %v2124
  %v2174 = vpack.c.b16 %v2125, %v2125
  %v2175 = vpack.c.b16 %v2126, %v2126
  %v2176 = vpack.c.b16 %v2127, %v2127
  %v2177 = vpack.c.b16 %v2128, %v2128
  %v2178 = vpack.c.b16 %v2129, %v2129
  %v2179 = vpack.c.b16 %v2130, %v2130
  %v2180 = vpack.c.b16 %v2131, %v2131
  %v2181 = vpack.c.b16 %v2132, %v2132
  %v2182 = vpack.c.b16 %v2133, %v2133
  %v2183 = vpack.c.b16 %v2134, %v2134
  %v2184 = vpack.c.b16 %v2135, %v2135
  %v2185 = vpack.c.b16 %v2136, %v2136
  %v2186 = vpack.c.b16 %v2137, %v2137
  %v2187 = vpack.c.b16 %v2138, %v2138
  %v2188 = vpack.c.b16 %v2139, %v2139
  %v2189 = vpack.c.b16 %v2140, %v2140
  %v2190 = vpack.c.b16 %v2141, %v2141
  %v2191 = vpack.c.b16 %v2142, %v2142
  %v2192 = vpack.c.b16 %v2143, %v2143
  %v2193 = vpack.c.b16 %v2144, %v2144
  %v2194 = vpack.c.b16 %v2145, %v2145
  %v2195 = vpack.c.b16 %v2146, %v2146
  %v2196 = vpack.c.b16 %v2147, %v2147
  %v2197 = vpack.c.b16 %v2148, %v2148
  %2247 = vst [vmem:[%s3] sm:$0xf] %v2149
  %2248 = vst [vmem:[%s3 + $0x4] sm:$0xf] %v2150
  %2249 = vst [vmem:[%s3 + $0x8] sm:$0xf] %v2151
  %2250 = vst [vmem:[%s3 + $0xc] sm:$0xf] %v2152
  %2251 = vst [vmem:[%s3 + $0x10] sm:$0xf] %v2153
  %2252 = vst [vmem:[%s3 + $0x14] sm:$0xf] %v2154
  %2253 = vst [vmem:[%s3 + $0x18] sm:$0xf] %v2155
  %2254 = vst [vmem:[%s3 + $0x1c] sm:$0xf] %v2156
  %2255 = vst [vmem:[%s3 + $0x20] sm:$0xf] %v2157
  %2256 = vst [vmem:[%s3 + $0x24] sm:$0xf] %v2158
  %2257 = vst [vmem:[%s3 + $0x28] sm:$0xf] %v2159
  %2258 = vst [vmem:[%s3 + $0x2c] sm:$0xf] %v2160
  %2259 = vst [vmem:[%s3 + $0x30] sm:$0xf] %v2161
  %2260 = vst [vmem:[%s3 + $0x34] sm:$0xf] %v2162
  %2261 = vst [vmem:[%s3 + $0x38] sm:$0xf] %v2163
  %2262 = vst [vmem:[%s3 + $0x3c] sm:$0xf] %v2164
  %2263 = vst [vmem:[%s3 + $0x40] sm:$0xf] %v2165
  %2264 = vst [vmem:[%s3 + $0x44] sm:$0xf] %v2166
  %2265 = vst [vmem:[%s3 + $0x48] sm:$0xf] %v2167
  %2266 = vst [vmem:[%s3 + $0x4c] sm:$0xf] %v2168
  %2267 = vst [vmem:[%s3 + $0x50] sm:$0xf] %v2169
  %2268 = vst [vmem:[%s3 + $0x54] sm:$0xf] %v2170
  %2269 = vst [vmem:[%s3 + $0x58] sm:$0xf] %v2171
  %2270 = vst [vmem:[%s3 + $0x5c] sm:$0xf] %v2172
  %2271 = vst [vmem:[%s3 + $0x60] sm:$0xf] %v2173
  %2272 = vst [vmem:[%s3 + $0x64] sm:$0xf] %v2174
  %2273 = vst [vmem:[%s3 + $0x68] sm:$0xf] %v2175
  %2274 = vst [vmem:[%s3 + $0x6c] sm:$0xf] %v2176
  %2275 = vst [vmem:[%s3 + $0x70] sm:$0xf] %v2177
  %2276 = vst [vmem:[%s3 + $0x74] sm:$0xf] %v2178
  %2277 = vst [vmem:[%s3 + $0x78] sm:$0xf] %v2179
  %2278 = vst [vmem:[%s3 + $0x7c] sm:$0xf] %v2180
  %2279 = vst [vmem:[%s3 + $0x80] sm:$0xf] %v2181
  %2280 = vst [vmem:[%s3 + $0x84] sm:$0xf] %v2182
  %2281 = vst [vmem:[%s3 + $0x88] sm:$0xf] %v2183
  %2282 = vst [vmem:[%s3 + $0x8c] sm:$0xf] %v2184
  %2283 = vst [vmem:[%s3 + $0x90] sm:$0xf] %v2185
  %2284 = vst [vmem:[%s3 + $0x94] sm:$0xf] %v2186
  %2285 = vst [vmem:[%s3 + $0x98] sm:$0xf] %v2187
  %2286 = vst [vmem:[%s3 + $0x9c] sm:$0xf] %v2188
  %2287 = vst [vmem:[%s3 + $0xa0] sm:$0xf] %v2189
  %2288 = vst [vmem:[%s3 + $0xa4] sm:$0xf] %v2190
  %2289 = vst [vmem:[%s3 + $0xa8] sm:$0xf] %v2191
  %2290 = vst [vmem:[%s3 + $0xac] sm:$0xf] %v2192
  %2291 = vst [vmem:[%s3 + $0xb0] sm:$0xf] %v2193
  %2292 = vst [vmem:[%s3 + $0xb4] sm:$0xf] %v2194
  %2293 = vst [vmem:[%s3 + $0xb8] sm:$0xf] %v2195
  %2294 = vst [vmem:[%s3 + $0xbc] sm:$0xf] %v2196
  %2295 = vst [vmem:[%s3 + $0xc0] sm:$0xf] %v2197
  // Predicated region
  $region14: #{net_forward.3} parent=0 // pred_check
    _
  $region15: #{net_forward.3} parent=0 // pred_check_branch
    %2297 = sbr.rel (0) target = $region17
  $region16: #{net_forward.3} parent=0 // pred_region
    _
  $region17: #{net_forward.3} parent=0 // pred_fallthru
    _
  // Predicated region
  $region18: #{net_forward.3} parent=0 // pred_check
    _
  $region19: #{net_forward.3} parent=0 // pred_check_branch
    %2299 = sbr.rel (0) target = $region21
  $region20: #{net_forward.3} parent=0 // pred_region
    _
  $region21: #{net_forward.3} parent=0 // pred_fallthru
    _

// kernel: net_forward.4
$region0: #{net_forward.4}
  #allocation0 [shape = 'u32[]', space=smem, size = 0x4, offset = 0x4, fixed_abs, tag = 'smem constant byte address 0x4 - core index']
  #allocation1 [shape = 'u32[144,128]{1,0:T(1,128)}', space=vmem, size = 0x12000, scoped, tag = 'internal scratch']
  %s0 = inlined_call_operand.vmem [shape: bf16[4,56,256], index: 0, kind: input, shape index: {}]
  %s1 = inlined_call_operand.vmem [shape: bf16[256,128], index: 1, kind: input, shape index: {}]
  %s2 = inlined_call_operand.vmem [shape: f32[1,128], index: 2, kind: input, shape index: {}]
  %s3 = inlined_call_operand.vmem [shape: bf16[56,128], index: 3, kind: output, shape index: {}]
  %s4 = sld [smem:[#allocation0]]
  $region22: #{net_forward.4} parent=0
    _
  %s6 = ssub.s32 1, %s4
  %s7 = scalar_select 0, %s6, %s4
  // Predicated region
  $region2: #{net_forward.4} parent=0 // pred_check
    _
  $region3: #{net_forward.4} parent=0 // pred_check_branch
    %9 = sbr.rel (0) target = $region5
  $region4: #{net_forward.4} parent=0 // pred_region
    _
  $region5: #{net_forward.4} parent=0 // pred_fallthru
    _
  // Predicated region
  $region6: #{net_forward.4} parent=0 // pred_check
    _
  $region7: #{net_forward.4} parent=0 // pred_check_branch
    %11 = sbr.rel (0) target = $region9
  $region8: #{net_forward.4} parent=0 // pred_region
    _
  $region9: #{net_forward.4} parent=0 // pred_fallthru
    _
  // Predicated region
  $region10: #{net_forward.4} parent=0 // pred_check
    _
  $region11: #{net_forward.4} parent=0 // pred_check_branch
    %13 = sbr.rel (0) target = $region13
  $region12: #{net_forward.4} parent=0 // pred_region
    _
  $region13: #{net_forward.4} parent=0 // pred_fallthru
    _
  %v15 = vld [vmem:[%s1] sm:$0xf]
  %v16 = vld [vmem:[%s1 + $0x4] sm:$0xf]
  %v17 = vld [vmem:[%s1 + $0x8] sm:$0xf]
  %v18 = vld [vmem:[%s1 + $0xc] sm:$0xf]
  %v19 = vld [vmem:[%s1 + $0x10] sm:$0xf]
  %v20 = vld [vmem:[%s1 + $0x14] sm:$0xf]
  %v21 = vld [vmem:[%s1 + $0x18] sm:$0xf]
  %v22 = vld [vmem:[%s1 + $0x1c] sm:$0xf]
  %v23 = vld [vmem:[%s1 + $0x20] sm:$0xf]
  %v24 = vld [vmem:[%s1 + $0x24] sm:$0xf]
  %v25 = vld [vmem:[%s1 + $0x28] sm:$0xf]
  %v26 = vld [vmem:[%s1 + $0x2c] sm:$0xf]
  %v27 = vld [vmem:[%s1 + $0x30] sm:$0xf]
  %v28 = vld [vmem:[%s1 + $0x34] sm:$0xf]
  %v29 = vld [vmem:[%s1 + $0x38] sm:$0xf]
  %v30 = vld [vmem:[%s1 + $0x3c] sm:$0xf]
  %v31 = vld [vmem:[%s1 + $0x40] sm:$0xf]
  %v32 = vld [vmem:[%s1 + $0x44] sm:$0xf]
  %v33 = vld [vmem:[%s1 + $0x48] sm:$0xf]
  %v34 = vld [vmem:[%s1 + $0x4c] sm:$0xf]
  %v35 = vld [vmem:[%s1 + $0x50] sm:$0xf]
  %v36 = vld [vmem:[%s1 + $0x54] sm:$0xf]
  %v37 = vld [vmem:[%s1 + $0x58] sm:$0xf]
  %v38 = vld [vmem:[%s1 + $0x5c] sm:$0xf]
  %v39 = vld [vmem:[%s1 + $0x60] sm:$0xf]
  %v40 = vld [vmem:[%s1 + $0x64] sm:$0xf]
  %v41 = vld [vmem:[%s1 + $0x68] sm:$0xf]
  %v42 = vld [vmem:[%s1 + $0x6c] sm:$0xf]
  %v43 = vld [vmem:[%s1 + $0x70] sm:$0xf]
  %v44 = vld [vmem:[%s1 + $0x74] sm:$0xf]
  %v45 = vld [vmem:[%s1 + $0x78] sm:$0xf]
  %v46 = vld [vmem:[%s1 + $0x7c] sm:$0xf]
  %v47 = vld [vmem:[%s0] sm:$0xff]
  %v48 = vld [vmem:[%s0 + $0x8] sm:$0xff]
  %v49 = vld [vmem:[%s0 + $0x10] sm:$0xff]
  %v50 = vld [vmem:[%s0 + $0x18] sm:$0xff]
  %v51 = vld [vmem:[%s0 + $0x20] sm:$0xff]
  %v52 = vld [vmem:[%s0 + $0x28] sm:$0xff]
  %v53 = vld [vmem:[%s0 + $0x30] sm:$0xff]
  %v61 = vunpack.c.l.b16 %v47
  %v62 = vunpack.c.h.b16 %v47
  %v63 = vunpack.c.l.b16 %v48
  %v64 = vunpack.c.h.b16 %v48
  %v65 = vunpack.c.l.b16 %v49
  %v66 = vunpack.c.h.b16 %v49
  %v67 = vunpack.c.l.b16 %v50
  %v68 = vunpack.c.h.b16 %v50
  %v69 = vunpack.c.l.b16 %v51
  %v70 = vunpack.c.h.b16 %v51
  %v71 = vunpack.c.l.b16 %v52
  %v72 = vunpack.c.h.b16 %v52
  %v73 = vunpack.c.l.b16 %v53
  %v74 = vunpack.c.h.b16 %v53
  %v75 = vpack.c.b16 %v63, %v61
  %v76 = vpack.c.b16 %v64, %v62
  %v77 = vpack.c.b16 %v67, %v65
  %v78 = vpack.c.b16 %v68, %v66
  %v79 = vpack.c.b16 %v71, %v69
  %v80 = vpack.c.b16 %v72, %v70
  %v81 = vpack.c.b16 %v73, %v73
  %v82 = vpack.c.b16 %v74, %v74
  %v123 = vunpack.c.l.b16 %v15
  %v124 = vunpack.c.l.b16 %v16
  %v125 = vunpack.c.l.b16 %v17
  %v126 = vunpack.c.l.b16 %v18
  %v127 = vunpack.c.l.b16 %v19
  %v128 = vunpack.c.l.b16 %v20
  %v129 = vunpack.c.l.b16 %v21
  %v130 = vunpack.c.l.b16 %v22
  %v131 = vunpack.c.l.b16 %v23
  %v132 = vunpack.c.l.b16 %v24
  %v133 = vunpack.c.l.b16 %v25
  %v134 = vunpack.c.l.b16 %v26
  %v135 = vunpack.c.l.b16 %v27
  %v136 = vunpack.c.l.b16 %v28
  %v137 = vunpack.c.l.b16 %v29
  %v138 = vunpack.c.l.b16 %v30
  %v139 = vunpack.c.l.b16 %v31
  %v140 = vunpack.c.l.b16 %v32
  %v141 = vunpack.c.l.b16 %v33
  %v142 = vunpack.c.l.b16 %v34
  %v143 = vunpack.c.l.b16 %v35
  %v144 = vunpack.c.l.b16 %v36
  %v145 = vunpack.c.l.b16 %v37
  %v146 = vunpack.c.l.b16 %v38
  %v147 = vunpack.c.l.b16 %v39
  %v148 = vunpack.c.l.b16 %v40
  %v149 = vunpack.c.l.b16 %v41
  %v150 = vunpack.c.l.b16 %v42
  %v151 = vunpack.c.l.b16 %v43
  %v152 = vunpack.c.l.b16 %v44
  %v153 = vunpack.c.l.b16 %v45
  %v154 = vunpack.c.l.b16 %v46
  %v155 = vpack.c.b16 %v124, %v123
  %v156 = vpack.c.b16 %v126, %v125
  %v157 = vpack.c.b16 %v128, %v127
  %v158 = vpack.c.b16 %v130, %v129
  %v159 = vpack.c.b16 %v132, %v131
  %v160 = vpack.c.b16 %v134, %v133
  %v161 = vpack.c.b16 %v136, %v135
  %v162 = vpack.c.b16 %v138, %v137
  %v163 = vpack.c.b16 %v140, %v139
  %v164 = vpack.c.b16 %v142, %v141
  %v165 = vpack.c.b16 %v144, %v143
  %v166 = vpack.c.b16 %v146, %v145
  %v167 = vpack.c.b16 %v148, %v147
  %v168 = vpack.c.b16 %v150, %v149
  %v169 = vpack.c.b16 %v152, %v151
  %v170 = vpack.c.b16 %v154, %v153
  %187 = vmatprep.subr.bf16.mxu0 0
  %188 = vmatpush1.bf16.msra.mxu0 %v155
  %189 = vmatprep.subr.bf16.mxu0 0
  %190 = vmatpush1.bf16.msra.mxu0 %v156
  %191 = vmatprep.subr.bf16.mxu0 0
  %192 = vmatpush1.bf16.msra.mxu0 %v157
  %193 = vmatprep.subr.bf16.mxu0 0
  %194 = vmatpush1.bf16.msra.mxu0 %v158
  %195 = vmatprep.subr.bf16.mxu0 0
  %196 = vmatpush1.bf16.msra.mxu0 %v159
  %197 = vmatprep.subr.bf16.mxu0 0
  %198 = vmatpush1.bf16.msra.mxu0 %v160
  %199 = vmatprep.subr.bf16.mxu0 0
  %200 = vmatpush1.bf16.msra.mxu0 %v161
  %201 = vmatprep.subr.bf16.mxu0 0
  %202 = vmatpush1.bf16.msra.mxu0 %v162
  %203 = vmatprep.subr.bf16.mxu0 0
  %204 = vmatpush1.bf16.msra.mxu0 %v163
  %205 = vmatprep.subr.bf16.mxu0 0
  %206 = vmatpush1.bf16.msra.mxu0 %v164
  %207 = vmatprep.subr.bf16.mxu0 0
  %208 = vmatpush1.bf16.msra.mxu0 %v165
  %209 = vmatprep.subr.bf16.mxu0 0
  %210 = vmatpush1.bf16.msra.mxu0 %v166
  %211 = vmatprep.subr.bf16.mxu0 0
  %212 = vmatpush1.bf16.msra.mxu0 %v167
  %213 = vmatprep.subr.bf16.mxu0 0
  %214 = vmatpush1.bf16.msra.mxu0 %v168
  %215 = vmatprep.subr.bf16.mxu0 0
  %216 = vmatpush1.bf16.msra.mxu0 %v169
  %217 = vmatprep.subr.bf16.mxu0 0
  %218 = vmatpush1.bf16.msra.mxu0 %v170
  %219 = vmatprep.mubr.bf16.mxu0 %v76
  %220 = vmatmul.mubr.bf16.gmra.mrb[0].mxu0 %v75
  %v221 = vpop.f32.mrb[0].mxu0
  %v222 = vadd.f32 0.0, %v221
  %v223 = vpop.f32.mrb[0].mxu0
  %v224 = vpop.f32.mrb[0].mxu0
  %v225 = vadd.f32 0.0, %v224
  %v226 = vpop.f32.mrb[0].mxu0
  %227 = vmatprep.mubr.bf16.mxu0 %v78
  %228 = vmatmul.mubr.bf16.gmra.mrb[0].mxu0 %v77
  %v229 = vpop.f32.mrb[0].mxu0
  %v230 = vadd.f32 0.0, %v229
  %v231 = vpop.f32.mrb[0].mxu0
  %v232 = vpop.f32.mrb[0].mxu0
  %v233 = vadd.f32 0.0, %v232
  %v234 = vpop.f32.mrb[0].mxu0
  %235 = vmatprep.mubr.bf16.mxu0 %v80
  %236 = vmatmul.mubr.bf16.gmra.mrb[0].mxu0 %v79
  %v237 = vpop.f32.mrb[0].mxu0
  %v238 = vadd.f32 0.0, %v237
  %v239 = vpop.f32.mrb[0].mxu0
  %v240 = vpop.f32.mrb[0].mxu0
  %v241 = vadd.f32 0.0, %v240
  %v242 = vpop.f32.mrb[0].mxu0
  %243 = vmatprep.mubr.bf16.mxu0 %v82
  %244 = vmatmul.mubr.bf16.gmra.mrb[0].mxu0 %v81
  %v245 = vpop.f32.mrb[0].mxu0
  %v246 = vadd.f32 0.0, %v245
  %v247 = vpop.f32.mrb[0].mxu0
  %v248 = vpop.f32.mrb[0].mxu0
  %v249 = vpop.f32.mrb[0].mxu0
  %250 = vdwg.mxu0
  %s251 = scalar_lea.vmem %s0, 56
  %v252 = vld [vmem:[%s251] sm:$0xff]
  %v253 = vld [vmem:[%s251 + $0x8] sm:$0xff]
  %v254 = vld [vmem:[%s251 + $0x10] sm:$0xff]
  %v255 = vld [vmem:[%s251 + $0x18] sm:$0xff]
  %v256 = vld [vmem:[%s251 + $0x20] sm:$0xff]
  %v257 = vld [vmem:[%s251 + $0x28] sm:$0xff]
  %v258 = vld [vmem:[%s251 + $0x30] sm:$0xff]
  %v266 = vunpack.c.l.b16 %v252
  %v267 = vunpack.c.h.b16 %v252
  %v268 = vunpack.c.l.b16 %v253
  %v269 = vunpack.c.h.b16 %v253
  %v270 = vunpack.c.l.b16 %v254
  %v271 = vunpack.c.h.b16 %v254
  %v272 = vunpack.c.l.b16 %v255
  %v273 = vunpack.c.h.b16 %v255
  %v274 = vunpack.c.l.b16 %v256
  %v275 = vunpack.c.h.b16 %v256
  %v276 = vunpack.c.l.b16 %v257
  %v277 = vunpack.c.h.b16 %v257
  %v278 = vunpack.c.l.b16 %v258
  %v279 = vunpack.c.h.b16 %v258
  %v280 = vpack.c.b16 %v268, %v266
  %v281 = vpack.c.b16 %v269, %v267
  %v282 = vpack.c.b16 %v272, %v270
  %v283 = vpack.c.b16 %v273, %v271
  %v284 = vpack.c.b16 %v276, %v274
  %v285 = vpack.c.b16 %v277, %v275
  %v286 = vpack.c.b16 %v278, %v278
  %v287 = vpack.c.b16 %v279, %v279
  %296 = vmatprep.subr.bf16.mxu0 0
  %297 = vmatpush1.bf16.msra.mxu0 %v155
  %298 = vmatprep.subr.bf16.mxu0 0
  %299 = vmatpush1.bf16.msra.mxu0 %v156
  %300 = vmatprep.subr.bf16.mxu0 0
  %301 = vmatpush1.bf16.msra.mxu0 %v157
  %302 = vmatprep.subr.bf16.mxu0 0
  %303 = vmatpush1.bf16.msra.mxu0 %v158
  %304 = vmatprep.subr.bf16.mxu0 0
  %305 = vmatpush1.bf16.msra.mxu0 %v159
  %306 = vmatprep.subr.bf16.mxu0 0
  %307 = vmatpush1.bf16.msra.mxu0 %v160
  %308 = vmatprep.subr.bf16.mxu0 0
  %309 = vmatpush1.bf16.msra.mxu0 %v161
  %310 = vmatprep.subr.bf16.mxu0 0
  %311 = vmatpush1.bf16.msra.mxu0 %v162
  %312 = vmatprep.subr.bf16.mxu0 0
  %313 = vmatpush1.bf16.msra.mxu0 %v163
  %314 = vmatprep.subr.bf16.mxu0 0
  %315 = vmatpush1.bf16.msra.mxu0 %v164
  %316 = vmatprep.subr.bf16.mxu0 0
  %317 = vmatpush1.bf16.msra.mxu0 %v165
  %318 = vmatprep.subr.bf16.mxu0 0
  %319 = vmatpush1.bf16.msra.mxu0 %v166
  %320 = vmatprep.subr.bf16.mxu0 0
  %321 = vmatpush1.bf16.msra.mxu0 %v167
  %322 = vmatprep.subr.bf16.mxu0 0
  %323 = vmatpush1.bf16.msra.mxu0 %v168
  %324 = vmatprep.subr.bf16.mxu0 0
  %325 = vmatpush1.bf16.msra.mxu0 %v169
  %326 = vmatprep.subr.bf16.mxu0 0
  %327 = vmatpush1.bf16.msra.mxu0 %v170
  %328 = vmatprep.mubr.bf16.mxu0 %v281
  %329 = vmatmul.mubr.bf16.gmra.mrb[0].mxu0 %v280
  %v330 = vpop.f32.mrb[0].mxu0
  %v331 = vadd.f32 0.0, %v330
  %v332 = vpop.f32.mrb[0].mxu0
  %v333 = vpop.f32.mrb[0].mxu0
  %v334 = vadd.f32 0.0, %v333
  %v335 = vpop.f32.mrb[0].mxu0
  %336 = vmatprep.mubr.bf16.mxu0 %v283
  %337 = vmatmul.mubr.bf16.gmra.mrb[0].mxu0 %v282
  %v338 = vpop.f32.mrb[0].mxu0
  %v339 = vadd.f32 0.0, %v338
  %v340 = vpop.f32.mrb[0].mxu0
  %v341 = vpop.f32.mrb[0].mxu0
  %v342 = vadd.f32 0.0, %v341
  %v343 = vpop.f32.mrb[0].mxu0
  %344 = vmatprep.mubr.bf16.mxu0 %v285
  %345 = vmatmul.mubr.bf16.gmra.mrb[0].mxu0 %v284
  %v346 = vpop.f32.mrb[0].mxu0
  %v347 = vadd.f32 0.0, %v346
  %v348 = vpop.f32.mrb[0].mxu0
  %v349 = vpop.f32.mrb[0].mxu0
  %v350 = vadd.f32 0.0, %v349
  %v351 = vpop.f32.mrb[0].mxu0
  %352 = vmatprep.mubr.bf16.mxu0 %v287
  %353 = vmatmul.mubr.bf16.gmra.mrb[0].mxu0 %v286
  %v354 = vpop.f32.mrb[0].mxu0
  %v355 = vadd.f32 0.0, %v354
  %v356 = vpop.f32.mrb[0].mxu0
  %v357 = vpop.f32.mrb[0].mxu0
  %v358 = vpop.f32.mrb[0].mxu0
  %359 = vdwg.mxu0
  %v360 = vmax.f32 %v222, %v331
  %v361 = vmax.f32 %v225, %v334
  %v362 = vmax.f32 %v230, %v339
  %v363 = vmax.f32 %v233, %v342
  %v364 = vmax.f32 %v238, %v347
  %v365 = vmax.f32 %v241, %v350
  %v366 = vmax.f32 %v246, %v355
  %s367 = scalar_lea.vmem %s0, 112
  %v368 = vld [vmem:[%s367] sm:$0xff]
  %v369 = vld [vmem:[%s367 + $0x8] sm:$0xff]
  %v370 = vld [vmem:[%s367 + $0x10] sm:$0xff]
  %v371 = vld [vmem:[%s367 + $0x18] sm:$0xff]
  %v372 = vld [vmem:[%s367 + $0x20] sm:$0xff]
  %v373 = vld [vmem:[%s367 + $0x28] sm:$0xff]
  %v374 = vld [vmem:[%s367 + $0x30] sm:$0xff]
  %v382 = vunpack.c.l.b16 %v368
  %v383 = vunpack.c.h.b16 %v368
  %v384 = vunpack.c.l.b16 %v369
  %v385 = vunpack.c.h.b16 %v369
  %v386 = vunpack.c.l.b16 %v370
  %v387 = vunpack.c.h.b16 %v370
  %v388 = vunpack.c.l.b16 %v371
  %v389 = vunpack.c.h.b16 %v371
  %v390 = vunpack.c.l.b16 %v372
  %v391 = vunpack.c.h.b16 %v372
  %v392 = vunpack.c.l.b16 %v373
  %v393 = vunpack.c.h.b16 %v373
  %v394 = vunpack.c.l.b16 %v374
  %v395 = vunpack.c.h.b16 %v374
  %v396 = vpack.c.b16 %v384, %v382
  %v397 = vpack.c.b16 %v385, %v383
  %v398 = vpack.c.b16 %v388, %v386
  %v399 = vpack.c.b16 %v389, %v387
  %v400 = vpack.c.b16 %v392, %v390
  %v401 = vpack.c.b16 %v393, %v391
  %v402 = vpack.c.b16 %v394, %v394
  %v403 = vpack.c.b16 %v395, %v395
  %412 = vmatprep.subr.bf16.mxu0 0
  %413 = vmatpush1.bf16.msra.mxu0 %v155
  %414 = vmatprep.subr.bf16.mxu0 0
  %415 = vmatpush1.bf16.msra.mxu0 %v156
  %416 = vmatprep.subr.bf16.mxu0 0
  %417 = vmatpush1.bf16.msra.mxu0 %v157
  %418 = vmatprep.subr.bf16.mxu0 0
  %419 = vmatpush1.bf16.msra.mxu0 %v158
  %420 = vmatprep.subr.bf16.mxu0 0
  %421 = vmatpush1.bf16.msra.mxu0 %v159
  %422 = vmatprep.subr.bf16.mxu0 0
  %423 = vmatpush1.bf16.msra.mxu0 %v160
  %424 = vmatprep.subr.bf16.mxu0 0
  %425 = vmatpush1.bf16.msra.mxu0 %v161
  %426 = vmatprep.subr.bf16.mxu0 0
  %427 = vmatpush1.bf16.msra.mxu0 %v162
  %428 = vmatprep.subr.bf16.mxu0 0
  %429 = vmatpush1.bf16.msra.mxu0 %v163
  %430 = vmatprep.subr.bf16.mxu0 0
  %431 = vmatpush1.bf16.msra.mxu0 %v164
  %432 = vmatprep.subr.bf16.mxu0 0
  %433 = vmatpush1.bf16.msra.mxu0 %v165
  %434 = vmatprep.subr.bf16.mxu0 0
  %435 = vmatpush1.bf16.msra.mxu0 %v166
  %436 = vmatprep.subr.bf16.mxu0 0
  %437 = vmatpush1.bf16.msra.mxu0 %v167
  %438 = vmatprep.subr.bf16.mxu0 0
  %439 = vmatpush1.bf16.msra.mxu0 %v168
  %440 = vmatprep.subr.bf16.mxu0 0
  %441 = vmatpush1.bf16.msra.mxu0 %v169
  %442 = vmatprep.subr.bf16.mxu0 0
  %443 = vmatpush1.bf16.msra.mxu0 %v170
  %444 = vmatprep.mubr.bf16.mxu0 %v397
  %445 = vmatmul.mubr.bf16.gmra.mrb[0].mxu0 %v396
  %v446 = vpop.f32.mrb[0].mxu0
  %v447 = vadd.f32 0.0, %v446
  %v448 = vpop.f32.mrb[0].mxu0
  %v449 = vpop.f32.mrb[0].mxu0
  %v450 = vadd.f32 0.0, %v449
  %v451 = vpop.f32.mrb[0].mxu0
  %452 = vmatprep.mubr.bf16.mxu0 %v399
  %453 = vmatmul.mubr.bf16.gmra.mrb[0].mxu0 %v398
  %v454 = vpop.f32.mrb[0].mxu0
  %v455 = vadd.f32 0.0, %v454
  %v456 = vpop.f32.mrb[0].mxu0
  %v457 = vpop.f32.mrb[0].mxu0
  %v458 = vadd.f32 0.0, %v457
  %v459 = vpop.f32.mrb[0].mxu0
  %460 = vmatprep.mubr.bf16.mxu0 %v401
  %461 = vmatmul.mubr.bf16.gmra.mrb[0].mxu0 %v400
  %v462 = vpop.f32.mrb[0].mxu0
  %v463 = vadd.f32 0.0, %v462
  %v464 = vpop.f32.mrb[0].mxu0
  %v465 = vpop.f32.mrb[0].mxu0
  %v466 = vadd.f32 0.0, %v465
  %v467 = vpop.f32.mrb[0].mxu0
  %468 = vmatprep.mubr.bf16.mxu0 %v403
  %469 = vmatmul.mubr.bf16.gmra.mrb[0].mxu0 %v402
  %v470 = vpop.f32.mrb[0].mxu0
  %v471 = vadd.f32 0.0, %v470
  %v472 = vpop.f32.mrb[0].mxu0
  %v473 = vpop.f32.mrb[0].mxu0
  %v474 = vpop.f32.mrb[0].mxu0
  %475 = vdwg.mxu0
  %v476 = vmax.f32 %v360, %v447
  %v477 = vmax.f32 %v361, %v450
  %v478 = vmax.f32 %v362, %v455
  %v479 = vmax.f32 %v363, %v458
  %v480 = vmax.f32 %v364, %v463
  %v481 = vmax.f32 %v365, %v466
  %v482 = vmax.f32 %v366, %v471
  %s483 = scalar_lea.vmem %s0, 168
  %v484 = vld [vmem:[%s483] sm:$0xff]
  %v485 = vld [vmem:[%s483 + $0x8] sm:$0xff]
  %v486 = vld [vmem:[%s483 + $0x10] sm:$0xff]
  %v487 = vld [vmem:[%s483 + $0x18] sm:$0xff]
  %v488 = vld [vmem:[%s483 + $0x20] sm:$0xff]
  %v489 = vld [vmem:[%s483 + $0x28] sm:$0xff]
  %v490 = vld [vmem:[%s483 + $0x30] sm:$0xff]
  %v498 = vunpack.c.l.b16 %v484
  %v499 = vunpack.c.h.b16 %v484
  %v500 = vunpack.c.l.b16 %v485
  %v501 = vunpack.c.h.b16 %v485
  %v502 = vunpack.c.l.b16 %v486
  %v503 = vunpack.c.h.b16 %v486
  %v504 = vunpack.c.l.b16 %v487
  %v505 = vunpack.c.h.b16 %v487
  %v506 = vunpack.c.l.b16 %v488
  %v507 = vunpack.c.h.b16 %v488
  %v508 = vunpack.c.l.b16 %v489
  %v509 = vunpack.c.h.b16 %v489
  %v510 = vunpack.c.l.b16 %v490
  %v511 = vunpack.c.h.b16 %v490
  %v512 = vpack.c.b16 %v500, %v498
  %v513 = vpack.c.b16 %v501, %v499
  %v514 = vpack.c.b16 %v504, %v502
  %v515 = vpack.c.b16 %v505, %v503
  %v516 = vpack.c.b16 %v508, %v506
  %v517 = vpack.c.b16 %v509, %v507
  %v518 = vpack.c.b16 %v510, %v510
  %v519 = vpack.c.b16 %v511, %v511
  %528 = vmatprep.subr.bf16.mxu0 0
  %529 = vmatpush1.bf16.msra.mxu0 %v155
  %530 = vmatprep.subr.bf16.mxu0 0
  %531 = vmatpush1.bf16.msra.mxu0 %v156
  %532 = vmatprep.subr.bf16.mxu0 0
  %533 = vmatpush1.bf16.msra.mxu0 %v157
  %534 = vmatprep.subr.bf16.mxu0 0
  %535 = vmatpush1.bf16.msra.mxu0 %v158
  %536 = vmatprep.subr.bf16.mxu0 0
  %537 = vmatpush1.bf16.msra.mxu0 %v159
  %538 = vmatprep.subr.bf16.mxu0 0
  %539 = vmatpush1.bf16.msra.mxu0 %v160
  %540 = vmatprep.subr.bf16.mxu0 0
  %541 = vmatpush1.bf16.msra.mxu0 %v161
  %542 = vmatprep.subr.bf16.mxu0 0
  %543 = vmatpush1.bf16.msra.mxu0 %v162
  %544 = vmatprep.subr.bf16.mxu0 0
  %545 = vmatpush1.bf16.msra.mxu0 %v163
  %546 = vmatprep.subr.bf16.mxu0 0
  %547 = vmatpush1.bf16.msra.mxu0 %v164
  %548 = vmatprep.subr.bf16.mxu0 0
  %549 = vmatpush1.bf16.msra.mxu0 %v165
  %550 = vmatprep.subr.bf16.mxu0 0
  %551 = vmatpush1.bf16.msra.mxu0 %v166
  %552 = vmatprep.subr.bf16.mxu0 0
  %553 = vmatpush1.bf16.msra.mxu0 %v167
  %554 = vmatprep.subr.bf16.mxu0 0
  %555 = vmatpush1.bf16.msra.mxu0 %v168
  %556 = vmatprep.subr.bf16.mxu0 0
  %557 = vmatpush1.bf16.msra.mxu0 %v169
  %558 = vmatprep.subr.bf16.mxu0 0
  %559 = vmatpush1.bf16.msra.mxu0 %v170
  %560 = vmatprep.mubr.bf16.mxu0 %v513
  %561 = vmatmul.mubr.bf16.gmra.mrb[0].mxu0 %v512
  %v562 = vpop.f32.mrb[0].mxu0
  %v563 = vadd.f32 0.0, %v562
  %v564 = vpop.f32.mrb[0].mxu0
  %v565 = vpop.f32.mrb[0].mxu0
  %v566 = vadd.f32 0.0, %v565
  %v567 = vpop.f32.mrb[0].mxu0
  %568 = vmatprep.mubr.bf16.mxu0 %v515
  %569 = vmatmul.mubr.bf16.gmra.mrb[0].mxu0 %v514
  %v570 = vpop.f32.mrb[0].mxu0
  %v571 = vadd.f32 0.0, %v570
  %v572 = vpop.f32.mrb[0].mxu0
  %v573 = vpop.f32.mrb[0].mxu0
  %v574 = vadd.f32 0.0, %v573
  %v575 = vpop.f32.mrb[0].mxu0
  %576 = vmatprep.mubr.bf16.mxu0 %v517
  %577 = vmatmul.mubr.bf16.gmra.mrb[0].mxu0 %v516
  %v578 = vpop.f32.mrb[0].mxu0
  %v579 = vadd.f32 0.0, %v578
  %v580 = vpop.f32.mrb[0].mxu0
  %v581 = vpop.f32.mrb[0].mxu0
  %v582 = vadd.f32 0.0, %v581
  %v583 = vpop.f32.mrb[0].mxu0
  %584 = vmatprep.mubr.bf16.mxu0 %v519
  %585 = vmatmul.mubr.bf16.gmra.mrb[0].mxu0 %v518
  %v586 = vpop.f32.mrb[0].mxu0
  %v587 = vadd.f32 0.0, %v586
  %v588 = vpop.f32.mrb[0].mxu0
  %v589 = vpop.f32.mrb[0].mxu0
  %v590 = vpop.f32.mrb[0].mxu0
  %591 = vdwg.mxu0
  %v592 = vmax.f32 %v476, %v563
  %v593 = vmax.f32 %v477, %v566
  %v594 = vmax.f32 %v478, %v571
  %v595 = vmax.f32 %v479, %v574
  %v596 = vmax.f32 %v480, %v579
  %v597 = vmax.f32 %v481, %v582
  %v598 = vmax.f32 %v482, %v587
  %v599 = vld [vmem:[%s2] sm:$0x1]
  %v601 = vlaneseq
  %v602 = vshrl.u32 %v601, 7
  %v603 = vsub.s32 0, %v602
  %v604 = vrot.slane %v599, %v603
  %v606 = vadd.f32 %v592, %v604
  %v607 = vadd.f32 %v593, %v604
  %v608 = vadd.f32 %v594, %v604
  %v609 = vadd.f32 %v595, %v604
  %v610 = vadd.f32 %v596, %v604
  %v611 = vadd.f32 %v597, %v604
  %v612 = vadd.f32 %v598, %v604
  %v613 = vmax.f32 %v606, 0.0
  %v614 = vmax.f32 %v607, 0.0
  %v615 = vmax.f32 %v608, 0.0
  %v616 = vmax.f32 %v609, 0.0
  %v617 = vmax.f32 %v610, 0.0
  %v618 = vmax.f32 %v611, 0.0
  %v619 = vmax.f32 %v612, 0.0
  %v620 = vpack.c.bf16 %v614, %v613
  %v621 = vpack.c.bf16 %v616, %v615
  %v622 = vpack.c.bf16 %v618, %v617
  %v623 = vpack.c.bf16 %v619, %v619
  %v628 = vunpack.c.l.b16 %v620
  %v629 = vunpack.c.h.b16 %v620
  %v630 = vunpack.c.l.b16 %v621
  %v631 = vunpack.c.h.b16 %v621
  %v632 = vunpack.c.l.b16 %v622
  %v633 = vunpack.c.h.b16 %v622
  %v634 = vunpack.c.l.b16 %v623
  %v635 = vpack.c.b16 %v628, %v628
  %v636 = vpack.c.b16 %v629, %v629
  %v637 = vpack.c.b16 %v630, %v630
  %v638 = vpack.c.b16 %v631, %v631
  %v639 = vpack.c.b16 %v632, %v632
  %v640 = vpack.c.b16 %v633, %v633
  %v641 = vpack.c.b16 %v634, %v634
  %649 = vst [vmem:[%s3] sm:$0xf] %v635
  %650 = vst [vmem:[%s3 + $0x4] sm:$0xf] %v636
  %651 = vst [vmem:[%s3 + $0x8] sm:$0xf] %v637
  %652 = vst [vmem:[%s3 + $0xc] sm:$0xf] %v638
  %653 = vst [vmem:[%s3 + $0x10] sm:$0xf] %v639
  %654 = vst [vmem:[%s3 + $0x14] sm:$0xf] %v640
  %655 = vst [vmem:[%s3 + $0x18] sm:$0xf] %v641
  // Predicated region
  $region14: #{net_forward.4} parent=0 // pred_check
    _
  $region15: #{net_forward.4} parent=0 // pred_check_branch
    %657 = sbr.rel (0) target = $region17
  $region16: #{net_forward.4} parent=0 // pred_region
    _
  $region17: #{net_forward.4} parent=0 // pred_fallthru
    _
  // Predicated region
  $region18: #{net_forward.4} parent=0 // pred_check
    _
  $region19: #{net_forward.4} parent=0 // pred_check_branch
    %659 = sbr.rel (0) target = $region21
  $region20: #{net_forward.4} parent=0 // pred_region
    _
  $region21: #{net_forward.4} parent=0 // pred_fallthru
    _

// kernel: net_forward.5
$region0: #{net_forward.5}
  #allocation0 [shape = 'u32[]', space=smem, size = 0x4, offset = 0x4, fixed_abs, tag = 'smem constant byte address 0x4 - core index']
  #allocation1 [shape = 'u32[144,128]{1,0:T(1,128)}', space=vmem, size = 0x12000, scoped, tag = 'internal scratch']
  %s0 = inlined_call_operand.vmem [shape: bf16[8,512], index: 0, kind: input, shape index: {}]
  %s1 = inlined_call_operand.vmem [shape: bf16[512,128], index: 1, kind: input, shape index: {}]
  %s2 = inlined_call_operand.vmem [shape: f32[1,128], index: 2, kind: input, shape index: {}]
  %s3 = inlined_call_operand.vmem [shape: bf16[128,128], index: 3, kind: input, shape index: {}]
  %s4 = inlined_call_operand.vmem [shape: f32[1,128], index: 4, kind: input, shape index: {}]
  %s5 = inlined_call_operand.vmem [shape: bf16[128,128], index: 5, kind: input, shape index: {}]
  %s6 = inlined_call_operand.vmem [shape: f32[1,128], index: 6, kind: input, shape index: {}]
  %s7 = inlined_call_operand.vmem [shape: f32[8,128], index: 7, kind: output, shape index: {}]
  %s8 = sld [smem:[#allocation0]]
  $region38: #{net_forward.5} parent=0
    _
  %s10 = ssub.s32 1, %s8
  %s11 = scalar_select 0, %s10, %s8
  // Predicated region
  $region2: #{net_forward.5} parent=0 // pred_check
    _
  $region3: #{net_forward.5} parent=0 // pred_check_branch
    %13 = sbr.rel (0) target = $region5
  $region4: #{net_forward.5} parent=0 // pred_region
    _
  $region5: #{net_forward.5} parent=0 // pred_fallthru
    _
  // Predicated region
  $region6: #{net_forward.5} parent=0 // pred_check
    _
  $region7: #{net_forward.5} parent=0 // pred_check_branch
    %15 = sbr.rel (0) target = $region9
  $region8: #{net_forward.5} parent=0 // pred_region
    _
  $region9: #{net_forward.5} parent=0 // pred_fallthru
    _
  // Predicated region
  $region10: #{net_forward.5} parent=0 // pred_check
    _
  $region11: #{net_forward.5} parent=0 // pred_check_branch
    %17 = sbr.rel (0) target = $region13
  $region12: #{net_forward.5} parent=0 // pred_region
    _
  $region13: #{net_forward.5} parent=0 // pred_fallthru
    _
  // Predicated region
  $region14: #{net_forward.5} parent=0 // pred_check
    _
  $region15: #{net_forward.5} parent=0 // pred_check_branch
    %19 = sbr.rel (0) target = $region17
  $region16: #{net_forward.5} parent=0 // pred_region
    _
  $region17: #{net_forward.5} parent=0 // pred_fallthru
    _
  // Predicated region
  $region18: #{net_forward.5} parent=0 // pred_check
    _
  $region19: #{net_forward.5} parent=0 // pred_check_branch
    %21 = sbr.rel (0) target = $region21
  $region20: #{net_forward.5} parent=0 // pred_region
    _
  $region21: #{net_forward.5} parent=0 // pred_fallthru
    _
  // Predicated region
  $region22: #{net_forward.5} parent=0 // pred_check
    _
  $region23: #{net_forward.5} parent=0 // pred_check_branch
    %23 = sbr.rel (0) target = $region25
  $region24: #{net_forward.5} parent=0 // pred_region
    _
  $region25: #{net_forward.5} parent=0 // pred_fallthru
    _
  // Predicated region
  $region26: #{net_forward.5} parent=0 // pred_check
    _
  $region27: #{net_forward.5} parent=0 // pred_check_branch
    %25 = sbr.rel (0) target = $region29
  $region28: #{net_forward.5} parent=0 // pred_region
    _
  $region29: #{net_forward.5} parent=0 // pred_fallthru
    _
  %v27 = vld [vmem:[%s0] sm:$0xff]
  %v28 = vld [vmem:[%s0 + $0x8] sm:$0xff]
  %v29 = vld [vmem:[%s1] sm:$0xf]
  %v30 = vld [vmem:[%s1 + $0x4] sm:$0xf]
  %v31 = vld [vmem:[%s1 + $0x8] sm:$0xf]
  %v32 = vld [vmem:[%s1 + $0xc] sm:$0xf]
  %v33 = vld [vmem:[%s1 + $0x10] sm:$0xf]
  %v34 = vld [vmem:[%s1 + $0x14] sm:$0xf]
  %v35 = vld [vmem:[%s1 + $0x18] sm:$0xf]
  %v36 = vld [vmem:[%s1 + $0x1c] sm:$0xf]
  %v37 = vld [vmem:[%s1 + $0x20] sm:$0xf]
  %v38 = vld [vmem:[%s1 + $0x24] sm:$0xf]
  %v39 = vld [vmem:[%s1 + $0x28] sm:$0xf]
  %v40 = vld [vmem:[%s1 + $0x2c] sm:$0xf]
  %v41 = vld [vmem:[%s1 + $0x30] sm:$0xf]
  %v42 = vld [vmem:[%s1 + $0x34] sm:$0xf]
  %v43 = vld [vmem:[%s1 + $0x38] sm:$0xf]
  %v44 = vld [vmem:[%s1 + $0x3c] sm:$0xf]
  %v45 = vld [vmem:[%s1 + $0x40] sm:$0xf]
  %v46 = vld [vmem:[%s1 + $0x44] sm:$0xf]
  %v47 = vld [vmem:[%s1 + $0x48] sm:$0xf]
  %v48 = vld [vmem:[%s1 + $0x4c] sm:$0xf]
  %v49 = vld [vmem:[%s1 + $0x50] sm:$0xf]
  %v50 = vld [vmem:[%s1 + $0x54] sm:$0xf]
  %v51 = vld [vmem:[%s1 + $0x58] sm:$0xf]
  %v52 = vld [vmem:[%s1 + $0x5c] sm:$0xf]
  %v53 = vld [vmem:[%s1 + $0x60] sm:$0xf]
  %v54 = vld [vmem:[%s1 + $0x64] sm:$0xf]
  %v55 = vld [vmem:[%s1 + $0x68] sm:$0xf]
  %v56 = vld [vmem:[%s1 + $0x6c] sm:$0xf]
  %v57 = vld [vmem:[%s1 + $0x70] sm:$0xf]
  %v58 = vld [vmem:[%s1 + $0x74] sm:$0xf]
  %v59 = vld [vmem:[%s1 + $0x78] sm:$0xf]
  %v60 = vld [vmem:[%s1 + $0x7c] sm:$0xf]
  %v61 = vld [vmem:[%s1 + $0x80] sm:$0xf]
  %v62 = vld [vmem:[%s1 + $0x84] sm:$0xf]
  %v63 = vld [vmem:[%s1 + $0x88] sm:$0xf]
  %v64 = vld [vmem:[%s1 + $0x8c] sm:$0xf]
  %v65 = vld [vmem:[%s1 + $0x90] sm:$0xf]
  %v66 = vld [vmem:[%s1 + $0x94] sm:$0xf]
  %v67 = vld [vmem:[%s1 + $0x98] sm:$0xf]
  %v68 = vld [vmem:[%s1 + $0x9c] sm:$0xf]
  %v69 = vld [vmem:[%s1 + $0xa0] sm:$0xf]
  %v70 = vld [vmem:[%s1 + $0xa4] sm:$0xf]
  %v71 = vld [vmem:[%s1 + $0xa8] sm:$0xf]
  %v72 = vld [vmem:[%s1 + $0xac] sm:$0xf]
  %v73 = vld [vmem:[%s1 + $0xb0] sm:$0xf]
  %v74 = vld [vmem:[%s1 + $0xb4] sm:$0xf]
  %v75 = vld [vmem:[%s1 + $0xb8] sm:$0xf]
  %v76 = vld [vmem:[%s1 + $0xbc] sm:$0xf]
  %v77 = vld [vmem:[%s1 + $0xc0] sm:$0xf]
  %v78 = vld [vmem:[%s1 + $0xc4] sm:$0xf]
  %v79 = vld [vmem:[%s1 + $0xc8] sm:$0xf]
  %v80 = vld [vmem:[%s1 + $0xcc] sm:$0xf]
  %v81 = vld [vmem:[%s1 + $0xd0] sm:$0xf]
  %v82 = vld [vmem:[%s1 + $0xd4] sm:$0xf]
  %v83 = vld [vmem:[%s1 + $0xd8] sm:$0xf]
  %v84 = vld [vmem:[%s1 + $0xdc] sm:$0xf]
  %v85 = vld [vmem:[%s1 + $0xe0] sm:$0xf]
  %v86 = vld [vmem:[%s1 + $0xe4] sm:$0xf]
  %v87 = vld [vmem:[%s1 + $0xe8] sm:$0xf]
  %v88 = vld [vmem:[%s1 + $0xec] sm:$0xf]
  %v89 = vld [vmem:[%s1 + $0xf0] sm:$0xf]
  %v90 = vld [vmem:[%s1 + $0xf4] sm:$0xf]
  %v91 = vld [vmem:[%s1 + $0xf8] sm:$0xf]
  %v92 = vld [vmem:[%s1 + $0xfc] sm:$0xf]
  %v93 = vld [vmem:[%s2] sm:$0x1]
  %v95 = vlaneseq
  %v96 = vshrl.u32 %v95, 7
  %v97 = vsub.s32 0, %v96
  %v98 = vrot.slane %v93, %v97
  %v102 = vunpack.c.l.b16 %v27
  %v103 = vunpack.c.h.b16 %v27
  %v104 = vunpack.c.l.b16 %v28
  %v105 = vunpack.c.h.b16 %v28
  %v106 = vpack.c.b16 %v102, %v102
  %v107 = vpack.c.b16 %v103, %v103
  %v108 = vpack.c.b16 %v104, %v104
  %v109 = vpack.c.b16 %v105, %v105
  %v178 = vunpack.c.l.b16 %v29
  %v179 = vunpack.c.l.b16 %v30
  %v180 = vunpack.c.l.b16 %v31
  %v181 = vunpack.c.l.b16 %v32
  %v182 = vunpack.c.l.b16 %v33
  %v183 = vunpack.c.l.b16 %v34
  %v184 = vunpack.c.l.b16 %v35
  %v185 = vunpack.c.l.b16 %v36
  %v186 = vunpack.c.l.b16 %v37
  %v187 = vunpack.c.l.b16 %v38
  %v188 = vunpack.c.l.b16 %v39
  %v189 = vunpack.c.l.b16 %v40
  %v190 = vunpack.c.l.b16 %v41
  %v191 = vunpack.c.l.b16 %v42
  %v192 = vunpack.c.l.b16 %v43
  %v193 = vunpack.c.l.b16 %v44
  %v194 = vunpack.c.l.b16 %v45
  %v195 = vunpack.c.l.b16 %v46
  %v196 = vunpack.c.l.b16 %v47
  %v197 = vunpack.c.l.b16 %v48
  %v198 = vunpack.c.l.b16 %v49
  %v199 = vunpack.c.l.b16 %v50
  %v200 = vunpack.c.l.b16 %v51
  %v201 = vunpack.c.l.b16 %v52
  %v202 = vunpack.c.l.b16 %v53
  %v203 = vunpack.c.l.b16 %v54
  %v204 = vunpack.c.l.b16 %v55
  %v205 = vunpack.c.l.b16 %v56
  %v206 = vunpack.c.l.b16 %v57
  %v207 = vunpack.c.l.b16 %v58
  %v208 = vunpack.c.l.b16 %v59
  %v209 = vunpack.c.l.b16 %v60
  %v210 = vunpack.c.l.b16 %v61
  %v211 = vunpack.c.l.b16 %v62
  %v212 = vunpack.c.l.b16 %v63
  %v213 = vunpack.c.l.b16 %v64
  %v214 = vunpack.c.l.b16 %v65
  %v215 = vunpack.c.l.b16 %v66
  %v216 = vunpack.c.l.b16 %v67
  %v217 = vunpack.c.l.b16 %v68
  %v218 = vunpack.c.l.b16 %v69
  %v219 = vunpack.c.l.b16 %v70
  %v220 = vunpack.c.l.b16 %v71
  %v221 = vunpack.c.l.b16 %v72
  %v222 = vunpack.c.l.b16 %v73
  %v223 = vunpack.c.l.b16 %v74
  %v224 = vunpack.c.l.b16 %v75
  %v225 = vunpack.c.l.b16 %v76
  %v226 = vunpack.c.l.b16 %v77
  %v227 = vunpack.c.l.b16 %v78
  %v228 = vunpack.c.l.b16 %v79
  %v229 = vunpack.c.l.b16 %v80
  %v230 = vunpack.c.l.b16 %v81
  %v231 = vunpack.c.l.b16 %v82
  %v232 = vunpack.c.l.b16 %v83
  %v233 = vunpack.c.l.b16 %v84
  %v234 = vunpack.c.l.b16 %v85
  %v235 = vunpack.c.l.b16 %v86
  %v236 = vunpack.c.l.b16 %v87
  %v237 = vunpack.c.l.b16 %v88
  %v238 = vunpack.c.l.b16 %v89
  %v239 = vunpack.c.l.b16 %v90
  %v240 = vunpack.c.l.b16 %v91
  %v241 = vunpack.c.l.b16 %v92
  %v242 = vpack.c.b16 %v179, %v178
  %v243 = vpack.c.b16 %v181, %v180
  %v244 = vpack.c.b16 %v183, %v182
  %v245 = vpack.c.b16 %v185, %v184
  %v246 = vpack.c.b16 %v187, %v186
  %v247 = vpack.c.b16 %v189, %v188
  %v248 = vpack.c.b16 %v191, %v190
  %v249 = vpack.c.b16 %v193, %v192
  %v250 = vpack.c.b16 %v195, %v194
  %v251 = vpack.c.b16 %v197, %v196
  %v252 = vpack.c.b16 %v199, %v198
  %v253 = vpack.c.b16 %v201, %v200
  %v254 = vpack.c.b16 %v203, %v202
  %v255 = vpack.c.b16 %v205, %v204
  %v256 = vpack.c.b16 %v207, %v206
  %v257 = vpack.c.b16 %v209, %v208
  %v258 = vpack.c.b16 %v211, %v210
  %v259 = vpack.c.b16 %v213, %v212
  %v260 = vpack.c.b16 %v215, %v214
  %v261 = vpack.c.b16 %v217, %v216
  %v262 = vpack.c.b16 %v219, %v218
  %v263 = vpack.c.b16 %v221, %v220
  %v264 = vpack.c.b16 %v223, %v222
  %v265 = vpack.c.b16 %v225, %v224
  %v266 = vpack.c.b16 %v227, %v226
  %v267 = vpack.c.b16 %v229, %v228
  %v268 = vpack.c.b16 %v231, %v230
  %v269 = vpack.c.b16 %v233, %v232
  %v270 = vpack.c.b16 %v235, %v234
  %v271 = vpack.c.b16 %v237, %v236
  %v272 = vpack.c.b16 %v239, %v238
  %v273 = vpack.c.b16 %v241, %v240
  %306 = vmatprep.subr.bf16.mxu0 0
  %307 = vmatpush1.bf16.msra.mxu0 %v242
  %308 = vmatprep.subr.bf16.mxu0 0
  %309 = vmatpush1.bf16.msra.mxu0 %v243
  %310 = vmatprep.subr.bf16.mxu0 0
  %311 = vmatpush1.bf16.msra.mxu0 %v244
  %312 = vmatprep.subr.bf16.mxu0 0
  %313 = vmatpush1.bf16.msra.mxu0 %v245
  %314 = vmatprep.subr.bf16.mxu0 0
  %315 = vmatpush1.bf16.msra.mxu0 %v246
  %316 = vmatprep.subr.bf16.mxu0 0
  %317 = vmatpush1.bf16.msra.mxu0 %v247
  %318 = vmatprep.subr.bf16.mxu0 0
  %319 = vmatpush1.bf16.msra.mxu0 %v248
  %320 = vmatprep.subr.bf16.mxu0 0
  %321 = vmatpush1.bf16.msra.mxu0 %v249
  %322 = vmatprep.subr.bf16.mxu0 0
  %323 = vmatpush1.bf16.msra.mxu0 %v250
  %324 = vmatprep.subr.bf16.mxu0 0
  %325 = vmatpush1.bf16.msra.mxu0 %v251
  %326 = vmatprep.subr.bf16.mxu0 0
  %327 = vmatpush1.bf16.msra.mxu0 %v252
  %328 = vmatprep.subr.bf16.mxu0 0
  %329 = vmatpush1.bf16.msra.mxu0 %v253
  %330 = vmatprep.subr.bf16.mxu0 0
  %331 = vmatpush1.bf16.msra.mxu0 %v254
  %332 = vmatprep.subr.bf16.mxu0 0
  %333 = vmatpush1.bf16.msra.mxu0 %v255
  %334 = vmatprep.subr.bf16.mxu0 0
  %335 = vmatpush1.bf16.msra.mxu0 %v256
  %336 = vmatprep.subr.bf16.mxu0 0
  %337 = vmatpush1.bf16.msra.mxu0 %v257
  %338 = vmatprep.mubr.bf16.mxu0 %v107
  %339 = vmatmul.mubr.bf16.gmra.mrb[0].mxu0 %v106
  %v340 = vpop.f32.mrb[0].mxu0
  %v341 = vadd.f32 %v98, %v340
  %v342 = vpop.f32.mrb[0].mxu0
  %v343 = vpop.f32.mrb[0].mxu0
  %v344 = vpop.f32.mrb[0].mxu0
  %345 = vdwg.mxu0
  %346 = vmatprep.subr.bf16.mxu0 0
  %347 = vmatpush1.bf16.msra.mxu0 %v258
  %348 = vmatprep.subr.bf16.mxu0 0
  %349 = vmatpush1.bf16.msra.mxu0 %v259
  %350 = vmatprep.subr.bf16.mxu0 0
  %351 = vmatpush1.bf16.msra.mxu0 %v260
  %352 = vmatprep.subr.bf16.mxu0 0
  %353 = vmatpush1.bf16.msra.mxu0 %v261
  %354 = vmatprep.subr.bf16.mxu0 0
  %355 = vmatpush1.bf16.msra.mxu0 %v262
  %356 = vmatprep.subr.bf16.mxu0 0
  %357 = vmatpush1.bf16.msra.mxu0 %v263
  %358 = vmatprep.subr.bf16.mxu0 0
  %359 = vmatpush1.bf16.msra.mxu0 %v264
  %360 = vmatprep.subr.bf16.mxu0 0
  %361 = vmatpush1.bf16.msra.mxu0 %v265
  %362 = vmatprep.subr.bf16.mxu0 0
  %363 = vmatpush1.bf16.msra.mxu0 %v266
  %364 = vmatprep.subr.bf16.mxu0 0
  %365 = vmatpush1.bf16.msra.mxu0 %v267
  %366 = vmatprep.subr.bf16.mxu0 0
  %367 = vmatpush1.bf16.msra.mxu0 %v268
  %368 = vmatprep.subr.bf16.mxu0 0
  %369 = vmatpush1.bf16.msra.mxu0 %v269
  %370 = vmatprep.subr.bf16.mxu0 0
  %371 = vmatpush1.bf16.msra.mxu0 %v270
  %372 = vmatprep.subr.bf16.mxu0 0
  %373 = vmatpush1.bf16.msra.mxu0 %v271
  %374 = vmatprep.subr.bf16.mxu0 0
  %375 = vmatpush1.bf16.msra.mxu0 %v272
  %376 = vmatprep.subr.bf16.mxu0 0
  %377 = vmatpush1.bf16.msra.mxu0 %v273
  %378 = vmatprep.mubr.bf16.mxu0 %v109
  %379 = vmatmul.mubr.bf16.gmra.mrb[0].mxu0 %v108
  %v380 = vpop.f32.mrb[0].mxu0
  %v381 = vadd.f32 %v341, %v380
  %v382 = vpop.f32.mrb[0].mxu0
  %v383 = vpop.f32.mrb[0].mxu0
  %v384 = vpop.f32.mrb[0].mxu0
  %385 = vdwg.mxu0
  %v386 = vmax.f32 %v381, 0.0
  %v387 = vpack.c.bf16 %v386, %v386
  %v388 = vld [vmem:[%s3] sm:$0xf]
  %v389 = vld [vmem:[%s3 + $0x4] sm:$0xf]
  %v390 = vld [vmem:[%s3 + $0x8] sm:$0xf]
  %v391 = vld [vmem:[%s3 + $0xc] sm:$0xf]
  %v392 = vld [vmem:[%s3 + $0x10] sm:$0xf]
  %v393 = vld [vmem:[%s3 + $0x14] sm:$0xf]
  %v394 = vld [vmem:[%s3 + $0x18] sm:$0xf]
  %v395 = vld [vmem:[%s3 + $0x1c] sm:$0xf]
  %v396 = vld [vmem:[%s3 + $0x20] sm:$0xf]
  %v397 = vld [vmem:[%s3 + $0x24] sm:$0xf]
  %v398 = vld [vmem:[%s3 + $0x28] sm:$0xf]
  %v399 = vld [vmem:[%s3 + $0x2c] sm:$0xf]
  %v400 = vld [vmem:[%s3 + $0x30] sm:$0xf]
  %v401 = vld [vmem:[%s3 + $0x34] sm:$0xf]
  %v402 = vld [vmem:[%s3 + $0x38] sm:$0xf]
  %v403 = vld [vmem:[%s3 + $0x3c] sm:$0xf]
  %v404 = vld [vmem:[%s4] sm:$0x1]
  %v406 = vlaneseq
  %v407 = vshrl.u32 %v406, 7
  %v408 = vsub.s32 0, %v407
  %v409 = vrot.slane %v404, %v408
  %v427 = vunpack.c.l.b16 %v388
  %v428 = vunpack.c.l.b16 %v389
  %v429 = vunpack.c.l.b16 %v390
  %v430 = vunpack.c.l.b16 %v391
  %v431 = vunpack.c.l.b16 %v392
  %v432 = vunpack.c.l.b16 %v393
  %v433 = vunpack.c.l.b16 %v394
  %v434 = vunpack.c.l.b16 %v395
  %v435 = vunpack.c.l.b16 %v396
  %v436 = vunpack.c.l.b16 %v397
  %v437 = vunpack.c.l.b16 %v398
  %v438 = vunpack.c.l.b16 %v399
  %v439 = vunpack.c.l.b16 %v400
  %v440 = vunpack.c.l.b16 %v401
  %v441 = vunpack.c.l.b16 %v402
  %v442 = vunpack.c.l.b16 %v403
  %v443 = vpack.c.b16 %v428, %v427
  %v444 = vpack.c.b16 %v430, %v429
  %v445 = vpack.c.b16 %v432, %v431
  %v446 = vpack.c.b16 %v434, %v433
  %v447 = vpack.c.b16 %v436, %v435
  %v448 = vpack.c.b16 %v438, %v437
  %v449 = vpack.c.b16 %v440, %v439
  %v450 = vpack.c.b16 %v442, %v441
  %459 = vmatprep.subr.bf16.mxu0 0
  %460 = vmatpush1.bf16.msra.mxu0 %v443
  %461 = vmatprep.subr.bf16.mxu0 0
  %462 = vmatpush1.bf16.msra.mxu0 %v444
  %463 = vmatprep.subr.bf16.mxu0 0
  %464 = vmatpush1.bf16.msra.mxu0 %v445
  %465 = vmatprep.subr.bf16.mxu0 0
  %466 = vmatpush1.bf16.msra.mxu0 %v446
  %467 = vmatprep.subr.bf16.mxu0 0
  %468 = vmatpush1.bf16.msra.mxu0 %v447
  %469 = vmatprep.subr.bf16.mxu0 0
  %470 = vmatpush1.bf16.msra.mxu0 %v448
  %471 = vmatprep.subr.bf16.mxu0 0
  %472 = vmatpush1.bf16.msra.mxu0 %v449
  %473 = vmatprep.subr.bf16.mxu0 0
  %474 = vmatpush1.bf16.msra.mxu0 %v450
  %475 = vmatprep.subr.bf16.mxu0 0
  %476 = vmatpush1.bf16.msra.mxu0 0
  %477 = vmatprep.subr.bf16.mxu0 0
  %478 = vmatpush1.bf16.msra.mxu0 0
  %479 = vmatprep.subr.bf16.mxu0 0
  %480 = vmatpush1.bf16.msra.mxu0 0
  %481 = vmatprep.subr.bf16.mxu0 0
  %482 = vmatpush1.bf16.msra.mxu0 0
  %483 = vmatprep.subr.bf16.mxu0 0
  %484 = vmatpush1.bf16.msra.mxu0 0
  %485 = vmatprep.subr.bf16.mxu0 0
  %486 = vmatpush1.bf16.msra.mxu0 0
  %487 = vmatprep.subr.bf16.mxu0 0
  %488 = vmatpush1.bf16.msra.mxu0 0
  %489 = vmatprep.subr.bf16.mxu0 0
  %490 = vmatpush1.bf16.msra.mxu0 0
  %491 = vmatprep.mubr.bf16.mxu0 0
  %492 = vmatmul.mubr.bf16.gmra.mrb[0].mxu0 %v387
  %v493 = vpop.f32.mrb[0].mxu0
  %v494 = vadd.f32 %v409, %v493
  %v495 = vpop.f32.mrb[0].mxu0
  %v496 = vpop.f32.mrb[0].mxu0
  %v497 = vpop.f32.mrb[0].mxu0
  %498 = vdwg.mxu0
  %v499 = vmax.f32 %v494, 0.0
  %v500 = vpack.c.bf16 %v499, %v499
  %v501 = vld [vmem:[%s5] sm:$0xf]
  %v502 = vld [vmem:[%s5 + $0x4] sm:$0xf]
  %v503 = vld [vmem:[%s5 + $0x8] sm:$0xf]
  %v504 = vld [vmem:[%s5 + $0xc] sm:$0xf]
  %v505 = vld [vmem:[%s5 + $0x10] sm:$0xf]
  %v506 = vld [vmem:[%s5 + $0x14] sm:$0xf]
  %v507 = vld [vmem:[%s5 + $0x18] sm:$0xf]
  %v508 = vld [vmem:[%s5 + $0x1c] sm:$0xf]
  %v509 = vld [vmem:[%s5 + $0x20] sm:$0xf]
  %v510 = vld [vmem:[%s5 + $0x24] sm:$0xf]
  %v511 = vld [vmem:[%s5 + $0x28] sm:$0xf]
  %v512 = vld [vmem:[%s5 + $0x2c] sm:$0xf]
  %v513 = vld [vmem:[%s5 + $0x30] sm:$0xf]
  %v514 = vld [vmem:[%s5 + $0x34] sm:$0xf]
  %v515 = vld [vmem:[%s5 + $0x38] sm:$0xf]
  %v516 = vld [vmem:[%s5 + $0x3c] sm:$0xf]
  %v517 = vld [vmem:[%s6] sm:$0x1]
  %v519 = vlaneseq
  %v520 = vshrl.u32 %v519, 7
  %v521 = vsub.s32 0, %v520
  %v522 = vrot.slane %v517, %v521
  %v540 = vunpack.c.l.b16 %v501
  %v541 = vunpack.c.l.b16 %v502
  %v542 = vunpack.c.l.b16 %v503
  %v543 = vunpack.c.l.b16 %v504
  %v544 = vunpack.c.l.b16 %v505
  %v545 = vunpack.c.l.b16 %v506
  %v546 = vunpack.c.l.b16 %v507
  %v547 = vunpack.c.l.b16 %v508
  %v548 = vunpack.c.l.b16 %v509
  %v549 = vunpack.c.l.b16 %v510
  %v550 = vunpack.c.l.b16 %v511
  %v551 = vunpack.c.l.b16 %v512
  %v552 = vunpack.c.l.b16 %v513
  %v553 = vunpack.c.l.b16 %v514
  %v554 = vunpack.c.l.b16 %v515
  %v555 = vunpack.c.l.b16 %v516
  %v556 = vpack.c.b16 %v541, %v540
  %v557 = vpack.c.b16 %v543, %v542
  %v558 = vpack.c.b16 %v545, %v544
  %v559 = vpack.c.b16 %v547, %v546
  %v560 = vpack.c.b16 %v549, %v548
  %v561 = vpack.c.b16 %v551, %v550
  %v562 = vpack.c.b16 %v553, %v552
  %v563 = vpack.c.b16 %v555, %v554
  %572 = vmatprep.subr.bf16.mxu0 0
  %573 = vmatpush1.bf16.msra.mxu0 %v556
  %574 = vmatprep.subr.bf16.mxu0 0
  %575 = vmatpush1.bf16.msra.mxu0 %v557
  %576 = vmatprep.subr.bf16.mxu0 0
  %577 = vmatpush1.bf16.msra.mxu0 %v558
  %578 = vmatprep.subr.bf16.mxu0 0
  %579 = vmatpush1.bf16.msra.mxu0 %v559
  %580 = vmatprep.subr.bf16.mxu0 0
  %581 = vmatpush1.bf16.msra.mxu0 %v560
  %582 = vmatprep.subr.bf16.mxu0 0
  %583 = vmatpush1.bf16.msra.mxu0 %v561
  %584 = vmatprep.subr.bf16.mxu0 0
  %585 = vmatpush1.bf16.msra.mxu0 %v562
  %586 = vmatprep.subr.bf16.mxu0 0
  %587 = vmatpush1.bf16.msra.mxu0 %v563
  %588 = vmatprep.subr.bf16.mxu0 0
  %589 = vmatpush1.bf16.msra.mxu0 0
  %590 = vmatprep.subr.bf16.mxu0 0
  %591 = vmatpush1.bf16.msra.mxu0 0
  %592 = vmatprep.subr.bf16.mxu0 0
  %593 = vmatpush1.bf16.msra.mxu0 0
  %594 = vmatprep.subr.bf16.mxu0 0
  %595 = vmatpush1.bf16.msra.mxu0 0
  %596 = vmatprep.subr.bf16.mxu0 0
  %597 = vmatpush1.bf16.msra.mxu0 0
  %598 = vmatprep.subr.bf16.mxu0 0
  %599 = vmatpush1.bf16.msra.mxu0 0
  %600 = vmatprep.subr.bf16.mxu0 0
  %601 = vmatpush1.bf16.msra.mxu0 0
  %602 = vmatprep.subr.bf16.mxu0 0
  %603 = vmatpush1.bf16.msra.mxu0 0
  %604 = vmatprep.mubr.bf16.mxu0 0
  %605 = vmatmul.mubr.bf16.gmra.mrb[0].mxu0 %v500
  %v606 = vpop.f32.mrb[0].mxu0
  %v607 = vadd.f32 %v522, %v606
  %v608 = vpop.f32.mrb[0].mxu0
  %v609 = vpop.f32.mrb[0].mxu0
  %v610 = vpop.f32.mrb[0].mxu0
  %611 = vdwg.mxu0
  %612 = vst [vmem:[%s7] sm:$0xff] %v607
  // Predicated region
  $region30: #{net_forward.5} parent=0 // pred_check
    _
  $region31: #{net_forward.5} parent=0 // pred_check_branch
    %614 = sbr.rel (0) target = $region33
  $region32: #{net_forward.5} parent=0 // pred_region
    _
  $region33: #{net_forward.5} parent=0 // pred_fallthru
    _
  // Predicated region
  $region34: #{net_forward.5} parent=0 // pred_check
    _
  $region35: #{net_forward.5} parent=0 // pred_check_branch
    %616 = sbr.rel (0) target = $region37
  $region36: #{net_forward.5} parent=0 // pred_region
    _
  $region37: #{net_forward.5} parent=0 // pred_fallthru
    _

</llo_original>
